<compile_context>
chip_gen: v7x
topology: tpu7x:2x2x1
jax: 0.10.0
libtpu: 0.0.40
codegen_flags: <defaults>
</compile_context>

<pallas_src>
import numpy as np
import jax
import jax.numpy as jnp
from jax.experimental import pallas as pl
from jax.experimental.pallas import tpu as pltpu


# Phase/row "slots" of the fused "2x nearest upsample + 3x3 conv".
# Output pixel y[:, :, 2i+a, 2j+g] (phase (a, g)) is a 2x2-support conv over the
# zero-padded ORIGINAL-resolution input: rows s in {a, a+1}, cols t in {g, g+1}.
# The two column taps (t = g, g+1) are K-packed into one 2C-deep contraction,
# so each slot below is exactly one MXU matmul: 8 dots per output tile.
_CONV_SLOTS = tuple((a, g, s) for a in (0, 1) for g in (0, 1) for s in (a, a + 1))
_SLOT_IDX = {k: i for i, k in enumerate(_CONV_SLOTS)}


# --------------------------------------------------------------------------
# Hardware / tiling helpers
# --------------------------------------------------------------------------
def _vmem_capacity_bytes():
    try:
        return int(pltpu.get_tpu_info().vmem_capacity_bytes)
    except Exception:
        return 64 * 1024 * 1024          # conservative default (v7x per-core VMEM)


def _compiler_params(dim_sems):
    return pltpu.CompilerParams(
        dimension_semantics=dim_sems,
        vmem_limit_bytes=int(_vmem_capacity_bytes() * 3 // 4))


def _divisors_desc(n):
    return [d for d in range(n, 0, -1) if n % d == 0]


def _conv_tiles(B, H, W, C, Cout, in_isz, out_isz):
    """Pick (padded Cout, Cout tile, H tile) under an explicit VMEM budget."""
    budget = _vmem_capacity_bytes() // 2

    if Cout <= 256:
        co_cands = [(Cout, Cout)]
    else:
        cout_p = -(-Cout // 128) * 128          # pad to a lane multiple -> bounded tiles
        co_cands = ([(cout_p, 256)] if cout_p % 256 == 0 else []) + [(cout_p, 128)]

    # H tiles must keep the output block's sublane dim (tH*W) a multiple of 8
    # (or be the full extent H).
    valid_th = [d for d in _divisors_desc(H) if d == H or (d * W) % 8 == 0]

    def step_bytes(th, tco):
        in_blk = (th + 2) * (W + 2) * C * in_isz
        wk_blk = 8 * 2 * C * tco * in_isz
        out_blk = 4 * th * W * tco * out_isz
        acc = 4 * th * W * tco * 4                       # f32 accumulators
        cat = (th + 2) * W * 2 * C * in_isz              # channel-doubled scratch
        return 2 * (in_blk + wk_blk + out_blk) + acc + cat   # in/wk/out double-buffered

    for cout_p, tco in co_cands:
        feas = [d for d in valid_th if step_bytes(d, tco) <= budget]
        if not feas:
            continue
        th = feas[0]
        # Ensure >= 2 grid steps so both v7x TensorCores get work.
        if B == 1 and cout_p == tco and th == H:
            sub = [d for d in feas if d < H]
            if sub:
                th = sub[0]
        return cout_p, tco, th

    # TODO(synk): for very large C*Cout on v7x, add an input-channel (K)
    # reduction grid axis instead of falling back to the smallest spatial tile.
    cout_p, tco = co_cands[-1]
    return cout_p, tco, valid_th[-1]


def _pick_row_tile(R, W, isz):
    """Row tile for the mem-bound no-conv path: ~1 MiB blocks, >= 2 grid steps."""
    target_rows = max(8, (1 << 20) // max(1, W * isz))
    cap = min(R, target_rows)
    if R >= 16:
        cap = min(cap, R // 2)
    for d in range(cap, 0, -1):
        if R % d == 0 and (d % 8 == 0 or d == R):
            return d
    return R


# --------------------------------------------------------------------------
# use_conv=True kernel: fused upsample + 3x3 conv, 8 K-packed MXU matmuls/step
# --------------------------------------------------------------------------
def _upsample_conv_kernel(xt_ref, wk_ref, b_ref, o_ref, cat_ref):
    # xt_ref : (1, 1, tH+2, W+2, C)   zero-padded NHWC input rows (with halo)
    # wk_ref : (8, 2C, tco)           K-packed per-(phase,row) weights
    # b_ref  : (1, tco)               bias (f32)
    # o_ref  : (1, 2, 2, tH*W, tco)   o[0,a,g,i*W+j,:] = y[:, 2(i0+i)+a, 2j+g]
    # cat_ref: (tH+2, W, 2C)          scratch: channel-doubled shifted window
    thp, wp, c = xt_ref.shape[2], xt_ref.shape[3], xt_ref.shape[4]
    th, w = thp - 2, wp - 2
    bias = b_ref[...].astype(jnp.float32)                       # (1, tco), hoisted

    for g in range(2):
        # Pack the two column taps (t = g, g+1) along channels: only two copies
        # of the input block per step (vs. 9 window materializations before).
        cat_ref[:, :, :c] = xt_ref[0, 0, :, g:g + w, :]
        cat_ref[:, :, c:] = xt_ref[0, 0, :, g + 1:g + 1 + w, :]
        for a in range(2):
            acc = None
            for s in (a, a + 1):
                win = cat_ref[s:s + th, :, :].reshape(th * w, 2 * c)
                part = jnp.dot(win, wk_ref[_SLOT_IDX[(a, g, s)]],
                               preferred_element_type=jnp.float32)
                acc = part if acc is None else acc + part
            o_ref[0, a, g] = (acc + bias).astype(o_ref.dtype)


def _upsample_conv(x, conv_w, conv_b, *, use_bf16_mxu=True, h_tile=None):
    B, C, H, W = x.shape
    Cout = conv_w.shape[0]
    assert conv_w.shape == (Cout, C, 3, 3), "conv must be (Cout, C, 3, 3)"

    out_dt = x.dtype
    mm_dt = jnp.bfloat16 if (use_bf16_mxu or x.dtype == jnp.bfloat16) else jnp.float32
    in_isz = np.dtype(mm_dt).itemsize
    out_isz = np.dtype(out_dt).itemsize

    cout_p, tco, tH = _conv_tiles(B, H, W, C, Cout, in_isz, out_isz)
    if h_tile is not None:
        tH = int(h_tile)
        assert H % tH == 0 and (tH == H or (tH * W) % 8 == 0)
    nH = H // tH
    n_co = cout_p // tco

    # ---- weights: WK[(a,g,s)] = [WQ[a,g,s,g]; WQ[a,g,s,g+1]]  (2C, Cout) ----
    sel = np.zeros((2, 3, 3), np.float32)
    for a in range(2):
        for d in range(3):
            sel[a, (a + d + 1) // 2, d] = 1.0
    sel = jnp.asarray(sel)
    wq = jnp.einsum("asd,gte,ocde->agstco", sel, sel,
                    conv_w.astype(jnp.float32))                  # (2,2,3,3,C,Cout)
    wk = jnp.stack(
        [jnp.concatenate([wq[a, g, s, g], wq[a, g, s, g + 1]], axis=0)
         for (a, g, s) in _CONV_SLOTS], axis=0)                  # (8, 2C, Cout)
    bias = (jnp.zeros((Cout,), jnp.float32) if conv_b is None
            else conv_b.astype(jnp.float32))
    if cout_p != Cout:                                           # lane-friendly pad
        wk = jnp.pad(wk, ((0, 0), (0, 0), (0, cout_p - Cout)))
        bias = jnp.pad(bias, (0, cout_p - Cout))
    wk = wk.astype(mm_dt)
    bias = bias.reshape(1, cout_p)

    # ---- input: NCHW -> NHWC, zero pad 1, halo-overlapped row tiles ----
    xp = jnp.pad(jnp.transpose(x, (0, 2, 3, 1)),
                 ((0, 0), (1, 1), (1, 1), (0, 0))).astype(mm_dt)  # (B, H+2, W+2, C)
    if nH == 1:
        xt = xp[:, None]                                          # (B, 1, H+2, W+2, C)
    else:
        rows = np.arange(nH)[:, None] * tH + np.arange(tH + 2)[None, :]
        xt = xp[:, rows]                                          # (B, nH, tH+2, W+2, C)

    out = pl.pallas_call(
        _upsample_conv_kernel,
        out_shape=jax.ShapeDtypeStruct((B, 2, 2, H * W, cout_p), out_dt),
        grid_spec=pltpu.PrefetchScalarGridSpec(
            num_scalar_prefetch=0,
            grid=(B, nH, n_co),
            in_specs=[
                pl.BlockSpec((1, 1, tH + 2, W + 2, C),
                             lambda b, h, j: (b, h, 0, 0, 0)),
                pl.BlockSpec((8, 2 * C, tco), lambda b, h, j: (0, 0, j)),
                pl.BlockSpec((1, tco), lambda b, h, j: (0, j)),
            ],
            out_specs=pl.BlockSpec((1, 2, 2, tH * W, tco),
                                   lambda b, h, j: (b, 0, 0, h, j)),
            scratch_shapes=[pltpu.VMEM((tH + 2, W, 2 * C), mm_dt)],
        ),
        compiler_params=_compiler_params(("parallel", "parallel", "parallel")),
    )(xt, wk, bias)

    # Phases -> NCHW.  This single transpose is the only extra HBM pass over the
    # 4x-sized output and is unavoidable for an NCHW consumer.
    y = out[..., :Cout] if cout_p != Cout else out
    y = y.reshape(B, 2, 2, H, W, Cout)
    y = jnp.transpose(y, (0, 5, 3, 1, 4, 2))                     # (B, Cout, H, 2, W, 2)
    return y.reshape(B, Cout, 2 * H, 2 * W)


# --------------------------------------------------------------------------
# use_conv=False kernel: mem-bound nearest upsample, big lane-dense row tiles
# --------------------------------------------------------------------------
def _upsample_only_kernel(x_ref, sel_ref, o_ref):
    # x_ref: (tR, W); sel_ref: (W, 4W) 0/1 selector; o_ref: (tR, 4W)
    o_ref[...] = jnp.dot(x_ref[...], sel_ref[...],
                         preferred_element_type=jnp.float32).astype(o_ref.dtype)


def _upsample_only(x):
    B, C, H, W = x.shape
    dt = x.dtype
    R = B * C * H
    tR = _pick_row_tile(R, W, np.dtype(dt).itemsize)
    nR = R // tR

    j = jnp.arange(2 * W)
    sel = (j[None, :] // 2 == jnp.arange(W)[:, None]).astype(dt)   # (W, 2W)
    sel2 = jnp.concatenate([sel, sel], axis=1)                     # (W, 4W)

    xf = x.reshape(R, W)                                           # free collapse
    out = pl.pallas_call(
        _upsample_only_kernel,
        out_shape=jax.ShapeDtypeStruct((R, 4 * W), dt),
        grid_spec=pltpu.PrefetchScalarGridSpec(
            num_scalar_prefetch=0,
            grid=(nR,),
            in_specs=[pl.BlockSpec((tR, W), lambda r: (r, 0)),
                      pl.BlockSpec((W, 4 * W), lambda r: (0, 0))],
            out_specs=pl.BlockSpec((tR, 4 * W), lambda r: (r, 0)),
        ),
        compiler_params=_compiler_params(("parallel",)),
    )(xf, sel2)

    # (R, 4W) -> (B, C, H, 4W) -> (B, C, 2H, 2W): free reshapes (row 2i+a of the
    # output is the a-th 2W-wide half of lane-row i).
    return out.reshape(B, C, 2 * H, 2 * W)


# --------------------------------------------------------------------------
# Public entry point
# --------------------------------------------------------------------------
def upsample_forward(x, conv_w=None, conv_b=None, *, use_conv=True,
                     use_bf16_mxu=True, h_tile=None):
    """Pallas forward of the PyTorch Upsample block.

    x: (B, C, H, W) -> (B, C, 2H, 2W); if use_conv, a Conv2d(C, C, 3, padding=1)
    with weights conv_w (C, C, 3, 3) / bias conv_b (C,) is applied afterwards.
    use_bf16_mxu: run the conv matmuls with bf16 MXU inputs (f32 accumulation).
    h_tile: optional explicit spatial row tile (must divide H).
    """
    if not use_conv:
        return _upsample_only(x)
    if conv_w is None:
        raise ValueError("use_conv=True requires conv_w")
    return _upsample_conv(x, conv_w, conv_b, use_bf16_mxu=use_bf16_mxu,
                          h_tile=h_tile)


# --------------------------------------------------------------------------
# Pure-JAX reference (matches F.interpolate(nearest, 2x) [+ Conv2d(3, pad=1)])
# --------------------------------------------------------------------------
def _reference(x, w, b, use_conv):
    up = jnp.repeat(jnp.repeat(x, 2, axis=2), 2, axis=3)
    if not use_conv:
        return up
    out = jax.lax.conv_general_dilated(
        up, w, window_strides=(1, 1), padding=((1, 1), (1, 1)),
        dimension_numbers=("NCHW", "OIHW", "NCHW"))
    return out + b[None, :, None, None]


if __name__ == "__main__":
    B, C, H, W = 2, 4, 16, 16
    key = jax.random.PRNGKey(0)
    kx, kw, kb = jax.random.split(key, 3)

    x = jax.random.normal(kx, (B, C, H, W), dtype=jnp.float32)

    # nn.Conv2d(C, C, 3, padding=1) default init: U(-k, k), k = 1/sqrt(C*3*3)
    fan_in = C * 3 * 3
    bound = 1.0 / float(np.sqrt(fan_in))
    conv_w = jax.random.uniform(kw, (C, C, 3, 3), jnp.float32, -bound, bound)
    conv_b = jax.random.uniform(kb, (C,), jnp.float32, -bound, bound)

    y_ref = _reference(x, conv_w, conv_b, True)

    # 1) conv path, exact f32 MXU, default tiling
    y = jax.block_until_ready(
        upsample_forward(x, conv_w, conv_b, use_conv=True, use_bf16_mxu=False))
    np.testing.assert_allclose(np.asarray(y), np.asarray(y_ref),
                               rtol=1e-4, atol=1e-4)

    # 2) conv path, exact f32 MXU, forced spatial (H-row) tiling with halo
    y = jax.block_until_ready(
        upsample_forward(x, conv_w, conv_b, use_conv=True, use_bf16_mxu=False,
                         h_tile=4))
    np.testing.assert_allclose(np.asarray(y), np.asarray(y_ref),
                               rtol=1e-4, atol=1e-4)

    # 3) conv path, bf16 MXU inputs with f32 accumulation (default fast path)
    y = jax.block_until_ready(
        upsample_forward(x, conv_w, conv_b, use_conv=True, use_bf16_mxu=True))
    np.testing.assert_allclose(np.asarray(y), np.asarray(y_ref),
                               rtol=5e-2, atol=5e-2)

    # 4) no-conv path (pure nearest upsample)
    y2 = jax.block_until_ready(upsample_forward(x, use_conv=False))
    y2_ref = _reference(x, None, None, False)
    np.testing.assert_allclose(np.asarray(y2), np.asarray(y2_ref),
                               rtol=1e-6, atol=1e-6)

    print("KERNEL_OK")
</pallas_src>

<mosaic_0001>
module attributes {stable_mosaic.version = 11 : i64} {
  func.func @_upsample_conv_kernel(%arg0: i32, %arg1: i32, %arg2: i32, %arg3: memref<1x1x18x18x4xf32, #tpu.memory_space<vmem>>, %arg4: memref<8x8x4xf32, #tpu.memory_space<vmem>>, %arg5: memref<1x4xf32, #tpu.memory_space<vmem>>, %arg6: memref<1x2x2x256x4xf32, #tpu.memory_space<vmem>>, %arg7: memref<18x16x8xf32, #tpu.memory_space<vmem>>) attributes {dimension_semantics = [#tpu.dimension_semantics<parallel>, #tpu.dimension_semantics<parallel>, #tpu.dimension_semantics<parallel>], iteration_bounds = array<i64: 2, 1, 1>, scalar_prefetch = 0 : i64, scratch_operands = 1 : i64, tpu.core_type = #tpu.core_type<tc>, window_params = [{transform_indices = @transform_0, window_bounds = array<i64: 1, 1, 18, 18, 4>}, {transform_indices = @transform_1, window_bounds = array<i64: 8, 8, 4>}, {transform_indices = @transform_2, window_bounds = array<i64: 1, 4>}, {transform_indices = @transform_3, window_bounds = array<i64: 1, 2, 2, 256, 4>}]} {
    %c0 = arith.constant 0 : index
    %c0_0 = arith.constant 0 : index
    %0 = vector.load %arg5[%c0, %c0_0] : memref<1x4xf32, #tpu.memory_space<vmem>>, vector<1x4xf32>
    %c0_1 = arith.constant 0 : index
    %c0_2 = arith.constant 0 : index
    %c0_3 = arith.constant 0 : index
    %c0_4 = arith.constant 0 : index
    %c0_5 = arith.constant 0 : index
    %1 = vector.load %arg3[%c0_1, %c0_2, %c0_3, %c0_4, %c0_5] : memref<1x1x18x18x4xf32, #tpu.memory_space<vmem>>, vector<1x1x18x16x4xf32>
    %2 = vector.shape_cast %1 : vector<1x1x18x16x4xf32> to vector<18x16x4xf32>
    %c0_6 = arith.constant 0 : index
    %c0_7 = arith.constant 0 : index
    %c0_8 = arith.constant 0 : index
    %3 = vector.load %arg7[%c0_6, %c0_7, %c0_8] : memref<18x16x8xf32, #tpu.memory_space<vmem>>, vector<18x16x4xf32>
    tpu.vector_store %arg7[%c0_6, %c0_7, %c0_8], %2 {strides = array<i32>} : memref<18x16x8xf32, #tpu.memory_space<vmem>>, vector<18x16x4xf32>,
    %c0_9 = arith.constant 0 : index
    %c0_10 = arith.constant 0 : index
    %c0_11 = arith.constant 0 : index
    %c1 = arith.constant 1 : index
    %c0_12 = arith.constant 0 : index
    %4 = vector.load %arg3[%c0_9, %c0_10, %c0_11, %c1, %c0_12] : memref<1x1x18x18x4xf32, #tpu.memory_space<vmem>>, vector<1x1x18x16x4xf32>
    %5 = vector.shape_cast %4 : vector<1x1x18x16x4xf32> to vector<18x16x4xf32>
    %c0_13 = arith.constant 0 : index
    %c0_14 = arith.constant 0 : index
    %c4 = arith.constant 4 : index
    %6 = vector.load %arg7[%c0_13, %c0_14, %c4] : memref<18x16x8xf32, #tpu.memory_space<vmem>>, vector<18x16x4xf32>
    tpu.vector_store %arg7[%c0_13, %c0_14, %c4], %5 {strides = array<i32>} : memref<18x16x8xf32, #tpu.memory_space<vmem>>, vector<18x16x4xf32>,
    %c0_15 = arith.constant 0 : index
    %c0_16 = arith.constant 0 : index
    %c0_17 = arith.constant 0 : index
    %7 = vector.load %arg7[%c0_15, %c0_16, %c0_17] : memref<18x16x8xf32, #tpu.memory_space<vmem>>, vector<16x16x8xf32>
    %8 = vector.shape_cast %7 : vector<16x16x8xf32> to vector<256x8xf32>
    %c0_18 = arith.constant 0 : index
    %c0_19 = arith.constant 0 : index
    %c0_20 = arith.constant 0 : index
    %9 = vector.load %arg4[%c0_18, %c0_19, %c0_20] : memref<8x8x4xf32, #tpu.memory_space<vmem>>, vector<1x8x4xf32>
    %10 = vector.shape_cast %9 : vector<1x8x4xf32> to vector<8x4xf32>
    %cst = arith.constant dense<0.000000e+00> : vector<256x4xf32>
    %11 = tpu.matmul %8, %10, %cst {dimension_numbers = #tpu.dot_dimension_numbers<[1], [0], [0], [1], [0, 0, 1, 1], [], []>} : vector<256x8xf32>, vector<8x4xf32>, vector<256x4xf32> -> vector<256x4xf32>
    %c1_21 = arith.constant 1 : index
    %c0_22 = arith.constant 0 : index
    %c0_23 = arith.constant 0 : index
    %12 = vector.load %arg7[%c1_21, %c0_22, %c0_23] : memref<18x16x8xf32, #tpu.memory_space<vmem>>, vector<16x16x8xf32>
    %13 = vector.shape_cast %12 : vector<16x16x8xf32> to vector<256x8xf32>
    %c1_24 = arith.constant 1 : index
    %c0_25 = arith.constant 0 : index
    %c0_26 = arith.constant 0 : index
    %14 = vector.load %arg4[%c1_24, %c0_25, %c0_26] : memref<8x8x4xf32, #tpu.memory_space<vmem>>, vector<1x8x4xf32>
    %15 = vector.shape_cast %14 : vector<1x8x4xf32> to vector<8x4xf32>
    %cst_27 = arith.constant dense<0.000000e+00> : vector<256x4xf32>
    %16 = tpu.matmul %13, %15, %cst_27 {dimension_numbers = #tpu.dot_dimension_numbers<[1], [0], [0], [1], [0, 0, 1, 1], [], []>} : vector<256x8xf32>, vector<8x4xf32>, vector<256x4xf32> -> vector<256x4xf32>
    %17 = arith.addf %11, %16 : vector<256x4xf32>
    %18 = vector.broadcast %0 : vector<1x4xf32> to vector<256x4xf32>
    %19 = arith.addf %17, %18 : vector<256x4xf32>
    %c0_28 = arith.constant 0 : index
    %c0_29 = arith.constant 0 : index
    %c0_30 = arith.constant 0 : index
    %c0_31 = arith.constant 0 : index
    %c0_32 = arith.constant 0 : index
    %20 = vector.load %arg6[%c0_28, %c0_29, %c0_30, %c0_31, %c0_32] : memref<1x2x2x256x4xf32, #tpu.memory_space<vmem>>, vector<1x1x1x256x4xf32>
    %21 = vector.shape_cast %20 : vector<1x1x1x256x4xf32> to vector<256x4xf32>
    %22 = vector.shape_cast %19 : vector<256x4xf32> to vector<1x1x1x256x4xf32>
    tpu.vector_store %arg6[%c0_28, %c0_29, %c0_30, %c0_31, %c0_32], %22 {strides = array<i32>} : memref<1x2x2x256x4xf32, #tpu.memory_space<vmem>>, vector<1x1x1x256x4xf32>,
    %c1_33 = arith.constant 1 : index
    %c0_34 = arith.constant 0 : index
    %c0_35 = arith.constant 0 : index
    %23 = vector.load %arg7[%c1_33, %c0_34, %c0_35] : memref<18x16x8xf32, #tpu.memory_space<vmem>>, vector<16x16x8xf32>
    %24 = vector.shape_cast %23 : vector<16x16x8xf32> to vector<256x8xf32>
    %c4_36 = arith.constant 4 : index
    %c0_37 = arith.constant 0 : index
    %c0_38 = arith.constant 0 : index
    %25 = vector.load %arg4[%c4_36, %c0_37, %c0_38] : memref<8x8x4xf32, #tpu.memory_space<vmem>>, vector<1x8x4xf32>
    %26 = vector.shape_cast %25 : vector<1x8x4xf32> to vector<8x4xf32>
    %cst_39 = arith.constant dense<0.000000e+00> : vector<256x4xf32>
    %27 = tpu.matmul %24, %26, %cst_39 {dimension_numbers = #tpu.dot_dimension_numbers<[1], [0], [0], [1], [0, 0, 1, 1], [], []>} : vector<256x8xf32>, vector<8x4xf32>, vector<256x4xf32> -> vector<256x4xf32>
    %c2 = arith.constant 2 : index
    %c0_40 = arith.constant 0 : index
    %c0_41 = arith.constant 0 : index
    %28 = vector.load %arg7[%c2, %c0_40, %c0_41] : memref<18x16x8xf32, #tpu.memory_space<vmem>>, vector<16x16x8xf32>
    %29 = vector.shape_cast %28 : vector<16x16x8xf32> to vector<256x8xf32>
    %c5 = arith.constant 5 : index
    %c0_42 = arith.constant 0 : index
    %c0_43 = arith.constant 0 : index
    %30 = vector.load %arg4[%c5, %c0_42, %c0_43] : memref<8x8x4xf32, #tpu.memory_space<vmem>>, vector<1x8x4xf32>
    %31 = vector.shape_cast %30 : vector<1x8x4xf32> to vector<8x4xf32>
    %cst_44 = arith.constant dense<0.000000e+00> : vector<256x4xf32>
    %32 = tpu.matmul %29, %31, %cst_44 {dimension_numbers = #tpu.dot_dimension_numbers<[1], [0], [0], [1], [0, 0, 1, 1], [], []>} : vector<256x8xf32>, vector<8x4xf32>, vector<256x4xf32> -> vector<256x4xf32>
    %33 = arith.addf %27, %32 : vector<256x4xf32>
    %34 = vector.broadcast %0 : vector<1x4xf32> to vector<256x4xf32>
    %35 = arith.addf %33, %34 : vector<256x4xf32>
    %c0_45 = arith.constant 0 : index
    %c1_46 = arith.constant 1 : index
    %c0_47 = arith.constant 0 : index
    %c0_48 = arith.constant 0 : index
    %c0_49 = arith.constant 0 : index
    %36 = vector.load %arg6[%c0_45, %c1_46, %c0_47, %c0_48, %c0_49] : memref<1x2x2x256x4xf32, #tpu.memory_space<vmem>>, vector<1x1x1x256x4xf32>
    %37 = vector.shape_cast %36 : vector<1x1x1x256x4xf32> to vector<256x4xf32>
    %38 = vector.shape_cast %35 : vector<256x4xf32> to vector<1x1x1x256x4xf32>
    tpu.vector_store %arg6[%c0_45, %c1_46, %c0_47, %c0_48, %c0_49], %38 {strides = array<i32>} : memref<1x2x2x256x4xf32, #tpu.memory_space<vmem>>, vector<1x1x1x256x4xf32>,
    %c0_50 = arith.constant 0 : index
    %c0_51 = arith.constant 0 : index
    %c0_52 = arith.constant 0 : index
    %c1_53 = arith.constant 1 : index
    %c0_54 = arith.constant 0 : index
    %39 = vector.load %arg3[%c0_50, %c0_51, %c0_52, %c1_53, %c0_54] : memref<1x1x18x18x4xf32, #tpu.memory_space<vmem>>, vector<1x1x18x16x4xf32>
    %40 = vector.shape_cast %39 : vector<1x1x18x16x4xf32> to vector<18x16x4xf32>
    %c0_55 = arith.constant 0 : index
    %c0_56 = arith.constant 0 : index
    %c0_57 = arith.constant 0 : index
    %41 = vector.load %arg7[%c0_55, %c0_56, %c0_57] : memref<18x16x8xf32, #tpu.memory_space<vmem>>, vector<18x16x4xf32>
    tpu.vector_store %arg7[%c0_55, %c0_56, %c0_57], %40 {strides = array<i32>} : memref<18x16x8xf32, #tpu.memory_space<vmem>>, vector<18x16x4xf32>,
    %c0_58 = arith.constant 0 : index
    %c0_59 = arith.constant 0 : index
    %c0_60 = arith.constant 0 : index
    %c2_61 = arith.constant 2 : index
    %c0_62 = arith.constant 0 : index
    %42 = vector.load %arg3[%c0_58, %c0_59, %c0_60, %c2_61, %c0_62] : memref<1x1x18x18x4xf32, #tpu.memory_space<vmem>>, vector<1x1x18x16x4xf32>
    %43 = vector.shape_cast %42 : vector<1x1x18x16x4xf32> to vector<18x16x4xf32>
    %c0_63 = arith.constant 0 : index
    %c0_64 = arith.constant 0 : index
    %c4_65 = arith.constant 4 : index
    %44 = vector.load %arg7[%c0_63, %c0_64, %c4_65] : memref<18x16x8xf32, #tpu.memory_space<vmem>>, vector<18x16x4xf32>
    tpu.vector_store %arg7[%c0_63, %c0_64, %c4_65], %43 {strides = array<i32>} : memref<18x16x8xf32, #tpu.memory_space<vmem>>, vector<18x16x4xf32>,
    %c0_66 = arith.constant 0 : index
    %c0_67 = arith.constant 0 : index
    %c0_68 = arith.constant 0 : index
    %45 = vector.load %arg7[%c0_66, %c0_67, %c0_68] : memref<18x16x8xf32, #tpu.memory_space<vmem>>, vector<16x16x8xf32>
    %46 = vector.shape_cast %45 : vector<16x16x8xf32> to vector<256x8xf32>
    %c2_69 = arith.constant 2 : index
    %c0_70 = arith.constant 0 : index
    %c0_71 = arith.constant 0 : index
    %47 = vector.load %arg4[%c2_69, %c0_70, %c0_71] : memref<8x8x4xf32, #tpu.memory_space<vmem>>, vector<1x8x4xf32>
    %48 = vector.shape_cast %47 : vector<1x8x4xf32> to vector<8x4xf32>
    %cst_72 = arith.constant dense<0.000000e+00> : vector<256x4xf32>
    %49 = tpu.matmul %46, %48, %cst_72 {dimension_numbers = #tpu.dot_dimension_numbers<[1], [0], [0], [1], [0, 0, 1, 1], [], []>} : vector<256x8xf32>, vector<8x4xf32>, vector<256x4xf32> -> vector<256x4xf32>
    %c1_73 = arith.constant 1 : index
    %c0_74 = arith.constant 0 : index
    %c0_75 = arith.constant 0 : index
    %50 = vector.load %arg7[%c1_73, %c0_74, %c0_75] : memref<18x16x8xf32, #tpu.memory_space<vmem>>, vector<16x16x8xf32>
    %51 = vector.shape_cast %50 : vector<16x16x8xf32> to vector<256x8xf32>
    %c3 = arith.constant 3 : index
    %c0_76 = arith.constant 0 : index
    %c0_77 = arith.constant 0 : index
    %52 = vector.load %arg4[%c3, %c0_76, %c0_77] : memref<8x8x4xf32, #tpu.memory_space<vmem>>, vector<1x8x4xf32>
    %53 = vector.shape_cast %52 : vector<1x8x4xf32> to vector<8x4xf32>
    %cst_78 = arith.constant dense<0.000000e+00> : vector<256x4xf32>
    %54 = tpu.matmul %51, %53, %cst_78 {dimension_numbers = #tpu.dot_dimension_numbers<[1], [0], [0], [1], [0, 0, 1, 1], [], []>} : vector<256x8xf32>, vector<8x4xf32>, vector<256x4xf32> -> vector<256x4xf32>
    %55 = arith.addf %49, %54 : vector<256x4xf32>
    %56 = vector.broadcast %0 : vector<1x4xf32> to vector<256x4xf32>
    %57 = arith.addf %55, %56 : vector<256x4xf32>
    %c0_79 = arith.constant 0 : index
    %c0_80 = arith.constant 0 : index
    %c1_81 = arith.constant 1 : index
    %c0_82 = arith.constant 0 : index
    %c0_83 = arith.constant 0 : index
    %58 = vector.load %arg6[%c0_79, %c0_80, %c1_81, %c0_82, %c0_83] : memref<1x2x2x256x4xf32, #tpu.memory_space<vmem>>, vector<1x1x1x256x4xf32>
    %59 = vector.shape_cast %58 : vector<1x1x1x256x4xf32> to vector<256x4xf32>
    %60 = vector.shape_cast %57 : vector<256x4xf32> to vector<1x1x1x256x4xf32>
    tpu.vector_store %arg6[%c0_79, %c0_80, %c1_81, %c0_82, %c0_83], %60 {strides = array<i32>} : memref<1x2x2x256x4xf32, #tpu.memory_space<vmem>>, vector<1x1x1x256x4xf32>,
    %c1_84 = arith.constant 1 : index
    %c0_85 = arith.constant 0 : index
    %c0_86 = arith.constant 0 : index
    %61 = vector.load %arg7[%c1_84, %c0_85, %c0_86] : memref<18x16x8xf32, #tpu.memory_space<vmem>>, vector<16x16x8xf32>
    %62 = vector.shape_cast %61 : vector<16x16x8xf32> to vector<256x8xf32>
    %c6 = arith.constant 6 : index
    %c0_87 = arith.constant 0 : index
    %c0_88 = arith.constant 0 : index
    %63 = vector.load %arg4[%c6, %c0_87, %c0_88] : memref<8x8x4xf32, #tpu.memory_space<vmem>>, vector<1x8x4xf32>
    %64 = vector.shape_cast %63 : vector<1x8x4xf32> to vector<8x4xf32>
    %cst_89 = arith.constant dense<0.000000e+00> : vector<256x4xf32>
    %65 = tpu.matmul %62, %64, %cst_89 {dimension_numbers = #tpu.dot_dimension_numbers<[1], [0], [0], [1], [0, 0, 1, 1], [], []>} : vector<256x8xf32>, vector<8x4xf32>, vector<256x4xf32> -> vector<256x4xf32>
    %c2_90 = arith.constant 2 : index
    %c0_91 = arith.constant 0 : index
    %c0_92 = arith.constant 0 : index
    %66 = vector.load %arg7[%c2_90, %c0_91, %c0_92] : memref<18x16x8xf32, #tpu.memory_space<vmem>>, vector<16x16x8xf32>
    %67 = vector.shape_cast %66 : vector<16x16x8xf32> to vector<256x8xf32>
    %c7 = arith.constant 7 : index
    %c0_93 = arith.constant 0 : index
    %c0_94 = arith.constant 0 : index
    %68 = vector.load %arg4[%c7, %c0_93, %c0_94] : memref<8x8x4xf32, #tpu.memory_space<vmem>>, vector<1x8x4xf32>
    %69 = vector.shape_cast %68 : vector<1x8x4xf32> to vector<8x4xf32>
    %cst_95 = arith.constant dense<0.000000e+00> : vector<256x4xf32>
    %70 = tpu.matmul %67, %69, %cst_95 {dimension_numbers = #tpu.dot_dimension_numbers<[1], [0], [0], [1], [0, 0, 1, 1], [], []>} : vector<256x8xf32>, vector<8x4xf32>, vector<256x4xf32> -> vector<256x4xf32>
    %71 = arith.addf %65, %70 : vector<256x4xf32>
    %72 = vector.broadcast %0 : vector<1x4xf32> to vector<256x4xf32>
    %73 = arith.addf %71, %72 : vector<256x4xf32>
    %c0_96 = arith.constant 0 : index
    %c1_97 = arith.constant 1 : index
    %c1_98 = arith.constant 1 : index
    %c0_99 = arith.constant 0 : index
    %c0_100 = arith.constant 0 : index
    %74 = vector.load %arg6[%c0_96, %c1_97, %c1_98, %c0_99, %c0_100] : memref<1x2x2x256x4xf32, #tpu.memory_space<vmem>>, vector<1x1x1x256x4xf32>
    %75 = vector.shape_cast %74 : vector<1x1x1x256x4xf32> to vector<256x4xf32>
    %76 = vector.shape_cast %73 : vector<256x4xf32> to vector<1x1x1x256x4xf32>
    tpu.vector_store %arg6[%c0_96, %c1_97, %c1_98, %c0_99, %c0_100], %76 {strides = array<i32>} : memref<1x2x2x256x4xf32, #tpu.memory_space<vmem>>, vector<1x1x1x256x4xf32>,
    return
  }
  func.func @transform_0(%arg0: i32, %arg1: i32, %arg2: i32) -> (i32, i32, i32, i32, i32) {
    %c0_i32 = arith.constant 0 : i32
    %c0_i32_0 = arith.constant 0 : i32
    %c0_i32_1 = arith.constant 0 : i32
    %c0_i32_2 = arith.constant 0 : i32
    return %arg0, %arg1, %c0_i32, %c0_i32_0, %c0_i32_1 : i32, i32, i32, i32, i32
  }
  func.func @transform_1(%arg0: i32, %arg1: i32, %arg2: i32) -> (i32, i32, i32) {
    %c0_i32 = arith.constant 0 : i32
    %c0_i32_0 = arith.constant 0 : i32
    %c0_i32_1 = arith.constant 0 : i32
    return %c0_i32, %c0_i32_0, %arg2 : i32, i32, i32
  }
  func.func @transform_2(%arg0: i32, %arg1: i32, %arg2: i32) -> (i32, i32) {
    %c0_i32 = arith.constant 0 : i32
    %c0_i32_0 = arith.constant 0 : i32
    return %c0_i32, %arg2 : i32, i32
  }
  func.func @transform_3(%arg0: i32, %arg1: i32, %arg2: i32) -> (i32, i32, i32, i32, i32) {
    %c0_i32 = arith.constant 0 : i32
    %c0_i32_0 = arith.constant 0 : i32
    %c0_i32_1 = arith.constant 0 : i32
    return %arg0, %c0_i32, %c0_i32_0, %arg1, %arg2 : i32, i32, i32, i32, i32
  }
}

</mosaic_0001>

<llo_original>
// kernel: tpu_custom_call.1
$region0: #{tpu_custom_call.1}
  #allocation0 [shape = 'u32[]', space=smem, size = 0x4, offset = 0x4, fixed_abs, tag = 'smem constant byte address 0x4 - core index']
  #allocation1 [shape = 'u32[144,128]{1,0:T(1,128)}', space=vmem, size = 0x12000, scoped, tag = 'internal scratch']
  #allocation2 [shape = 'f32[18,16,8]{2,1,0:T(8,128)}', space=vmem, size = 0x24000, scoped, tag = 'scratch operand']
  %s0 = inlined_call_operand.vmem [shape: f32[2,1,18,18,4], index: 0, kind: input, shape index: {}]
  %s1 = inlined_call_operand.vmem [shape: f32[8,8,4], index: 1, kind: input, shape index: {}]
  %s2 = inlined_call_operand.vmem [shape: f32[1,4], index: 2, kind: input, shape index: {}]
  %s3 = inlined_call_operand.vmem [shape: f32[2,2,2,256,4], index: 3, kind: output, shape index: {}]
  %s4 = sld [smem:[#allocation0]]
  $region45: #{tpu_custom_call.1} parent=0
    _
  %s6 = ssub.s32 1, %s4
  %s7 = scalar_select 0, %s6, %s4
  loop: start=0, step=1, limit=4
  $region2: #{tpu_custom_call.1} parent=0 // loop_pre_header
    _
  $region3: #{tpu_custom_call.1} parent=0 // loop_header
    %s9 = sphi 0, %s13
    %p10 = scmp.ge.s32.totalorder %s9, 4
    %s16 = sphi 0, %s35
    %s17 = sphi 0, %s31
    %s18 = sphi 0, %s27
    %s19 = sphi 0, %s16
    %s20 = sphi 0, %s17
    %s21 = sphi 0, %s18
    %s22 = sphi 0, %s19
    %s23 = sphi 0, %s20
    %s24 = sphi 0, %s21
    %s40 = sphi 0, %s42
    %s43 = sphi 0, %s40
    %s44 = sphi 0, %s43
    %s60 = sphi 0, %s44
    %s66 = sphi 0, %s68
    %s69 = sphi 0, %s66
    %s70 = sphi 0, %s69
    %s86 = sphi 0, %s70
    %s92 = sphi 0, %s94
    %s95 = sphi 0, %s92
    %s96 = sphi 0, %s95
    %s112 = sphi 0, %s96
    %s122 = sphi 0, %s124
    %s125 = sphi 0, %s122
    %s126 = sphi 0, %s125
    %s142 = sphi 0, %s126
  $region4: #{tpu_custom_call.1} parent=0 // loop_header_branch
    %12 = sbr.rel (%p10) target = $region8
  $region5: #{tpu_custom_call.1} parent=0 // loop_body
    %s14 = ssub.s32 %s9, 1
    %s15 = ssub.s32 %s9, 2
    %s25 = sadd.s32 1, %s18
    %p26 = scmp.ge.s32.totalorder %s25, 1
    %s27 = scalar_select %p26, 0, %s25
    %s28 = sadd.s32 1, %s17
    %s29 = scalar_select %p26, %s28, %s17
    %p30 = scmp.ge.s32.totalorder %s29, 1
    %s31 = scalar_select %p30, 0, %s29
    %s32 = sadd.s32 1, %s16
    %s33 = scalar_select %p30, %s32, %s16
    %p34 = scmp.ge.s32.totalorder %s33, 2
    %s35 = scalar_select %p34, 0, %s33
    %s36 = ssub.s32 %s16, %s35
    %s37 = ssub.s32 %s17, %s31
    %s38 = sor.u32 %s36, %s37
    %p39 = scmp.eq.s32.totalorder %s38, 0
    %s41 = sadd.s32 %s40, 1
    %s42 = scalar_select %p39, %s40, %s41
    %p45 = pneg %p39
    %p46 = scmp.eq.s32.totalorder %s9, 1
    %p47 = por %p45, %p46
    %p48 = scmp.ne.s32.totalorder %s40, %s43
    %p49 = scmp.eq.s32.totalorder %s9, 0
    %p50 = por %p48, %p49
    %p51 = scmp.ne.s32.totalorder %s40, %s43
    %p52 = scmp.eq.s32.totalorder %s14, 1
    %p53 = por %p51, %p52
    %p54 = scmp.ne.s32.totalorder %s43, %s44
    %p55 = scmp.eq.s32.totalorder %s14, 0
    %p56 = por %p54, %p55
    %p57 = scmp.ne.s32.totalorder %s43, %s44
    %p58 = scmp.eq.s32.totalorder %s15, 1
    %p59 = por %p57, %p58
    %p61 = scmp.ne.s32.totalorder %s44, %s60
    %p62 = scmp.eq.s32.totalorder %s15, 0
    %p63 = por %p61, %p62
    %s64 = ssub.s32 %s18, %s27
    %p65 = scmp.eq.s32.totalorder %s64, 0
    %s67 = sadd.s32 %s66, 1
    %s68 = scalar_select %p65, %s66, %s67
    %p71 = pneg %p65
    %p72 = scmp.eq.s32.totalorder %s9, 1
    %p73 = por %p71, %p72
    %p74 = scmp.ne.s32.totalorder %s66, %s69
    %p75 = scmp.eq.s32.totalorder %s9, 0
    %p76 = por %p74, %p75
    %p77 = scmp.ne.s32.totalorder %s66, %s69
    %p78 = scmp.eq.s32.totalorder %s14, 1
    %p79 = por %p77, %p78
    %p80 = scmp.ne.s32.totalorder %s69, %s70
    %p81 = scmp.eq.s32.totalorder %s14, 0
    %p82 = por %p80, %p81
    %p83 = scmp.ne.s32.totalorder %s69, %s70
    %p84 = scmp.eq.s32.totalorder %s15, 1
    %p85 = por %p83, %p84
    %p87 = scmp.ne.s32.totalorder %s70, %s86
    %p88 = scmp.eq.s32.totalorder %s15, 0
    %p89 = por %p87, %p88
    %s90 = ssub.s32 %s18, %s27
    %p91 = scmp.eq.s32.totalorder %s90, 0
    %s93 = sadd.s32 %s92, 1
    %s94 = scalar_select %p91, %s92, %s93
    %p97 = pneg %p91
    %p98 = scmp.eq.s32.totalorder %s9, 1
    %p99 = por %p97, %p98
    %p100 = scmp.ne.s32.totalorder %s92, %s95
    %p101 = scmp.eq.s32.totalorder %s9, 0
    %p102 = por %p100, %p101
    %p103 = scmp.ne.s32.totalorder %s92, %s95
    %p104 = scmp.eq.s32.totalorder %s14, 1
    %p105 = por %p103, %p104
    %p106 = scmp.ne.s32.totalorder %s95, %s96
    %p107 = scmp.eq.s32.totalorder %s14, 0
    %p108 = por %p106, %p107
    %p109 = scmp.ne.s32.totalorder %s95, %s96
    %p110 = scmp.eq.s32.totalorder %s15, 1
    %p111 = por %p109, %p110
    %p113 = scmp.ne.s32.totalorder %s96, %s112
    %p114 = scmp.eq.s32.totalorder %s15, 0
    %p115 = por %p113, %p114
    %s116 = ssub.s32 %s16, %s35
    %s117 = ssub.s32 %s17, %s31
    %s118 = sor.u32 %s116, %s117
    %s119 = ssub.s32 %s18, %s27
    %s120 = sor.u32 %s118, %s119
    %p121 = scmp.eq.s32.totalorder %s120, 0
    %s123 = sadd.s32 %s122, 1
    %s124 = scalar_select %p121, %s122, %s123
    %p127 = pneg %p121
    %p128 = scmp.eq.s32.totalorder %s9, 1
    %p129 = por %p127, %p128
    %p130 = scmp.ne.s32.totalorder %s122, %s125
    %p131 = scmp.eq.s32.totalorder %s9, 0
    %p132 = por %p130, %p131
    %p133 = scmp.ne.s32.totalorder %s122, %s125
    %p134 = scmp.eq.s32.totalorder %s14, 1
    %p135 = por %p133, %p134
    %p136 = scmp.ne.s32.totalorder %s125, %s126
    %p137 = scmp.eq.s32.totalorder %s14, 0
    %p138 = por %p136, %p137
    %p139 = scmp.ne.s32.totalorder %s125, %s126
    %p140 = scmp.eq.s32.totalorder %s15, 1
    %p141 = por %p139, %p140
    %p143 = scmp.ne.s32.totalorder %s126, %s142
    %p144 = scmp.eq.s32.totalorder %s15, 0
    %p145 = por %p143, %p144
    %p146 = scmp.le.s32.totalorder 1, %s9
    %p147 = scmp.lt.s32.totalorder %s9, 3
    %p148 = pnand %p146, %p147
    %p149 = pneg %p148
    // Predicated region
    $region9: #{tpu_custom_call.1} parent=5 // pred_check
      _
    $region10: #{tpu_custom_call.1} parent=5 // pred_check_branch
      %151 = sbr.rel (%p148) target = $region12
    $region11: #{tpu_custom_call.1} parent=5 // pred_region
      %s152 = ssub.s32 %s9, 1
      // Predicated region
      $region13: #{tpu_custom_call.1} parent=11 // pred_check
        %p153 = pneg %p82
      $region14: #{tpu_custom_call.1} parent=11 // pred_check_branch
        %155 = sbr.rel (%p153) target = $region16
      $region15: #{tpu_custom_call.1} parent=11 // pred_region
        %p156 = scmp.lt.s32.totalorder %s21, 0
        %s157 = scalar_select %p156, %s21, 0
        %s158 = smul.addr %s157, 8
        %s159 = scalar_lea.vmem %s1, %s158
      $region16: #{tpu_custom_call.1} parent=11 // pred_fallthru
        _
      // Predicated region
      $region17: #{tpu_custom_call.1} parent=11 // pred_check
        %p160 = pneg %p108
      $region18: #{tpu_custom_call.1} parent=11 // pred_check_branch
        %162 = sbr.rel (%p160) target = $region20
      $region19: #{tpu_custom_call.1} parent=11 // pred_region
        %p163 = scmp.lt.s32.totalorder %s21, 0
        %s164 = scalar_select %p163, %s21, 0
        %s165 = scalar_lea.vmem %s2, %s164
      $region20: #{tpu_custom_call.1} parent=11 // pred_fallthru
        _
    $region12: #{tpu_custom_call.1} parent=5 // pred_fallthru
      _
    %p166 = scmp.lt.s32.totalorder %s9, 2
    // Predicated region
    $region21: #{tpu_custom_call.1} parent=5 // pred_check
      %p167 = pneg %p166
    $region22: #{tpu_custom_call.1} parent=5 // pred_check_branch
      %169 = sbr.rel (%p167) target = $region24
    $region23: #{tpu_custom_call.1} parent=5 // pred_region
      // Predicated region
      $region25: #{tpu_custom_call.1} parent=23 // pred_check
        %p170 = pneg %p50
      $region26: #{tpu_custom_call.1} parent=23 // pred_check_branch
        %172 = sbr.rel (%p170) target = $region28
      $region27: #{tpu_custom_call.1} parent=23 // pred_region
        %p173 = scmp.lt.s32.totalorder %s16, 1
        %s174 = scalar_select %p173, %s16, 1
        %p175 = scmp.lt.s32.totalorder %s17, 0
        %s176 = scalar_select %p175, %s17, 0
        %s177 = smul.addr %s176, 54
        %s178 = smul.addr %s174, 54
        %s179 = sadd.s32 %s177, %s178
        %s180 = smul.addr %s179, 8
        %s181 = scalar_lea.vmem %s0, %s180
      $region28: #{tpu_custom_call.1} parent=23 // pred_fallthru
        _
    $region24: #{tpu_custom_call.1} parent=5 // pred_fallthru
      _
    %p182 = scmp.le.s32.totalorder 1, %s9
    %p183 = scmp.lt.s32.totalorder %s9, 3
    %p184 = pnand %p182, %p183
    %p185 = pneg %p184
    // Predicated region
    $region29: #{tpu_custom_call.1} parent=5 // pred_check
      _
    $region30: #{tpu_custom_call.1} parent=5 // pred_check_branch
      %187 = sbr.rel (%p184) target = $region32
    $region31: #{tpu_custom_call.1} parent=5 // pred_region
      %s188 = ssub.s32 %s9, 1
      %p189 = scmp.lt.s32.totalorder %s19, 1
      %s190 = scalar_select %p189, %s19, 1
      %p191 = scmp.lt.s32.totalorder %s20, 0
      %s192 = scalar_select %p191, %s20, 0
      %s193 = smul.addr %s192, 54
      %s194 = smul.addr %s190, 54
      %s195 = sadd.s32 %s193, %s194
      %s196 = smul.addr %s195, 8
      %s197 = scalar_lea.vmem %s0, %s196
      %p198 = pneg %p56
      %p199 = pneg %p53
      %p200 = scmp.lt.s32.totalorder %s21, 0
      %s201 = scalar_select %p200, %s21, 0
      %s202 = smul.addr %s201, 8
      %s203 = scalar_lea.vmem %s1, %s202
      %p204 = pneg %p82
      %p205 = pneg %p79
      %p206 = scmp.lt.s32.totalorder %s21, 0
      %s207 = scalar_select %p206, %s21, 0
      %s208 = scalar_lea.vmem %s2, %s207
      %p209 = pneg %p108
      %p210 = pneg %p105
      %p211 = pneg %p138
      %p212 = pneg %p135
      %s213 = smul.u32 32, %s20
      %p214 = scmp.lt.s32.totalorder %s19, 1
      %s215 = scalar_select %p214, %s19, 1
      %p216 = scmp.lt.s32.totalorder %s213, 31
      %s217 = scalar_select %p216, %s213, 31
      %p218 = scmp.lt.s32.totalorder %s21, 0
      %s219 = scalar_select %p218, %s21, 0
      %s220 = sadd.s32 %s219, %s217
      %s221 = smul.addr %s215, 128
      %s222 = sadd.s32 %s220, %s221
      %s223 = smul.addr %s222, 8
      %s224 = scalar_lea.vmem %s3, %s223
      %p225 = scmp.lt.s32.totalorder %s19, 1
      %s226 = scalar_select %p225, %s19, 1
      %p227 = scmp.lt.s32.totalorder %s20, 0
      %s228 = scalar_select %p227, %s20, 0
      %s229 = smul.addr %s228, 54
      %s230 = smul.addr %s226, 54
      %s231 = sadd.s32 %s229, %s230
      %s232 = smul.addr %s231, 8
      %s233 = scalar_lea.vmem %s0, %s232
      %p234 = scmp.lt.s32.totalorder %s21, 0
      %s235 = scalar_select %p234, %s21, 0
      %s236 = smul.addr %s235, 8
      %s237 = scalar_lea.vmem %s1, %s236
      %p238 = scmp.lt.s32.totalorder %s21, 0
      %s239 = scalar_select %p238, %s21, 0
      %s240 = scalar_lea.vmem %s2, %s239
      %s241 = smul.u32 32, %s20
      %p242 = scmp.lt.s32.totalorder %s19, 1
      %s243 = scalar_select %p242, %s19, 1
      %p244 = scmp.lt.s32.totalorder %s241, 31
      %s245 = scalar_select %p244, %s241, 31
      %p246 = scmp.lt.s32.totalorder %s21, 0
      %s247 = scalar_select %p246, %s21, 0
      %s248 = sadd.s32 %s247, %s245
      %s249 = smul.addr %s243, 128
      %s250 = sadd.s32 %s248, %s249
      %s251 = smul.addr %s250, 8
      %s252 = scalar_lea.vmem %s3, %s251
      %s253 = smul.u32 32, %s20
      %v254 = vld [vmem:[%s240] sm:$0x1]
      %v255 = vld [vmem:[%s233] sm:$0xff]
      %v256 = vld [vmem:[%s233 + $0x8] sm:$0xff]
      %v257 = vld [vmem:[%s233 + $0x18] sm:$0xff]
      %v258 = vld [vmem:[%s233 + $0x20] sm:$0xff]
      %v259 = vld [vmem:[%s233 + $0x30] sm:$0xff]
      %v260 = vld [vmem:[%s233 + $0x38] sm:$0xff]
      %v261 = vld [vmem:[%s233 + $0x48] sm:$0xff]
      %v262 = vld [vmem:[%s233 + $0x50] sm:$0xff]
      %v263 = vld [vmem:[%s233 + $0x60] sm:$0xff]
      %v264 = vld [vmem:[%s233 + $0x68] sm:$0xff]
      %v265 = vld [vmem:[%s233 + $0x78] sm:$0xff]
      %v266 = vld [vmem:[%s233 + $0x80] sm:$0xff]
      %v267 = vld [vmem:[%s233 + $0x90] sm:$0xff]
      %v268 = vld [vmem:[%s233 + $0x98] sm:$0xff]
      %v269 = vld [vmem:[%s233 + $0xa8] sm:$0xff]
      %v270 = vld [vmem:[%s233 + $0xb0] sm:$0xff]
      %v271 = vld [vmem:[%s233 + $0xc0] sm:$0xff]
      %v272 = vld [vmem:[%s233 + $0xc8] sm:$0xff]
      %v273 = vld [vmem:[%s233 + $0xd8] sm:$0xff]
      %v274 = vld [vmem:[%s233 + $0xe0] sm:$0xff]
      %v275 = vld [vmem:[%s233 + $0xf0] sm:$0xff]
      %v276 = vld [vmem:[%s233 + $0xf8] sm:$0xff]
      %v277 = vld [vmem:[%s233 + $0x108] sm:$0xff]
      %v278 = vld [vmem:[%s233 + $0x110] sm:$0xff]
      %v279 = vld [vmem:[%s233 + $0x120] sm:$0xff]
      %v280 = vld [vmem:[%s233 + $0x128] sm:$0xff]
      %v281 = vld [vmem:[%s233 + $0x138] sm:$0xff]
      %v282 = vld [vmem:[%s233 + $0x140] sm:$0xff]
      %v283 = vld [vmem:[%s233 + $0x150] sm:$0xff]
      %v284 = vld [vmem:[%s233 + $0x158] sm:$0xff]
      %v285 = vld [vmem:[%s233 + $0x168] sm:$0xff]
      %v286 = vld [vmem:[%s233 + $0x170] sm:$0xff]
      %v287 = vld [vmem:[%s233 + $0x180] sm:$0xff]
      %v288 = vld [vmem:[%s233 + $0x188] sm:$0xff]
      %v289 = vld [vmem:[%s233 + $0x198] sm:$0xff]
      %v290 = vld [vmem:[%s233 + $0x1a0] sm:$0xff]
      %vm291 = vcmask 31744
      %292 = vst.msk [vmem:[#allocation2] sm:$0xff] %vm291, %v255
      %293 = vst.msk [vmem:[#allocation2 + $0x8] sm:$0xff] %vm291, %v256
      %294 = vst.msk [vmem:[#allocation2 + $0x10] sm:$0xff] %vm291, %v257
      %295 = vst.msk [vmem:[#allocation2 + $0x18] sm:$0xff] %vm291, %v258
      %296 = vst.msk [vmem:[#allocation2 + $0x20] sm:$0xff] %vm291, %v259
      %297 = vst.msk [vmem:[#allocation2 + $0x28] sm:$0xff] %vm291, %v260
      %298 = vst.msk [vmem:[#allocation2 + $0x30] sm:$0xff] %vm291, %v261
      %299 = vst.msk [vmem:[#allocation2 + $0x38] sm:$0xff] %vm291, %v262
      %300 = vst.msk [vmem:[#allocation2 + $0x40] sm:$0xff] %vm291, %v263
      %301 = vst.msk [vmem:[#allocation2 + $0x48] sm:$0xff] %vm291, %v264
      %302 = vst.msk [vmem:[#allocation2 + $0x50] sm:$0xff] %vm291, %v265
      %303 = vst.msk [vmem:[#allocation2 + $0x58] sm:$0xff] %vm291, %v266
      %304 = vst.msk [vmem:[#allocation2 + $0x60] sm:$0xff] %vm291, %v267
      %305 = vst.msk [vmem:[#allocation2 + $0x68] sm:$0xff] %vm291, %v268
      %306 = vst.msk [vmem:[#allocation2 + $0x70] sm:$0xff] %vm291, %v269
      %307 = vst.msk [vmem:[#allocation2 + $0x78] sm:$0xff] %vm291, %v270
      %308 = vst.msk [vmem:[#allocation2 + $0x80] sm:$0xff] %vm291, %v271
      %309 = vst.msk [vmem:[#allocation2 + $0x88] sm:$0xff] %vm291, %v272
      %310 = vst.msk [vmem:[#allocation2 + $0x90] sm:$0xff] %vm291, %v273
      %311 = vst.msk [vmem:[#allocation2 + $0x98] sm:$0xff] %vm291, %v274
      %312 = vst.msk [vmem:[#allocation2 + $0xa0] sm:$0xff] %vm291, %v275
      %313 = vst.msk [vmem:[#allocation2 + $0xa8] sm:$0xff] %vm291, %v276
      %314 = vst.msk [vmem:[#allocation2 + $0xb0] sm:$0xff] %vm291, %v277
      %315 = vst.msk [vmem:[#allocation2 + $0xb8] sm:$0xff] %vm291, %v278
      %316 = vst.msk [vmem:[#allocation2 + $0xc0] sm:$0xff] %vm291, %v279
      %317 = vst.msk [vmem:[#allocation2 + $0xc8] sm:$0xff] %vm291, %v280
      %318 = vst.msk [vmem:[#allocation2 + $0xd0] sm:$0xff] %vm291, %v281
      %319 = vst.msk [vmem:[#allocation2 + $0xd8] sm:$0xff] %vm291, %v282
      %320 = vst.msk [vmem:[#allocation2 + $0xe0] sm:$0xff] %vm291, %v283
      %321 = vst.msk [vmem:[#allocation2 + $0xe8] sm:$0xff] %vm291, %v284
      %322 = vst.msk [vmem:[#allocation2 + $0xf0] sm:$0xff] %vm291, %v285
      %323 = vst.msk [vmem:[#allocation2 + $0xf8] sm:$0xff] %vm291, %v286
      %324 = vst.msk [vmem:[#allocation2 + $0x100] sm:$0xff] %vm291, %v287
      %325 = vst.msk [vmem:[#allocation2 + $0x108] sm:$0xff] %vm291, %v288
      %326 = vst.msk [vmem:[#allocation2 + $0x110] sm:$0xff] %vm291, %v289
      %327 = vst.msk [vmem:[#allocation2 + $0x118] sm:$0xff] %vm291, %v290
      %v328 = vld [vmem:[%s233 + $0x1] sm:$0xff]
      %v329 = vld [vmem:[%s233 + $0x9] sm:$0xff]
      %v330 = vld [vmem:[%s233 + $0x19] sm:$0xff]
      %v331 = vld [vmem:[%s233 + $0x21] sm:$0xff]
      %v332 = vld [vmem:[%s233 + $0x31] sm:$0xff]
      %v333 = vld [vmem:[%s233 + $0x39] sm:$0xff]
      %v334 = vld [vmem:[%s233 + $0x49] sm:$0xff]
      %v335 = vld [vmem:[%s233 + $0x51] sm:$0xff]
      %v336 = vld [vmem:[%s233 + $0x61] sm:$0xff]
      %v337 = vld [vmem:[%s233 + $0x69] sm:$0xff]
      %v338 = vld [vmem:[%s233 + $0x79] sm:$0xff]
      %v339 = vld [vmem:[%s233 + $0x81] sm:$0xff]
      %v340 = vld [vmem:[%s233 + $0x91] sm:$0xff]
      %v341 = vld [vmem:[%s233 + $0x99] sm:$0xff]
      %v342 = vld [vmem:[%s233 + $0xa9] sm:$0xff]
      %v343 = vld [vmem:[%s233 + $0xb1] sm:$0xff]
      %v344 = vld [vmem:[%s233 + $0xc1] sm:$0xff]
      %v345 = vld [vmem:[%s233 + $0xc9] sm:$0xff]
      %v346 = vld [vmem:[%s233 + $0xd9] sm:$0xff]
      %v347 = vld [vmem:[%s233 + $0xe1] sm:$0xff]
      %v348 = vld [vmem:[%s233 + $0xf1] sm:$0xff]
      %v349 = vld [vmem:[%s233 + $0xf9] sm:$0xff]
      %v350 = vld [vmem:[%s233 + $0x109] sm:$0xff]
      %v351 = vld [vmem:[%s233 + $0x111] sm:$0xff]
      %v352 = vld [vmem:[%s233 + $0x121] sm:$0xff]
      %v353 = vld [vmem:[%s233 + $0x129] sm:$0xff]
      %v354 = vld [vmem:[%s233 + $0x139] sm:$0xff]
      %v355 = vld [vmem:[%s233 + $0x141] sm:$0xff]
      %v356 = vld [vmem:[%s233 + $0x151] sm:$0xff]
      %v357 = vld [vmem:[%s233 + $0x159] sm:$0xff]
      %v358 = vld [vmem:[%s233 + $0x169] sm:$0xff]
      %v359 = vld [vmem:[%s233 + $0x171] sm:$0xff]
      %v360 = vld [vmem:[%s233 + $0x181] sm:$0xff]
      %v361 = vld [vmem:[%s233 + $0x189] sm:$0xff]
      %v362 = vld [vmem:[%s233 + $0x199] sm:$0xff]
      %v363 = vld [vmem:[%s233 + $0x1a1] sm:$0xff]
      %400 = vrot.lane.b32.xlu0 %v328, 4
      %v401 = vpop.permute.xlu0 %400
      %402 = vrot.lane.b32.xlu0 %v329, 4
      %v403 = vpop.permute.xlu0 %402
      %404 = vrot.lane.b32.xlu0 %v330, 4
      %v405 = vpop.permute.xlu0 %404
      %406 = vrot.lane.b32.xlu0 %v331, 4
      %v407 = vpop.permute.xlu0 %406
      %408 = vrot.lane.b32.xlu0 %v332, 4
      %v409 = vpop.permute.xlu0 %408
      %410 = vrot.lane.b32.xlu0 %v333, 4
      %v411 = vpop.permute.xlu0 %410
      %412 = vrot.lane.b32.xlu0 %v334, 4
      %v413 = vpop.permute.xlu0 %412
      %414 = vrot.lane.b32.xlu0 %v335, 4
      %v415 = vpop.permute.xlu0 %414
      %416 = vrot.lane.b32.xlu0 %v336, 4
      %v417 = vpop.permute.xlu0 %416
      %418 = vrot.lane.b32.xlu0 %v337, 4
      %v419 = vpop.permute.xlu0 %418
      %420 = vrot.lane.b32.xlu0 %v338, 4
      %v421 = vpop.permute.xlu0 %420
      %422 = vrot.lane.b32.xlu0 %v339, 4
      %v423 = vpop.permute.xlu0 %422
      %424 = vrot.lane.b32.xlu0 %v340, 4
      %v425 = vpop.permute.xlu0 %424
      %426 = vrot.lane.b32.xlu0 %v341, 4
      %v427 = vpop.permute.xlu0 %426
      %428 = vrot.lane.b32.xlu0 %v342, 4
      %v429 = vpop.permute.xlu0 %428
      %430 = vrot.lane.b32.xlu0 %v343, 4
      %v431 = vpop.permute.xlu0 %430
      %432 = vrot.lane.b32.xlu0 %v344, 4
      %v433 = vpop.permute.xlu0 %432
      %434 = vrot.lane.b32.xlu0 %v345, 4
      %v435 = vpop.permute.xlu0 %434
      %436 = vrot.lane.b32.xlu0 %v346, 4
      %v437 = vpop.permute.xlu0 %436
      %438 = vrot.lane.b32.xlu0 %v347, 4
      %v439 = vpop.permute.xlu0 %438
      %440 = vrot.lane.b32.xlu0 %v348, 4
      %v441 = vpop.permute.xlu0 %440
      %442 = vrot.lane.b32.xlu0 %v349, 4
      %v443 = vpop.permute.xlu0 %442
      %444 = vrot.lane.b32.xlu0 %v350, 4
      %v445 = vpop.permute.xlu0 %444
      %446 = vrot.lane.b32.xlu0 %v351, 4
      %v447 = vpop.permute.xlu0 %446
      %448 = vrot.lane.b32.xlu0 %v352, 4
      %v449 = vpop.permute.xlu0 %448
      %450 = vrot.lane.b32.xlu0 %v353, 4
      %v451 = vpop.permute.xlu0 %450
      %452 = vrot.lane.b32.xlu0 %v354, 4
      %v453 = vpop.permute.xlu0 %452
      %454 = vrot.lane.b32.xlu0 %v355, 4
      %v455 = vpop.permute.xlu0 %454
      %456 = vrot.lane.b32.xlu0 %v356, 4
      %v457 = vpop.permute.xlu0 %456
      %458 = vrot.lane.b32.xlu0 %v357, 4
      %v459 = vpop.permute.xlu0 %458
      %460 = vrot.lane.b32.xlu0 %v358, 4
      %v461 = vpop.permute.xlu0 %460
      %462 = vrot.lane.b32.xlu0 %v359, 4
      %v463 = vpop.permute.xlu0 %462
      %464 = vrot.lane.b32.xlu0 %v360, 4
      %v465 = vpop.permute.xlu0 %464
      %466 = vrot.lane.b32.xlu0 %v361, 4
      %v467 = vpop.permute.xlu0 %466
      %468 = vrot.lane.b32.xlu0 %v362, 4
      %v469 = vpop.permute.xlu0 %468
      %470 = vrot.lane.b32.xlu0 %v363, 4
      %v471 = vpop.permute.xlu0 %470
      %vm508 = vcmask 64544
      %509 = vst.msk [vmem:[#allocation2] sm:$0xff] %vm508, %v401
      %510 = vst.msk [vmem:[#allocation2 + $0x8] sm:$0xff] %vm508, %v403
      %511 = vst.msk [vmem:[#allocation2 + $0x10] sm:$0xff] %vm508, %v405
      %512 = vst.msk [vmem:[#allocation2 + $0x18] sm:$0xff] %vm508, %v407
      %513 = vst.msk [vmem:[#allocation2 + $0x20] sm:$0xff] %vm508, %v409
      %514 = vst.msk [vmem:[#allocation2 + $0x28] sm:$0xff] %vm508, %v411
      %515 = vst.msk [vmem:[#allocation2 + $0x30] sm:$0xff] %vm508, %v413
      %516 = vst.msk [vmem:[#allocation2 + $0x38] sm:$0xff] %vm508, %v415
      %517 = vst.msk [vmem:[#allocation2 + $0x40] sm:$0xff] %vm508, %v417
      %518 = vst.msk [vmem:[#allocation2 + $0x48] sm:$0xff] %vm508, %v419
      %519 = vst.msk [vmem:[#allocation2 + $0x50] sm:$0xff] %vm508, %v421
      %520 = vst.msk [vmem:[#allocation2 + $0x58] sm:$0xff] %vm508, %v423
      %521 = vst.msk [vmem:[#allocation2 + $0x60] sm:$0xff] %vm508, %v425
      %522 = vst.msk [vmem:[#allocation2 + $0x68] sm:$0xff] %vm508, %v427
      %523 = vst.msk [vmem:[#allocation2 + $0x70] sm:$0xff] %vm508, %v429
      %524 = vst.msk [vmem:[#allocation2 + $0x78] sm:$0xff] %vm508, %v431
      %525 = vst.msk [vmem:[#allocation2 + $0x80] sm:$0xff] %vm508, %v433
      %526 = vst.msk [vmem:[#allocation2 + $0x88] sm:$0xff] %vm508, %v435
      %527 = vst.msk [vmem:[#allocation2 + $0x90] sm:$0xff] %vm508, %v437
      %528 = vst.msk [vmem:[#allocation2 + $0x98] sm:$0xff] %vm508, %v439
      %529 = vst.msk [vmem:[#allocation2 + $0xa0] sm:$0xff] %vm508, %v441
      %530 = vst.msk [vmem:[#allocation2 + $0xa8] sm:$0xff] %vm508, %v443
      %531 = vst.msk [vmem:[#allocation2 + $0xb0] sm:$0xff] %vm508, %v445
      %532 = vst.msk [vmem:[#allocation2 + $0xb8] sm:$0xff] %vm508, %v447
      %533 = vst.msk [vmem:[#allocation2 + $0xc0] sm:$0xff] %vm508, %v449
      %534 = vst.msk [vmem:[#allocation2 + $0xc8] sm:$0xff] %vm508, %v451
      %535 = vst.msk [vmem:[#allocation2 + $0xd0] sm:$0xff] %vm508, %v453
      %536 = vst.msk [vmem:[#allocation2 + $0xd8] sm:$0xff] %vm508, %v455
      %537 = vst.msk [vmem:[#allocation2 + $0xe0] sm:$0xff] %vm508, %v457
      %538 = vst.msk [vmem:[#allocation2 + $0xe8] sm:$0xff] %vm508, %v459
      %539 = vst.msk [vmem:[#allocation2 + $0xf0] sm:$0xff] %vm508, %v461
      %540 = vst.msk [vmem:[#allocation2 + $0xf8] sm:$0xff] %vm508, %v463
      %541 = vst.msk [vmem:[#allocation2 + $0x100] sm:$0xff] %vm508, %v465
      %542 = vst.msk [vmem:[#allocation2 + $0x108] sm:$0xff] %vm508, %v467
      %543 = vst.msk [vmem:[#allocation2 + $0x110] sm:$0xff] %vm508, %v469
      %544 = vst.msk [vmem:[#allocation2 + $0x118] sm:$0xff] %vm508, %v471
      %v545 = vld [vmem:[#allocation2] sm:$0xff]
      %v546 = vld [vmem:[#allocation2 + $0x8] sm:$0xff]
      %v547 = vld [vmem:[#allocation2 + $0x10] sm:$0xff]
      %v548 = vld [vmem:[#allocation2 + $0x18] sm:$0xff]
      %v549 = vld [vmem:[#allocation2 + $0x20] sm:$0xff]
      %v550 = vld [vmem:[#allocation2 + $0x28] sm:$0xff]
      %v551 = vld [vmem:[#allocation2 + $0x30] sm:$0xff]
      %v552 = vld [vmem:[#allocation2 + $0x38] sm:$0xff]
      %v553 = vld [vmem:[#allocation2 + $0x40] sm:$0xff]
      %v554 = vld [vmem:[#allocation2 + $0x48] sm:$0xff]
      %v555 = vld [vmem:[#allocation2 + $0x50] sm:$0xff]
      %v556 = vld [vmem:[#allocation2 + $0x58] sm:$0xff]
      %v557 = vld [vmem:[#allocation2 + $0x60] sm:$0xff]
      %v558 = vld [vmem:[#allocation2 + $0x68] sm:$0xff]
      %v559 = vld [vmem:[#allocation2 + $0x70] sm:$0xff]
      %v560 = vld [vmem:[#allocation2 + $0x78] sm:$0xff]
      %v561 = vld [vmem:[#allocation2 + $0x80] sm:$0xff]
      %v562 = vld [vmem:[#allocation2 + $0x88] sm:$0xff]
      %v563 = vld [vmem:[#allocation2 + $0x90] sm:$0xff]
      %v564 = vld [vmem:[#allocation2 + $0x98] sm:$0xff]
      %v565 = vld [vmem:[#allocation2 + $0xa0] sm:$0xff]
      %v566 = vld [vmem:[#allocation2 + $0xa8] sm:$0xff]
      %v567 = vld [vmem:[#allocation2 + $0xb0] sm:$0xff]
      %v568 = vld [vmem:[#allocation2 + $0xb8] sm:$0xff]
      %v569 = vld [vmem:[#allocation2 + $0xc0] sm:$0xff]
      %v570 = vld [vmem:[#allocation2 + $0xc8] sm:$0xff]
      %v571 = vld [vmem:[#allocation2 + $0xd0] sm:$0xff]
      %v572 = vld [vmem:[#allocation2 + $0xd8] sm:$0xff]
      %v573 = vld [vmem:[#allocation2 + $0xe0] sm:$0xff]
      %v574 = vld [vmem:[#allocation2 + $0xe8] sm:$0xff]
      %v575 = vld [vmem:[#allocation2 + $0xf0] sm:$0xff]
      %v576 = vld [vmem:[#allocation2 + $0xf8] sm:$0xff]
      %v577 = vld [vmem:[%s237] sm:$0xff]
      %s578 = scalar_lea.vmem [#allocation2], 16
      %v579 = vld [vmem:[%s578] sm:$0xff]
      %v580 = vld [vmem:[%s578 + $0x8] sm:$0xff]
      %v581 = vld [vmem:[%s578 + $0x10] sm:$0xff]
      %v582 = vld [vmem:[%s578 + $0x18] sm:$0xff]
      %v583 = vld [vmem:[%s578 + $0x20] sm:$0xff]
      %v584 = vld [vmem:[%s578 + $0x28] sm:$0xff]
      %v585 = vld [vmem:[%s578 + $0x30] sm:$0xff]
      %v586 = vld [vmem:[%s578 + $0x38] sm:$0xff]
      %v587 = vld [vmem:[%s578 + $0x40] sm:$0xff]
      %v588 = vld [vmem:[%s578 + $0x48] sm:$0xff]
      %v589 = vld [vmem:[%s578 + $0x50] sm:$0xff]
      %v590 = vld [vmem:[%s578 + $0x58] sm:$0xff]
      %v591 = vld [vmem:[%s578 + $0x60] sm:$0xff]
      %v592 = vld [vmem:[%s578 + $0x68] sm:$0xff]
      %v593 = vld [vmem:[%s578 + $0x70] sm:$0xff]
      %v594 = vld [vmem:[%s578 + $0x78] sm:$0xff]
      %v595 = vld [vmem:[%s578 + $0x80] sm:$0xff]
      %v596 = vld [vmem:[%s578 + $0x88] sm:$0xff]
      %v597 = vld [vmem:[%s578 + $0x90] sm:$0xff]
      %v598 = vld [vmem:[%s578 + $0x98] sm:$0xff]
      %v599 = vld [vmem:[%s578 + $0xa0] sm:$0xff]
      %v600 = vld [vmem:[%s578 + $0xa8] sm:$0xff]
      %v601 = vld [vmem:[%s578 + $0xb0] sm:$0xff]
      %v602 = vld [vmem:[%s578 + $0xb8] sm:$0xff]
      %v603 = vld [vmem:[%s578 + $0xc0] sm:$0xff]
      %v604 = vld [vmem:[%s578 + $0xc8] sm:$0xff]
      %v605 = vld [vmem:[%s578 + $0xd0] sm:$0xff]
      %v606 = vld [vmem:[%s578 + $0xd8] sm:$0xff]
      %v607 = vld [vmem:[%s578 + $0xe0] sm:$0xff]
      %v608 = vld [vmem:[%s578 + $0xe8] sm:$0xff]
      %v609 = vld [vmem:[%s578 + $0xf0] sm:$0xff]
      %v610 = vld [vmem:[%s578 + $0xf8] sm:$0xff]
      %s611 = scalar_lea.vmem %s237, 8
      %v612 = vld [vmem:[%s611] sm:$0xff]
      %vm613 = vcmask 64512
      %v615 = vsel %vm613, %v579, 0
      %v618 = vsel %vm613, %v580, 0
      %v621 = vsel %vm613, %v581, 0
      %v624 = vsel %vm613, %v582, 0
      %v627 = vsel %vm613, %v583, 0
      %v630 = vsel %vm613, %v584, 0
      %v633 = vsel %vm613, %v585, 0
      %v636 = vsel %vm613, %v586, 0
      %v639 = vsel %vm613, %v587, 0
      %v642 = vsel %vm613, %v588, 0
      %v645 = vsel %vm613, %v589, 0
      %v648 = vsel %vm613, %v590, 0
      %v651 = vsel %vm613, %v591, 0
      %v654 = vsel %vm613, %v592, 0
      %v657 = vsel %vm613, %v593, 0
      %v660 = vsel %vm613, %v594, 0
      %v663 = vsel %vm613, %v595, 0
      %v666 = vsel %vm613, %v596, 0
      %v669 = vsel %vm613, %v597, 0
      %v672 = vsel %vm613, %v598, 0
      %v675 = vsel %vm613, %v599, 0
      %v678 = vsel %vm613, %v600, 0
      %v681 = vsel %vm613, %v601, 0
      %v684 = vsel %vm613, %v602, 0
      %v687 = vsel %vm613, %v603, 0
      %v690 = vsel %vm613, %v604, 0
      %v693 = vsel %vm613, %v605, 0
      %v696 = vsel %vm613, %v606, 0
      %v699 = vsel %vm613, %v607, 0
      %v702 = vsel %vm613, %v608, 0
      %v705 = vsel %vm613, %v609, 0
      %v708 = vsel %vm613, %v610, 0
      %710 = vmatprep.subr.mxu0 0.0
      %711 = vmatpush1.msra.mxu0 %v612
      %712 = vmatprep.subr.mxu0 0.0
      %713 = vmatpush1.msra.mxu0 0.0
      %714 = vmatprep.subr.mxu0 0.0
      %715 = vmatpush1.msra.mxu0 0.0
      %716 = vmatprep.subr.mxu0 0.0
      %717 = vmatpush1.msra.mxu0 0.0
      %718 = vmatprep.subr.mxu0 0.0
      %719 = vmatpush1.msra.mxu0 0.0
      %720 = vmatprep.subr.mxu0 0.0
      %721 = vmatpush1.msra.mxu0 0.0
      %722 = vmatprep.subr.mxu0 0.0
      %723 = vmatpush1.msra.mxu0 0.0
      %724 = vmatprep.subr.mxu0 0.0
      %725 = vmatpush1.msra.mxu0 0.0
      %726 = vmatprep.subr.mxu0 0.0
      %727 = vmatpush1.msra.mxu0 0.0
      %728 = vmatprep.subr.mxu0 0.0
      %729 = vmatpush1.msra.mxu0 0.0
      %730 = vmatprep.subr.mxu0 0.0
      %731 = vmatpush1.msra.mxu0 0.0
      %732 = vmatprep.subr.mxu0 0.0
      %733 = vmatpush1.msra.mxu0 0.0
      %734 = vmatprep.subr.mxu0 0.0
      %735 = vmatpush1.msra.mxu0 0.0
      %736 = vmatprep.subr.mxu0 0.0
      %737 = vmatpush1.msra.mxu0 0.0
      %738 = vmatprep.subr.mxu0 0.0
      %739 = vmatpush1.msra.mxu0 0.0
      %740 = vmatprep.subr.mxu0 0.0
      %741 = vmatpush1.msra.mxu0 0.0
      %742 = vmatprep.subr.mxu0 0.0
      %743 = vmatpush1.msra.mxu0 0.0
      %744 = vmatprep.subr.mxu0 0.0
      %745 = vmatpush1.msra.mxu0 0.0
      %746 = vmatprep.subr.mxu0 0.0
      %747 = vmatpush1.msra.mxu0 0.0
      %748 = vmatprep.subr.mxu0 0.0
      %749 = vmatpush1.msra.mxu0 0.0
      %750 = vmatprep.subr.mxu0 0.0
      %751 = vmatpush1.msra.mxu0 0.0
      %752 = vmatprep.subr.mxu0 0.0
      %753 = vmatpush1.msra.mxu0 0.0
      %754 = vmatprep.subr.mxu0 0.0
      %755 = vmatpush1.msra.mxu0 0.0
      %756 = vmatprep.subr.mxu0 0.0
      %757 = vmatpush1.msra.mxu0 0.0
      %758 = vmatprep.subr.mxu0 0.0
      %759 = vmatpush1.msra.mxu0 0.0
      %760 = vmatprep.subr.mxu0 0.0
      %761 = vmatpush1.msra.mxu0 0.0
      %762 = vmatprep.subr.mxu0 0.0
      %763 = vmatpush1.msra.mxu0 0.0
      %764 = vmatprep.subr.mxu0 0.0
      %765 = vmatpush1.msra.mxu0 0.0
      %766 = vmatprep.subr.mxu0 0.0
      %767 = vmatpush1.msra.mxu0 0.0
      %768 = vmatprep.subr.mxu0 0.0
      %769 = vmatpush1.msra.mxu0 0.0
      %770 = vmatprep.subr.mxu0 0.0
      %771 = vmatpush1.msra.mxu0 0.0
      %772 = vmatprep.subr.mxu0 0.0
      %773 = vmatpush1.msra.mxu0 0.0
      %774 = vmatprep.mubr.f32.mxu0 0.0
      %775 = vmatmul.mubr.f32.gmra.mrb[0].mxu0 %v615
      %v776 = vpop.f32.mrb[0].mxu0
      %v777 = vadd.f32 0.0, %v776
      %v778 = vpop.f32.mrb[0].mxu0
      %779 = vmatprep.mubr.f32.mxu0 0.0
      %780 = vmatmul.mubr.f32.gmra.mrb[0].mxu0 %v618
      %v781 = vpop.f32.mrb[0].mxu0
      %v782 = vadd.f32 0.0, %v781
      %v783 = vpop.f32.mrb[0].mxu0
      %784 = vmatprep.mubr.f32.mxu0 0.0
      %785 = vmatmul.mubr.f32.gmra.mrb[0].mxu0 %v621
      %v786 = vpop.f32.mrb[0].mxu0
      %v787 = vadd.f32 0.0, %v786
      %v788 = vpop.f32.mrb[0].mxu0
      %789 = vmatprep.mubr.f32.mxu0 0.0
      %790 = vmatmul.mubr.f32.gmra.mrb[0].mxu0 %v624
      %v791 = vpop.f32.mrb[0].mxu0
      %v792 = vadd.f32 0.0, %v791
      %v793 = vpop.f32.mrb[0].mxu0
      %794 = vmatprep.mubr.f32.mxu0 0.0
      %795 = vmatmul.mubr.f32.gmra.mrb[0].mxu0 %v627
      %v796 = vpop.f32.mrb[0].mxu0
      %v797 = vadd.f32 0.0, %v796
      %v798 = vpop.f32.mrb[0].mxu0
      %799 = vmatprep.mubr.f32.mxu0 0.0
      %800 = vmatmul.mubr.f32.gmra.mrb[0].mxu0 %v630
      %v801 = vpop.f32.mrb[0].mxu0
      %v802 = vadd.f32 0.0, %v801
      %v803 = vpop.f32.mrb[0].mxu0
      %804 = vmatprep.mubr.f32.mxu0 0.0
      %805 = vmatmul.mubr.f32.gmra.mrb[0].mxu0 %v633
      %v806 = vpop.f32.mrb[0].mxu0
      %v807 = vadd.f32 0.0, %v806
      %v808 = vpop.f32.mrb[0].mxu0
      %809 = vmatprep.mubr.f32.mxu0 0.0
      %810 = vmatmul.mubr.f32.gmra.mrb[0].mxu0 %v636
      %v811 = vpop.f32.mrb[0].mxu0
      %v812 = vadd.f32 0.0, %v811
      %v813 = vpop.f32.mrb[0].mxu0
      %814 = vmatprep.mubr.f32.mxu0 0.0
      %815 = vmatmul.mubr.f32.gmra.mrb[0].mxu0 %v639
      %v816 = vpop.f32.mrb[0].mxu0
      %v817 = vadd.f32 0.0, %v816
      %v818 = vpop.f32.mrb[0].mxu0
      %819 = vmatprep.mubr.f32.mxu0 0.0
      %820 = vmatmul.mubr.f32.gmra.mrb[0].mxu0 %v642
      %v821 = vpop.f32.mrb[0].mxu0
      %v822 = vadd.f32 0.0, %v821
      %v823 = vpop.f32.mrb[0].mxu0
      %824 = vmatprep.mubr.f32.mxu0 0.0
      %825 = vmatmul.mubr.f32.gmra.mrb[0].mxu0 %v645
      %v826 = vpop.f32.mrb[0].mxu0
      %v827 = vadd.f32 0.0, %v826
      %v828 = vpop.f32.mrb[0].mxu0
      %829 = vmatprep.mubr.f32.mxu0 0.0
      %830 = vmatmul.mubr.f32.gmra.mrb[0].mxu0 %v648
      %v831 = vpop.f32.mrb[0].mxu0
      %v832 = vadd.f32 0.0, %v831
      %v833 = vpop.f32.mrb[0].mxu0
      %834 = vmatprep.mubr.f32.mxu0 0.0
      %835 = vmatmul.mubr.f32.gmra.mrb[0].mxu0 %v651
      %v836 = vpop.f32.mrb[0].mxu0
      %v837 = vadd.f32 0.0, %v836
      %v838 = vpop.f32.mrb[0].mxu0
      %839 = vmatprep.mubr.f32.mxu0 0.0
      %840 = vmatmul.mubr.f32.gmra.mrb[0].mxu0 %v654
      %v841 = vpop.f32.mrb[0].mxu0
      %v842 = vadd.f32 0.0, %v841
      %v843 = vpop.f32.mrb[0].mxu0
      %844 = vmatprep.mubr.f32.mxu0 0.0
      %845 = vmatmul.mubr.f32.gmra.mrb[0].mxu0 %v657
      %v846 = vpop.f32.mrb[0].mxu0
      %v847 = vadd.f32 0.0, %v846
      %v848 = vpop.f32.mrb[0].mxu0
      %849 = vmatprep.mubr.f32.mxu0 0.0
      %850 = vmatmul.mubr.f32.gmra.mrb[0].mxu0 %v660
      %v851 = vpop.f32.mrb[0].mxu0
      %v852 = vadd.f32 0.0, %v851
      %v853 = vpop.f32.mrb[0].mxu0
      %854 = vmatprep.mubr.f32.mxu0 0.0
      %855 = vmatmul.mubr.f32.gmra.mrb[0].mxu0 %v663
      %v856 = vpop.f32.mrb[0].mxu0
      %v857 = vadd.f32 0.0, %v856
      %v858 = vpop.f32.mrb[0].mxu0
      %859 = vmatprep.mubr.f32.mxu0 0.0
      %860 = vmatmul.mubr.f32.gmra.mrb[0].mxu0 %v666
      %v861 = vpop.f32.mrb[0].mxu0
      %v862 = vadd.f32 0.0, %v861
      %v863 = vpop.f32.mrb[0].mxu0
      %864 = vmatprep.mubr.f32.mxu0 0.0
      %865 = vmatmul.mubr.f32.gmra.mrb[0].mxu0 %v669
      %v866 = vpop.f32.mrb[0].mxu0
      %v867 = vadd.f32 0.0, %v866
      %v868 = vpop.f32.mrb[0].mxu0
      %869 = vmatprep.mubr.f32.mxu0 0.0
      %870 = vmatmul.mubr.f32.gmra.mrb[0].mxu0 %v672
      %v871 = vpop.f32.mrb[0].mxu0
      %v872 = vadd.f32 0.0, %v871
      %v873 = vpop.f32.mrb[0].mxu0
      %874 = vmatprep.mubr.f32.mxu0 0.0
      %875 = vmatmul.mubr.f32.gmra.mrb[0].mxu0 %v675
      %v876 = vpop.f32.mrb[0].mxu0
      %v877 = vadd.f32 0.0, %v876
      %v878 = vpop.f32.mrb[0].mxu0
      %879 = vmatprep.mubr.f32.mxu0 0.0
      %880 = vmatmul.mubr.f32.gmra.mrb[0].mxu0 %v678
      %v881 = vpop.f32.mrb[0].mxu0
      %v882 = vadd.f32 0.0, %v881
      %v883 = vpop.f32.mrb[0].mxu0
      %884 = vmatprep.mubr.f32.mxu0 0.0
      %885 = vmatmul.mubr.f32.gmra.mrb[0].mxu0 %v681
      %v886 = vpop.f32.mrb[0].mxu0
      %v887 = vadd.f32 0.0, %v886
      %v888 = vpop.f32.mrb[0].mxu0
      %889 = vmatprep.mubr.f32.mxu0 0.0
      %890 = vmatmul.mubr.f32.gmra.mrb[0].mxu0 %v684
      %v891 = vpop.f32.mrb[0].mxu0
      %v892 = vadd.f32 0.0, %v891
      %v893 = vpop.f32.mrb[0].mxu0
      %894 = vmatprep.mubr.f32.mxu0 0.0
      %895 = vmatmul.mubr.f32.gmra.mrb[0].mxu0 %v687
      %v896 = vpop.f32.mrb[0].mxu0
      %v897 = vadd.f32 0.0, %v896
      %v898 = vpop.f32.mrb[0].mxu0
      %899 = vmatprep.mubr.f32.mxu0 0.0
      %900 = vmatmul.mubr.f32.gmra.mrb[0].mxu0 %v690
      %v901 = vpop.f32.mrb[0].mxu0
      %v902 = vadd.f32 0.0, %v901
      %v903 = vpop.f32.mrb[0].mxu0
      %904 = vmatprep.mubr.f32.mxu0 0.0
      %905 = vmatmul.mubr.f32.gmra.mrb[0].mxu0 %v693
      %v906 = vpop.f32.mrb[0].mxu0
      %v907 = vadd.f32 0.0, %v906
      %v908 = vpop.f32.mrb[0].mxu0
      %909 = vmatprep.mubr.f32.mxu0 0.0
      %910 = vmatmul.mubr.f32.gmra.mrb[0].mxu0 %v696
      %v911 = vpop.f32.mrb[0].mxu0
      %v912 = vadd.f32 0.0, %v911
      %v913 = vpop.f32.mrb[0].mxu0
      %914 = vmatprep.mubr.f32.mxu0 0.0
      %915 = vmatmul.mubr.f32.gmra.mrb[0].mxu0 %v699
      %v916 = vpop.f32.mrb[0].mxu0
      %v917 = vadd.f32 0.0, %v916
      %v918 = vpop.f32.mrb[0].mxu0
      %919 = vmatprep.mubr.f32.mxu0 0.0
      %920 = vmatmul.mubr.f32.gmra.mrb[0].mxu0 %v702
      %v921 = vpop.f32.mrb[0].mxu0
      %v922 = vadd.f32 0.0, %v921
      %v923 = vpop.f32.mrb[0].mxu0
      %924 = vmatprep.mubr.f32.mxu0 0.0
      %925 = vmatmul.mubr.f32.gmra.mrb[0].mxu0 %v705
      %v926 = vpop.f32.mrb[0].mxu0
      %v927 = vadd.f32 0.0, %v926
      %v928 = vpop.f32.mrb[0].mxu0
      %929 = vmatprep.mubr.f32.mxu0 0.0
      %930 = vmatmul.mubr.f32.gmra.mrb[0].mxu0 %v708
      %v931 = vpop.f32.mrb[0].mxu0
      %v932 = vadd.f32 0.0, %v931
      %v933 = vpop.f32.mrb[0].mxu0
      %934 = vdwg.mxu0
      %v936 = vsel %vm613, %v545, 0
      %v939 = vsel %vm613, %v546, 0
      %v942 = vsel %vm613, %v547, 0
      %v945 = vsel %vm613, %v548, 0
      %v948 = vsel %vm613, %v549, 0
      %v951 = vsel %vm613, %v550, 0
      %v954 = vsel %vm613, %v551, 0
      %v957 = vsel %vm613, %v552, 0
      %v960 = vsel %vm613, %v553, 0
      %v963 = vsel %vm613, %v554, 0
      %v966 = vsel %vm613, %v555, 0
      %v969 = vsel %vm613, %v556, 0
      %v972 = vsel %vm613, %v557, 0
      %v975 = vsel %vm613, %v558, 0
      %v978 = vsel %vm613, %v559, 0
      %v981 = vsel %vm613, %v560, 0
      %v984 = vsel %vm613, %v561, 0
      %v987 = vsel %vm613, %v562, 0
      %v990 = vsel %vm613, %v563, 0
      %v993 = vsel %vm613, %v564, 0
      %v996 = vsel %vm613, %v565, 0
      %v999 = vsel %vm613, %v566, 0
      %v1002 = vsel %vm613, %v567, 0
      %v1005 = vsel %vm613, %v568, 0
      %v1008 = vsel %vm613, %v569, 0
      %v1011 = vsel %vm613, %v570, 0
      %v1014 = vsel %vm613, %v571, 0
      %v1017 = vsel %vm613, %v572, 0
      %v1020 = vsel %vm613, %v573, 0
      %v1023 = vsel %vm613, %v574, 0
      %v1026 = vsel %vm613, %v575, 0
      %v1029 = vsel %vm613, %v576, 0
      %1031 = vmatprep.subr.mxu0 0.0
      %1032 = vmatpush1.msra.mxu0 %v577
      %1033 = vmatprep.subr.mxu0 0.0
      %1034 = vmatpush1.msra.mxu0 0.0
      %1035 = vmatprep.subr.mxu0 0.0
      %1036 = vmatpush1.msra.mxu0 0.0
      %1037 = vmatprep.subr.mxu0 0.0
      %1038 = vmatpush1.msra.mxu0 0.0
      %1039 = vmatprep.subr.mxu0 0.0
      %1040 = vmatpush1.msra.mxu0 0.0
      %1041 = vmatprep.subr.mxu0 0.0
      %1042 = vmatpush1.msra.mxu0 0.0
      %1043 = vmatprep.subr.mxu0 0.0
      %1044 = vmatpush1.msra.mxu0 0.0
      %1045 = vmatprep.subr.mxu0 0.0
      %1046 = vmatpush1.msra.mxu0 0.0
      %1047 = vmatprep.subr.mxu0 0.0
      %1048 = vmatpush1.msra.mxu0 0.0
      %1049 = vmatprep.subr.mxu0 0.0
      %1050 = vmatpush1.msra.mxu0 0.0
      %1051 = vmatprep.subr.mxu0 0.0
      %1052 = vmatpush1.msra.mxu0 0.0
      %1053 = vmatprep.subr.mxu0 0.0
      %1054 = vmatpush1.msra.mxu0 0.0
      %1055 = vmatprep.subr.mxu0 0.0
      %1056 = vmatpush1.msra.mxu0 0.0
      %1057 = vmatprep.subr.mxu0 0.0
      %1058 = vmatpush1.msra.mxu0 0.0
      %1059 = vmatprep.subr.mxu0 0.0
      %1060 = vmatpush1.msra.mxu0 0.0
      %1061 = vmatprep.subr.mxu0 0.0
      %1062 = vmatpush1.msra.mxu0 0.0
      %1063 = vmatprep.subr.mxu0 0.0
      %1064 = vmatpush1.msra.mxu0 0.0
      %1065 = vmatprep.subr.mxu0 0.0
      %1066 = vmatpush1.msra.mxu0 0.0
      %1067 = vmatprep.subr.mxu0 0.0
      %1068 = vmatpush1.msra.mxu0 0.0
      %1069 = vmatprep.subr.mxu0 0.0
      %1070 = vmatpush1.msra.mxu0 0.0
      %1071 = vmatprep.subr.mxu0 0.0
      %1072 = vmatpush1.msra.mxu0 0.0
      %1073 = vmatprep.subr.mxu0 0.0
      %1074 = vmatpush1.msra.mxu0 0.0
      %1075 = vmatprep.subr.mxu0 0.0
      %1076 = vmatpush1.msra.mxu0 0.0
      %1077 = vmatprep.subr.mxu0 0.0
      %1078 = vmatpush1.msra.mxu0 0.0
      %1079 = vmatprep.subr.mxu0 0.0
      %1080 = vmatpush1.msra.mxu0 0.0
      %1081 = vmatprep.subr.mxu0 0.0
      %1082 = vmatpush1.msra.mxu0 0.0
      %1083 = vmatprep.subr.mxu0 0.0
      %1084 = vmatpush1.msra.mxu0 0.0
      %1085 = vmatprep.subr.mxu0 0.0
      %1086 = vmatpush1.msra.mxu0 0.0
      %1087 = vmatprep.subr.mxu0 0.0
      %1088 = vmatpush1.msra.mxu0 0.0
      %1089 = vmatprep.subr.mxu0 0.0
      %1090 = vmatpush1.msra.mxu0 0.0
      %1091 = vmatprep.subr.mxu0 0.0
      %1092 = vmatpush1.msra.mxu0 0.0
      %1093 = vmatprep.subr.mxu0 0.0
      %1094 = vmatpush1.msra.mxu0 0.0
      %1095 = vmatprep.mubr.f32.mxu0 0.0
      %1096 = vmatmul.mubr.f32.gmra.mrb[0].mxu0 %v936
      %v1097 = vpop.f32.mrb[0].mxu0
      %v1098 = vadd.f32 %v777, %v1097
      %v1099 = vpop.f32.mrb[0].mxu0
      %1100 = vmatprep.mubr.f32.mxu0 0.0
      %1101 = vmatmul.mubr.f32.gmra.mrb[0].mxu0 %v939
      %v1102 = vpop.f32.mrb[0].mxu0
      %v1103 = vadd.f32 %v782, %v1102
      %v1104 = vpop.f32.mrb[0].mxu0
      %1105 = vmatprep.mubr.f32.mxu0 0.0
      %1106 = vmatmul.mubr.f32.gmra.mrb[0].mxu0 %v942
      %v1107 = vpop.f32.mrb[0].mxu0
      %v1108 = vadd.f32 %v787, %v1107
      %v1109 = vpop.f32.mrb[0].mxu0
      %1110 = vmatprep.mubr.f32.mxu0 0.0
      %1111 = vmatmul.mubr.f32.gmra.mrb[0].mxu0 %v945
      %v1112 = vpop.f32.mrb[0].mxu0
      %v1113 = vadd.f32 %v792, %v1112
      %v1114 = vpop.f32.mrb[0].mxu0
      %1115 = vmatprep.mubr.f32.mxu0 0.0
      %1116 = vmatmul.mubr.f32.gmra.mrb[0].mxu0 %v948
      %v1117 = vpop.f32.mrb[0].mxu0
      %v1118 = vadd.f32 %v797, %v1117
      %v1119 = vpop.f32.mrb[0].mxu0
      %1120 = vmatprep.mubr.f32.mxu0 0.0
      %1121 = vmatmul.mubr.f32.gmra.mrb[0].mxu0 %v951
      %v1122 = vpop.f32.mrb[0].mxu0
      %v1123 = vadd.f32 %v802, %v1122
      %v1124 = vpop.f32.mrb[0].mxu0
      %1125 = vmatprep.mubr.f32.mxu0 0.0
      %1126 = vmatmul.mubr.f32.gmra.mrb[0].mxu0 %v954
      %v1127 = vpop.f32.mrb[0].mxu0
      %v1128 = vadd.f32 %v807, %v1127
      %v1129 = vpop.f32.mrb[0].mxu0
      %1130 = vmatprep.mubr.f32.mxu0 0.0
      %1131 = vmatmul.mubr.f32.gmra.mrb[0].mxu0 %v957
      %v1132 = vpop.f32.mrb[0].mxu0
      %v1133 = vadd.f32 %v812, %v1132
      %v1134 = vpop.f32.mrb[0].mxu0
      %1135 = vmatprep.mubr.f32.mxu0 0.0
      %1136 = vmatmul.mubr.f32.gmra.mrb[0].mxu0 %v960
      %v1137 = vpop.f32.mrb[0].mxu0
      %v1138 = vadd.f32 %v817, %v1137
      %v1139 = vpop.f32.mrb[0].mxu0
      %1140 = vmatprep.mubr.f32.mxu0 0.0
      %1141 = vmatmul.mubr.f32.gmra.mrb[0].mxu0 %v963
      %v1142 = vpop.f32.mrb[0].mxu0
      %v1143 = vadd.f32 %v822, %v1142
      %v1144 = vpop.f32.mrb[0].mxu0
      %1145 = vmatprep.mubr.f32.mxu0 0.0
      %1146 = vmatmul.mubr.f32.gmra.mrb[0].mxu0 %v966
      %v1147 = vpop.f32.mrb[0].mxu0
      %v1148 = vadd.f32 %v827, %v1147
      %v1149 = vpop.f32.mrb[0].mxu0
      %1150 = vmatprep.mubr.f32.mxu0 0.0
      %1151 = vmatmul.mubr.f32.gmra.mrb[0].mxu0 %v969
      %v1152 = vpop.f32.mrb[0].mxu0
      %v1153 = vadd.f32 %v832, %v1152
      %v1154 = vpop.f32.mrb[0].mxu0
      %1155 = vmatprep.mubr.f32.mxu0 0.0
      %1156 = vmatmul.mubr.f32.gmra.mrb[0].mxu0 %v972
      %v1157 = vpop.f32.mrb[0].mxu0
      %v1158 = vadd.f32 %v837, %v1157
      %v1159 = vpop.f32.mrb[0].mxu0
      %1160 = vmatprep.mubr.f32.mxu0 0.0
      %1161 = vmatmul.mubr.f32.gmra.mrb[0].mxu0 %v975
      %v1162 = vpop.f32.mrb[0].mxu0
      %v1163 = vadd.f32 %v842, %v1162
      %v1164 = vpop.f32.mrb[0].mxu0
      %1165 = vmatprep.mubr.f32.mxu0 0.0
      %1166 = vmatmul.mubr.f32.gmra.mrb[0].mxu0 %v978
      %v1167 = vpop.f32.mrb[0].mxu0
      %v1168 = vadd.f32 %v847, %v1167
      %v1169 = vpop.f32.mrb[0].mxu0
      %1170 = vmatprep.mubr.f32.mxu0 0.0
      %1171 = vmatmul.mubr.f32.gmra.mrb[0].mxu0 %v981
      %v1172 = vpop.f32.mrb[0].mxu0
      %v1173 = vadd.f32 %v852, %v1172
      %v1174 = vpop.f32.mrb[0].mxu0
      %1175 = vmatprep.mubr.f32.mxu0 0.0
      %1176 = vmatmul.mubr.f32.gmra.mrb[0].mxu0 %v984
      %v1177 = vpop.f32.mrb[0].mxu0
      %v1178 = vadd.f32 %v857, %v1177
      %v1179 = vpop.f32.mrb[0].mxu0
      %1180 = vmatprep.mubr.f32.mxu0 0.0
      %1181 = vmatmul.mubr.f32.gmra.mrb[0].mxu0 %v987
      %v1182 = vpop.f32.mrb[0].mxu0
      %v1183 = vadd.f32 %v862, %v1182
      %v1184 = vpop.f32.mrb[0].mxu0
      %1185 = vmatprep.mubr.f32.mxu0 0.0
      %1186 = vmatmul.mubr.f32.gmra.mrb[0].mxu0 %v990
      %v1187 = vpop.f32.mrb[0].mxu0
      %v1188 = vadd.f32 %v867, %v1187
      %v1189 = vpop.f32.mrb[0].mxu0
      %1190 = vmatprep.mubr.f32.mxu0 0.0
      %1191 = vmatmul.mubr.f32.gmra.mrb[0].mxu0 %v993
      %v1192 = vpop.f32.mrb[0].mxu0
      %v1193 = vadd.f32 %v872, %v1192
      %v1194 = vpop.f32.mrb[0].mxu0
      %1195 = vmatprep.mubr.f32.mxu0 0.0
      %1196 = vmatmul.mubr.f32.gmra.mrb[0].mxu0 %v996
      %v1197 = vpop.f32.mrb[0].mxu0
      %v1198 = vadd.f32 %v877, %v1197
      %v1199 = vpop.f32.mrb[0].mxu0
      %1200 = vmatprep.mubr.f32.mxu0 0.0
      %1201 = vmatmul.mubr.f32.gmra.mrb[0].mxu0 %v999
      %v1202 = vpop.f32.mrb[0].mxu0
      %v1203 = vadd.f32 %v882, %v1202
      %v1204 = vpop.f32.mrb[0].mxu0
      %1205 = vmatprep.mubr.f32.mxu0 0.0
      %1206 = vmatmul.mubr.f32.gmra.mrb[0].mxu0 %v1002
      %v1207 = vpop.f32.mrb[0].mxu0
      %v1208 = vadd.f32 %v887, %v1207
      %v1209 = vpop.f32.mrb[0].mxu0
      %1210 = vmatprep.mubr.f32.mxu0 0.0
      %1211 = vmatmul.mubr.f32.gmra.mrb[0].mxu0 %v1005
      %v1212 = vpop.f32.mrb[0].mxu0
      %v1213 = vadd.f32 %v892, %v1212
      %v1214 = vpop.f32.mrb[0].mxu0
      %1215 = vmatprep.mubr.f32.mxu0 0.0
      %1216 = vmatmul.mubr.f32.gmra.mrb[0].mxu0 %v1008
      %v1217 = vpop.f32.mrb[0].mxu0
      %v1218 = vadd.f32 %v897, %v1217
      %v1219 = vpop.f32.mrb[0].mxu0
      %1220 = vmatprep.mubr.f32.mxu0 0.0
      %1221 = vmatmul.mubr.f32.gmra.mrb[0].mxu0 %v1011
      %v1222 = vpop.f32.mrb[0].mxu0
      %v1223 = vadd.f32 %v902, %v1222
      %v1224 = vpop.f32.mrb[0].mxu0
      %1225 = vmatprep.mubr.f32.mxu0 0.0
      %1226 = vmatmul.mubr.f32.gmra.mrb[0].mxu0 %v1014
      %v1227 = vpop.f32.mrb[0].mxu0
      %v1228 = vadd.f32 %v907, %v1227
      %v1229 = vpop.f32.mrb[0].mxu0
      %1230 = vmatprep.mubr.f32.mxu0 0.0
      %1231 = vmatmul.mubr.f32.gmra.mrb[0].mxu0 %v1017
      %v1232 = vpop.f32.mrb[0].mxu0
      %v1233 = vadd.f32 %v912, %v1232
      %v1234 = vpop.f32.mrb[0].mxu0
      %1235 = vmatprep.mubr.f32.mxu0 0.0
      %1236 = vmatmul.mubr.f32.gmra.mrb[0].mxu0 %v1020
      %v1237 = vpop.f32.mrb[0].mxu0
      %v1238 = vadd.f32 %v917, %v1237
      %v1239 = vpop.f32.mrb[0].mxu0
      %1240 = vmatprep.mubr.f32.mxu0 0.0
      %1241 = vmatmul.mubr.f32.gmra.mrb[0].mxu0 %v1023
      %v1242 = vpop.f32.mrb[0].mxu0
      %v1243 = vadd.f32 %v922, %v1242
      %v1244 = vpop.f32.mrb[0].mxu0
      %1245 = vmatprep.mubr.f32.mxu0 0.0
      %1246 = vmatmul.mubr.f32.gmra.mrb[0].mxu0 %v1026
      %v1247 = vpop.f32.mrb[0].mxu0
      %v1248 = vadd.f32 %v927, %v1247
      %v1249 = vpop.f32.mrb[0].mxu0
      %1250 = vmatprep.mubr.f32.mxu0 0.0
      %1251 = vmatmul.mubr.f32.gmra.mrb[0].mxu0 %v1029
      %v1252 = vpop.f32.mrb[0].mxu0
      %v1253 = vadd.f32 %v932, %v1252
      %v1254 = vpop.f32.mrb[0].mxu0
      %1255 = vdwg.mxu0
      %v1257 = vlaneseq
      %v1258 = vshrl.u32 %v1257, 7
      %v1259 = vsub.s32 0, %v1258
      %v1260 = vrot.slane %v254, %v1259
      %v1262 = vadd.f32 %v1098, %v1260
      %v1263 = vadd.f32 %v1103, %v1260
      %v1264 = vadd.f32 %v1108, %v1260
      %v1265 = vadd.f32 %v1113, %v1260
      %v1266 = vadd.f32 %v1118, %v1260
      %v1267 = vadd.f32 %v1123, %v1260
      %v1268 = vadd.f32 %v1128, %v1260
      %v1269 = vadd.f32 %v1133, %v1260
      %v1270 = vadd.f32 %v1138, %v1260
      %v1271 = vadd.f32 %v1143, %v1260
      %v1272 = vadd.f32 %v1148, %v1260
      %v1273 = vadd.f32 %v1153, %v1260
      %v1274 = vadd.f32 %v1158, %v1260
      %v1275 = vadd.f32 %v1163, %v1260
      %v1276 = vadd.f32 %v1168, %v1260
      %v1277 = vadd.f32 %v1173, %v1260
      %v1278 = vadd.f32 %v1178, %v1260
      %v1279 = vadd.f32 %v1183, %v1260
      %v1280 = vadd.f32 %v1188, %v1260
      %v1281 = vadd.f32 %v1193, %v1260
      %v1282 = vadd.f32 %v1198, %v1260
      %v1283 = vadd.f32 %v1203, %v1260
      %v1284 = vadd.f32 %v1208, %v1260
      %v1285 = vadd.f32 %v1213, %v1260
      %v1286 = vadd.f32 %v1218, %v1260
      %v1287 = vadd.f32 %v1223, %v1260
      %v1288 = vadd.f32 %v1228, %v1260
      %v1289 = vadd.f32 %v1233, %v1260
      %v1290 = vadd.f32 %v1238, %v1260
      %v1291 = vadd.f32 %v1243, %v1260
      %v1292 = vadd.f32 %v1248, %v1260
      %v1293 = vadd.f32 %v1253, %v1260
      %1294 = vst.msk [vmem:[%s252] sm:$0xff] %vm291, %v1262
      %1295 = vst.msk [vmem:[%s252 + $0x8] sm:$0xff] %vm291, %v1263
      %1296 = vst.msk [vmem:[%s252 + $0x10] sm:$0xff] %vm291, %v1264
      %1297 = vst.msk [vmem:[%s252 + $0x18] sm:$0xff] %vm291, %v1265
      %1298 = vst.msk [vmem:[%s252 + $0x20] sm:$0xff] %vm291, %v1266
      %1299 = vst.msk [vmem:[%s252 + $0x28] sm:$0xff] %vm291, %v1267
      %1300 = vst.msk [vmem:[%s252 + $0x30] sm:$0xff] %vm291, %v1268
      %1301 = vst.msk [vmem:[%s252 + $0x38] sm:$0xff] %vm291, %v1269
      %1302 = vst.msk [vmem:[%s252 + $0x40] sm:$0xff] %vm291, %v1270
      %1303 = vst.msk [vmem:[%s252 + $0x48] sm:$0xff] %vm291, %v1271
      %1304 = vst.msk [vmem:[%s252 + $0x50] sm:$0xff] %vm291, %v1272
      %1305 = vst.msk [vmem:[%s252 + $0x58] sm:$0xff] %vm291, %v1273
      %1306 = vst.msk [vmem:[%s252 + $0x60] sm:$0xff] %vm291, %v1274
      %1307 = vst.msk [vmem:[%s252 + $0x68] sm:$0xff] %vm291, %v1275
      %1308 = vst.msk [vmem:[%s252 + $0x70] sm:$0xff] %vm291, %v1276
      %1309 = vst.msk [vmem:[%s252 + $0x78] sm:$0xff] %vm291, %v1277
      %1310 = vst.msk [vmem:[%s252 + $0x80] sm:$0xff] %vm291, %v1278
      %1311 = vst.msk [vmem:[%s252 + $0x88] sm:$0xff] %vm291, %v1279
      %1312 = vst.msk [vmem:[%s252 + $0x90] sm:$0xff] %vm291, %v1280
      %1313 = vst.msk [vmem:[%s252 + $0x98] sm:$0xff] %vm291, %v1281
      %1314 = vst.msk [vmem:[%s252 + $0xa0] sm:$0xff] %vm291, %v1282
      %1315 = vst.msk [vmem:[%s252 + $0xa8] sm:$0xff] %vm291, %v1283
      %1316 = vst.msk [vmem:[%s252 + $0xb0] sm:$0xff] %vm291, %v1284
      %1317 = vst.msk [vmem:[%s252 + $0xb8] sm:$0xff] %vm291, %v1285
      %1318 = vst.msk [vmem:[%s252 + $0xc0] sm:$0xff] %vm291, %v1286
      %1319 = vst.msk [vmem:[%s252 + $0xc8] sm:$0xff] %vm291, %v1287
      %1320 = vst.msk [vmem:[%s252 + $0xd0] sm:$0xff] %vm291, %v1288
      %1321 = vst.msk [vmem:[%s252 + $0xd8] sm:$0xff] %vm291, %v1289
      %1322 = vst.msk [vmem:[%s252 + $0xe0] sm:$0xff] %vm291, %v1290
      %1323 = vst.msk [vmem:[%s252 + $0xe8] sm:$0xff] %vm291, %v1291
      %1324 = vst.msk [vmem:[%s252 + $0xf0] sm:$0xff] %vm291, %v1292
      %1325 = vst.msk [vmem:[%s252 + $0xf8] sm:$0xff] %vm291, %v1293
      %v1326 = vld [vmem:[%s578] sm:$0xff]
      %v1327 = vld [vmem:[%s578 + $0x8] sm:$0xff]
      %v1328 = vld [vmem:[%s578 + $0x10] sm:$0xff]
      %v1329 = vld [vmem:[%s578 + $0x18] sm:$0xff]
      %v1330 = vld [vmem:[%s578 + $0x20] sm:$0xff]
      %v1331 = vld [vmem:[%s578 + $0x28] sm:$0xff]
      %v1332 = vld [vmem:[%s578 + $0x30] sm:$0xff]
      %v1333 = vld [vmem:[%s578 + $0x38] sm:$0xff]
      %v1334 = vld [vmem:[%s578 + $0x40] sm:$0xff]
      %v1335 = vld [vmem:[%s578 + $0x48] sm:$0xff]
      %v1336 = vld [vmem:[%s578 + $0x50] sm:$0xff]
      %v1337 = vld [vmem:[%s578 + $0x58] sm:$0xff]
      %v1338 = vld [vmem:[%s578 + $0x60] sm:$0xff]
      %v1339 = vld [vmem:[%s578 + $0x68] sm:$0xff]
      %v1340 = vld [vmem:[%s578 + $0x70] sm:$0xff]
      %v1341 = vld [vmem:[%s578 + $0x78] sm:$0xff]
      %v1342 = vld [vmem:[%s578 + $0x80] sm:$0xff]
      %v1343 = vld [vmem:[%s578 + $0x88] sm:$0xff]
      %v1344 = vld [vmem:[%s578 + $0x90] sm:$0xff]
      %v1345 = vld [vmem:[%s578 + $0x98] sm:$0xff]
      %v1346 = vld [vmem:[%s578 + $0xa0] sm:$0xff]
      %v1347 = vld [vmem:[%s578 + $0xa8] sm:$0xff]
      %v1348 = vld [vmem:[%s578 + $0xb0] sm:$0xff]
      %v1349 = vld [vmem:[%s578 + $0xb8] sm:$0xff]
      %v1350 = vld [vmem:[%s578 + $0xc0] sm:$0xff]
      %v1351 = vld [vmem:[%s578 + $0xc8] sm:$0xff]
      %v1352 = vld [vmem:[%s578 + $0xd0] sm:$0xff]
      %v1353 = vld [vmem:[%s578 + $0xd8] sm:$0xff]
      %v1354 = vld [vmem:[%s578 + $0xe0] sm:$0xff]
      %v1355 = vld [vmem:[%s578 + $0xe8] sm:$0xff]
      %v1356 = vld [vmem:[%s578 + $0xf0] sm:$0xff]
      %v1357 = vld [vmem:[%s578 + $0xf8] sm:$0xff]
      %s1358 = scalar_lea.vmem %s237, 32
      %v1359 = vld [vmem:[%s1358] sm:$0xff]
      %s1360 = scalar_lea.vmem [#allocation2], 32
      %v1361 = vld [vmem:[%s1360] sm:$0xff]
      %v1362 = vld [vmem:[%s1360 + $0x8] sm:$0xff]
      %v1363 = vld [vmem:[%s1360 + $0x10] sm:$0xff]
      %v1364 = vld [vmem:[%s1360 + $0x18] sm:$0xff]
      %v1365 = vld [vmem:[%s1360 + $0x20] sm:$0xff]
      %v1366 = vld [vmem:[%s1360 + $0x28] sm:$0xff]
      %v1367 = vld [vmem:[%s1360 + $0x30] sm:$0xff]
      %v1368 = vld [vmem:[%s1360 + $0x38] sm:$0xff]
      %v1369 = vld [vmem:[%s1360 + $0x40] sm:$0xff]
      %v1370 = vld [vmem:[%s1360 + $0x48] sm:$0xff]
      %v1371 = vld [vmem:[%s1360 + $0x50] sm:$0xff]
      %v1372 = vld [vmem:[%s1360 + $0x58] sm:$0xff]
      %v1373 = vld [vmem:[%s1360 + $0x60] sm:$0xff]
      %v1374 = vld [vmem:[%s1360 + $0x68] sm:$0xff]
      %v1375 = vld [vmem:[%s1360 + $0x70] sm:$0xff]
      %v1376 = vld [vmem:[%s1360 + $0x78] sm:$0xff]
      %v1377 = vld [vmem:[%s1360 + $0x80] sm:$0xff]
      %v1378 = vld [vmem:[%s1360 + $0x88] sm:$0xff]
      %v1379 = vld [vmem:[%s1360 + $0x90] sm:$0xff]
      %v1380 = vld [vmem:[%s1360 + $0x98] sm:$0xff]
      %v1381 = vld [vmem:[%s1360 + $0xa0] sm:$0xff]
      %v1382 = vld [vmem:[%s1360 + $0xa8] sm:$0xff]
      %v1383 = vld [vmem:[%s1360 + $0xb0] sm:$0xff]
      %v1384 = vld [vmem:[%s1360 + $0xb8] sm:$0xff]
      %v1385 = vld [vmem:[%s1360 + $0xc0] sm:$0xff]
      %v1386 = vld [vmem:[%s1360 + $0xc8] sm:$0xff]
      %v1387 = vld [vmem:[%s1360 + $0xd0] sm:$0xff]
      %v1388 = vld [vmem:[%s1360 + $0xd8] sm:$0xff]
      %v1389 = vld [vmem:[%s1360 + $0xe0] sm:$0xff]
      %v1390 = vld [vmem:[%s1360 + $0xe8] sm:$0xff]
      %v1391 = vld [vmem:[%s1360 + $0xf0] sm:$0xff]
      %v1392 = vld [vmem:[%s1360 + $0xf8] sm:$0xff]
      %s1393 = scalar_lea.vmem %s237, 40
      %v1394 = vld [vmem:[%s1393] sm:$0xff]
      %v1396 = vsel %vm613, %v1361, 0
      %v1399 = vsel %vm613, %v1362, 0
      %v1402 = vsel %vm613, %v1363, 0
      %v1405 = vsel %vm613, %v1364, 0
      %v1408 = vsel %vm613, %v1365, 0
      %v1411 = vsel %vm613, %v1366, 0
      %v1414 = vsel %vm613, %v1367, 0
      %v1417 = vsel %vm613, %v1368, 0
      %v1420 = vsel %vm613, %v1369, 0
      %v1423 = vsel %vm613, %v1370, 0
      %v1426 = vsel %vm613, %v1371, 0
      %v1429 = vsel %vm613, %v1372, 0
      %v1432 = vsel %vm613, %v1373, 0
      %v1435 = vsel %vm613, %v1374, 0
      %v1438 = vsel %vm613, %v1375, 0
      %v1441 = vsel %vm613, %v1376, 0
      %v1444 = vsel %vm613, %v1377, 0
      %v1447 = vsel %vm613, %v1378, 0
      %v1450 = vsel %vm613, %v1379, 0
      %v1453 = vsel %vm613, %v1380, 0
      %v1456 = vsel %vm613, %v1381, 0
      %v1459 = vsel %vm613, %v1382, 0
      %v1462 = vsel %vm613, %v1383, 0
      %v1465 = vsel %vm613, %v1384, 0
      %v1468 = vsel %vm613, %v1385, 0
      %v1471 = vsel %vm613, %v1386, 0
      %v1474 = vsel %vm613, %v1387, 0
      %v1477 = vsel %vm613, %v1388, 0
      %v1480 = vsel %vm613, %v1389, 0
      %v1483 = vsel %vm613, %v1390, 0
      %v1486 = vsel %vm613, %v1391, 0
      %v1489 = vsel %vm613, %v1392, 0
      %1491 = vmatprep.subr.mxu0 0.0
      %1492 = vmatpush1.msra.mxu0 %v1394
      %1493 = vmatprep.subr.mxu0 0.0
      %1494 = vmatpush1.msra.mxu0 0.0
      %1495 = vmatprep.subr.mxu0 0.0
      %1496 = vmatpush1.msra.mxu0 0.0
      %1497 = vmatprep.subr.mxu0 0.0
      %1498 = vmatpush1.msra.mxu0 0.0
      %1499 = vmatprep.subr.mxu0 0.0
      %1500 = vmatpush1.msra.mxu0 0.0
      %1501 = vmatprep.subr.mxu0 0.0
      %1502 = vmatpush1.msra.mxu0 0.0
      %1503 = vmatprep.subr.mxu0 0.0
      %1504 = vmatpush1.msra.mxu0 0.0
      %1505 = vmatprep.subr.mxu0 0.0
      %1506 = vmatpush1.msra.mxu0 0.0
      %1507 = vmatprep.subr.mxu0 0.0
      %1508 = vmatpush1.msra.mxu0 0.0
      %1509 = vmatprep.subr.mxu0 0.0
      %1510 = vmatpush1.msra.mxu0 0.0
      %1511 = vmatprep.subr.mxu0 0.0
      %1512 = vmatpush1.msra.mxu0 0.0
      %1513 = vmatprep.subr.mxu0 0.0
      %1514 = vmatpush1.msra.mxu0 0.0
      %1515 = vmatprep.subr.mxu0 0.0
      %1516 = vmatpush1.msra.mxu0 0.0
      %1517 = vmatprep.subr.mxu0 0.0
      %1518 = vmatpush1.msra.mxu0 0.0
      %1519 = vmatprep.subr.mxu0 0.0
      %1520 = vmatpush1.msra.mxu0 0.0
      %1521 = vmatprep.subr.mxu0 0.0
      %1522 = vmatpush1.msra.mxu0 0.0
      %1523 = vmatprep.subr.mxu0 0.0
      %1524 = vmatpush1.msra.mxu0 0.0
      %1525 = vmatprep.subr.mxu0 0.0
      %1526 = vmatpush1.msra.mxu0 0.0
      %1527 = vmatprep.subr.mxu0 0.0
      %1528 = vmatpush1.msra.mxu0 0.0
      %1529 = vmatprep.subr.mxu0 0.0
      %1530 = vmatpush1.msra.mxu0 0.0
      %1531 = vmatprep.subr.mxu0 0.0
      %1532 = vmatpush1.msra.mxu0 0.0
      %1533 = vmatprep.subr.mxu0 0.0
      %1534 = vmatpush1.msra.mxu0 0.0
      %1535 = vmatprep.subr.mxu0 0.0
      %1536 = vmatpush1.msra.mxu0 0.0
      %1537 = vmatprep.subr.mxu0 0.0
      %1538 = vmatpush1.msra.mxu0 0.0
      %1539 = vmatprep.subr.mxu0 0.0
      %1540 = vmatpush1.msra.mxu0 0.0
      %1541 = vmatprep.subr.mxu0 0.0
      %1542 = vmatpush1.msra.mxu0 0.0
      %1543 = vmatprep.subr.mxu0 0.0
      %1544 = vmatpush1.msra.mxu0 0.0
      %1545 = vmatprep.subr.mxu0 0.0
      %1546 = vmatpush1.msra.mxu0 0.0
      %1547 = vmatprep.subr.mxu0 0.0
      %1548 = vmatpush1.msra.mxu0 0.0
      %1549 = vmatprep.subr.mxu0 0.0
      %1550 = vmatpush1.msra.mxu0 0.0
      %1551 = vmatprep.subr.mxu0 0.0
      %1552 = vmatpush1.msra.mxu0 0.0
      %1553 = vmatprep.subr.mxu0 0.0
      %1554 = vmatpush1.msra.mxu0 0.0
      %1555 = vmatprep.mubr.f32.mxu0 0.0
      %1556 = vmatmul.mubr.f32.gmra.mrb[0].mxu0 %v1396
      %v1557 = vpop.f32.mrb[0].mxu0
      %v1558 = vadd.f32 0.0, %v1557
      %v1559 = vpop.f32.mrb[0].mxu0
      %1560 = vmatprep.mubr.f32.mxu0 0.0
      %1561 = vmatmul.mubr.f32.gmra.mrb[0].mxu0 %v1399
      %v1562 = vpop.f32.mrb[0].mxu0
      %v1563 = vadd.f32 0.0, %v1562
      %v1564 = vpop.f32.mrb[0].mxu0
      %1565 = vmatprep.mubr.f32.mxu0 0.0
      %1566 = vmatmul.mubr.f32.gmra.mrb[0].mxu0 %v1402
      %v1567 = vpop.f32.mrb[0].mxu0
      %v1568 = vadd.f32 0.0, %v1567
      %v1569 = vpop.f32.mrb[0].mxu0
      %1570 = vmatprep.mubr.f32.mxu0 0.0
      %1571 = vmatmul.mubr.f32.gmra.mrb[0].mxu0 %v1405
      %v1572 = vpop.f32.mrb[0].mxu0
      %v1573 = vadd.f32 0.0, %v1572
      %v1574 = vpop.f32.mrb[0].mxu0
      %1575 = vmatprep.mubr.f32.mxu0 0.0
      %1576 = vmatmul.mubr.f32.gmra.mrb[0].mxu0 %v1408
      %v1577 = vpop.f32.mrb[0].mxu0
      %v1578 = vadd.f32 0.0, %v1577
      %v1579 = vpop.f32.mrb[0].mxu0
      %1580 = vmatprep.mubr.f32.mxu0 0.0
      %1581 = vmatmul.mubr.f32.gmra.mrb[0].mxu0 %v1411
      %v1582 = vpop.f32.mrb[0].mxu0
      %v1583 = vadd.f32 0.0, %v1582
      %v1584 = vpop.f32.mrb[0].mxu0
      %1585 = vmatprep.mubr.f32.mxu0 0.0
      %1586 = vmatmul.mubr.f32.gmra.mrb[0].mxu0 %v1414
      %v1587 = vpop.f32.mrb[0].mxu0
      %v1588 = vadd.f32 0.0, %v1587
      %v1589 = vpop.f32.mrb[0].mxu0
      %1590 = vmatprep.mubr.f32.mxu0 0.0
      %1591 = vmatmul.mubr.f32.gmra.mrb[0].mxu0 %v1417
      %v1592 = vpop.f32.mrb[0].mxu0
      %v1593 = vadd.f32 0.0, %v1592
      %v1594 = vpop.f32.mrb[0].mxu0
      %1595 = vmatprep.mubr.f32.mxu0 0.0
      %1596 = vmatmul.mubr.f32.gmra.mrb[0].mxu0 %v1420
      %v1597 = vpop.f32.mrb[0].mxu0
      %v1598 = vadd.f32 0.0, %v1597
      %v1599 = vpop.f32.mrb[0].mxu0
      %1600 = vmatprep.mubr.f32.mxu0 0.0
      %1601 = vmatmul.mubr.f32.gmra.mrb[0].mxu0 %v1423
      %v1602 = vpop.f32.mrb[0].mxu0
      %v1603 = vadd.f32 0.0, %v1602
      %v1604 = vpop.f32.mrb[0].mxu0
      %1605 = vmatprep.mubr.f32.mxu0 0.0
      %1606 = vmatmul.mubr.f32.gmra.mrb[0].mxu0 %v1426
      %v1607 = vpop.f32.mrb[0].mxu0
      %v1608 = vadd.f32 0.0, %v1607
      %v1609 = vpop.f32.mrb[0].mxu0
      %1610 = vmatprep.mubr.f32.mxu0 0.0
      %1611 = vmatmul.mubr.f32.gmra.mrb[0].mxu0 %v1429
      %v1612 = vpop.f32.mrb[0].mxu0
      %v1613 = vadd.f32 0.0, %v1612
      %v1614 = vpop.f32.mrb[0].mxu0
      %1615 = vmatprep.mubr.f32.mxu0 0.0
      %1616 = vmatmul.mubr.f32.gmra.mrb[0].mxu0 %v1432
      %v1617 = vpop.f32.mrb[0].mxu0
      %v1618 = vadd.f32 0.0, %v1617
      %v1619 = vpop.f32.mrb[0].mxu0
      %1620 = vmatprep.mubr.f32.mxu0 0.0
      %1621 = vmatmul.mubr.f32.gmra.mrb[0].mxu0 %v1435
      %v1622 = vpop.f32.mrb[0].mxu0
      %v1623 = vadd.f32 0.0, %v1622
      %v1624 = vpop.f32.mrb[0].mxu0
      %1625 = vmatprep.mubr.f32.mxu0 0.0
      %1626 = vmatmul.mubr.f32.gmra.mrb[0].mxu0 %v1438
      %v1627 = vpop.f32.mrb[0].mxu0
      %v1628 = vadd.f32 0.0, %v1627
      %v1629 = vpop.f32.mrb[0].mxu0
      %1630 = vmatprep.mubr.f32.mxu0 0.0
      %1631 = vmatmul.mubr.f32.gmra.mrb[0].mxu0 %v1441
      %v1632 = vpop.f32.mrb[0].mxu0
      %v1633 = vadd.f32 0.0, %v1632
      %v1634 = vpop.f32.mrb[0].mxu0
      %1635 = vmatprep.mubr.f32.mxu0 0.0
      %1636 = vmatmul.mubr.f32.gmra.mrb[0].mxu0 %v1444
      %v1637 = vpop.f32.mrb[0].mxu0
      %v1638 = vadd.f32 0.0, %v1637
      %v1639 = vpop.f32.mrb[0].mxu0
      %1640 = vmatprep.mubr.f32.mxu0 0.0
      %1641 = vmatmul.mubr.f32.gmra.mrb[0].mxu0 %v1447
      %v1642 = vpop.f32.mrb[0].mxu0
      %v1643 = vadd.f32 0.0, %v1642
      %v1644 = vpop.f32.mrb[0].mxu0
      %1645 = vmatprep.mubr.f32.mxu0 0.0
      %1646 = vmatmul.mubr.f32.gmra.mrb[0].mxu0 %v1450
      %v1647 = vpop.f32.mrb[0].mxu0
      %v1648 = vadd.f32 0.0, %v1647
      %v1649 = vpop.f32.mrb[0].mxu0
      %1650 = vmatprep.mubr.f32.mxu0 0.0
      %1651 = vmatmul.mubr.f32.gmra.mrb[0].mxu0 %v1453
      %v1652 = vpop.f32.mrb[0].mxu0
      %v1653 = vadd.f32 0.0, %v1652
      %v1654 = vpop.f32.mrb[0].mxu0
      %1655 = vmatprep.mubr.f32.mxu0 0.0
      %1656 = vmatmul.mubr.f32.gmra.mrb[0].mxu0 %v1456
      %v1657 = vpop.f32.mrb[0].mxu0
      %v1658 = vadd.f32 0.0, %v1657
      %v1659 = vpop.f32.mrb[0].mxu0
      %1660 = vmatprep.mubr.f32.mxu0 0.0
      %1661 = vmatmul.mubr.f32.gmra.mrb[0].mxu0 %v1459
      %v1662 = vpop.f32.mrb[0].mxu0
      %v1663 = vadd.f32 0.0, %v1662
      %v1664 = vpop.f32.mrb[0].mxu0
      %1665 = vmatprep.mubr.f32.mxu0 0.0
      %1666 = vmatmul.mubr.f32.gmra.mrb[0].mxu0 %v1462
      %v1667 = vpop.f32.mrb[0].mxu0
      %v1668 = vadd.f32 0.0, %v1667
      %v1669 = vpop.f32.mrb[0].mxu0
      %1670 = vmatprep.mubr.f32.mxu0 0.0
      %1671 = vmatmul.mubr.f32.gmra.mrb[0].mxu0 %v1465
      %v1672 = vpop.f32.mrb[0].mxu0
      %v1673 = vadd.f32 0.0, %v1672
      %v1674 = vpop.f32.mrb[0].mxu0
      %1675 = vmatprep.mubr.f32.mxu0 0.0
      %1676 = vmatmul.mubr.f32.gmra.mrb[0].mxu0 %v1468
      %v1677 = vpop.f32.mrb[0].mxu0
      %v1678 = vadd.f32 0.0, %v1677
      %v1679 = vpop.f32.mrb[0].mxu0
      %1680 = vmatprep.mubr.f32.mxu0 0.0
      %1681 = vmatmul.mubr.f32.gmra.mrb[0].mxu0 %v1471
      %v1682 = vpop.f32.mrb[0].mxu0
      %v1683 = vadd.f32 0.0, %v1682
      %v1684 = vpop.f32.mrb[0].mxu0
      %1685 = vmatprep.mubr.f32.mxu0 0.0
      %1686 = vmatmul.mubr.f32.gmra.mrb[0].mxu0 %v1474
      %v1687 = vpop.f32.mrb[0].mxu0
      %v1688 = vadd.f32 0.0, %v1687
      %v1689 = vpop.f32.mrb[0].mxu0
      %1690 = vmatprep.mubr.f32.mxu0 0.0
      %1691 = vmatmul.mubr.f32.gmra.mrb[0].mxu0 %v1477
      %v1692 = vpop.f32.mrb[0].mxu0
      %v1693 = vadd.f32 0.0, %v1692
      %v1694 = vpop.f32.mrb[0].mxu0
      %1695 = vmatprep.mubr.f32.mxu0 0.0
      %1696 = vmatmul.mubr.f32.gmra.mrb[0].mxu0 %v1480
      %v1697 = vpop.f32.mrb[0].mxu0
      %v1698 = vadd.f32 0.0, %v1697
      %v1699 = vpop.f32.mrb[0].mxu0
      %1700 = vmatprep.mubr.f32.mxu0 0.0
      %1701 = vmatmul.mubr.f32.gmra.mrb[0].mxu0 %v1483
      %v1702 = vpop.f32.mrb[0].mxu0
      %v1703 = vadd.f32 0.0, %v1702
      %v1704 = vpop.f32.mrb[0].mxu0
      %1705 = vmatprep.mubr.f32.mxu0 0.0
      %1706 = vmatmul.mubr.f32.gmra.mrb[0].mxu0 %v1486
      %v1707 = vpop.f32.mrb[0].mxu0
      %v1708 = vadd.f32 0.0, %v1707
      %v1709 = vpop.f32.mrb[0].mxu0
      %1710 = vmatprep.mubr.f32.mxu0 0.0
      %1711 = vmatmul.mubr.f32.gmra.mrb[0].mxu0 %v1489
      %v1712 = vpop.f32.mrb[0].mxu0
      %v1713 = vadd.f32 0.0, %v1712
      %v1714 = vpop.f32.mrb[0].mxu0
      %1715 = vdwg.mxu0
      %v1717 = vsel %vm613, %v1326, 0
      %v1720 = vsel %vm613, %v1327, 0
      %v1723 = vsel %vm613, %v1328, 0
      %v1726 = vsel %vm613, %v1329, 0
      %v1729 = vsel %vm613, %v1330, 0
      %v1732 = vsel %vm613, %v1331, 0
      %v1735 = vsel %vm613, %v1332, 0
      %v1738 = vsel %vm613, %v1333, 0
      %v1741 = vsel %vm613, %v1334, 0
      %v1744 = vsel %vm613, %v1335, 0
      %v1747 = vsel %vm613, %v1336, 0
      %v1750 = vsel %vm613, %v1337, 0
      %v1753 = vsel %vm613, %v1338, 0
      %v1756 = vsel %vm613, %v1339, 0
      %v1759 = vsel %vm613, %v1340, 0
      %v1762 = vsel %vm613, %v1341, 0
      %v1765 = vsel %vm613, %v1342, 0
      %v1768 = vsel %vm613, %v1343, 0
      %v1771 = vsel %vm613, %v1344, 0
      %v1774 = vsel %vm613, %v1345, 0
      %v1777 = vsel %vm613, %v1346, 0
      %v1780 = vsel %vm613, %v1347, 0
      %v1783 = vsel %vm613, %v1348, 0
      %v1786 = vsel %vm613, %v1349, 0
      %v1789 = vsel %vm613, %v1350, 0
      %v1792 = vsel %vm613, %v1351, 0
      %v1795 = vsel %vm613, %v1352, 0
      %v1798 = vsel %vm613, %v1353, 0
      %v1801 = vsel %vm613, %v1354, 0
      %v1804 = vsel %vm613, %v1355, 0
      %v1807 = vsel %vm613, %v1356, 0
      %v1810 = vsel %vm613, %v1357, 0
      %1812 = vmatprep.subr.mxu0 0.0
      %1813 = vmatpush1.msra.mxu0 %v1359
      %1814 = vmatprep.subr.mxu0 0.0
      %1815 = vmatpush1.msra.mxu0 0.0
      %1816 = vmatprep.subr.mxu0 0.0
      %1817 = vmatpush1.msra.mxu0 0.0
      %1818 = vmatprep.subr.mxu0 0.0
      %1819 = vmatpush1.msra.mxu0 0.0
      %1820 = vmatprep.subr.mxu0 0.0
      %1821 = vmatpush1.msra.mxu0 0.0
      %1822 = vmatprep.subr.mxu0 0.0
      %1823 = vmatpush1.msra.mxu0 0.0
      %1824 = vmatprep.subr.mxu0 0.0
      %1825 = vmatpush1.msra.mxu0 0.0
      %1826 = vmatprep.subr.mxu0 0.0
      %1827 = vmatpush1.msra.mxu0 0.0
      %1828 = vmatprep.subr.mxu0 0.0
      %1829 = vmatpush1.msra.mxu0 0.0
      %1830 = vmatprep.subr.mxu0 0.0
      %1831 = vmatpush1.msra.mxu0 0.0
      %1832 = vmatprep.subr.mxu0 0.0
      %1833 = vmatpush1.msra.mxu0 0.0
      %1834 = vmatprep.subr.mxu0 0.0
      %1835 = vmatpush1.msra.mxu0 0.0
      %1836 = vmatprep.subr.mxu0 0.0
      %1837 = vmatpush1.msra.mxu0 0.0
      %1838 = vmatprep.subr.mxu0 0.0
      %1839 = vmatpush1.msra.mxu0 0.0
      %1840 = vmatprep.subr.mxu0 0.0
      %1841 = vmatpush1.msra.mxu0 0.0
      %1842 = vmatprep.subr.mxu0 0.0
      %1843 = vmatpush1.msra.mxu0 0.0
      %1844 = vmatprep.subr.mxu0 0.0
      %1845 = vmatpush1.msra.mxu0 0.0
      %1846 = vmatprep.subr.mxu0 0.0
      %1847 = vmatpush1.msra.mxu0 0.0
      %1848 = vmatprep.subr.mxu0 0.0
      %1849 = vmatpush1.msra.mxu0 0.0
      %1850 = vmatprep.subr.mxu0 0.0
      %1851 = vmatpush1.msra.mxu0 0.0
      %1852 = vmatprep.subr.mxu0 0.0
      %1853 = vmatpush1.msra.mxu0 0.0
      %1854 = vmatprep.subr.mxu0 0.0
      %1855 = vmatpush1.msra.mxu0 0.0
      %1856 = vmatprep.subr.mxu0 0.0
      %1857 = vmatpush1.msra.mxu0 0.0
      %1858 = vmatprep.subr.mxu0 0.0
      %1859 = vmatpush1.msra.mxu0 0.0
      %1860 = vmatprep.subr.mxu0 0.0
      %1861 = vmatpush1.msra.mxu0 0.0
      %1862 = vmatprep.subr.mxu0 0.0
      %1863 = vmatpush1.msra.mxu0 0.0
      %1864 = vmatprep.subr.mxu0 0.0
      %1865 = vmatpush1.msra.mxu0 0.0
      %1866 = vmatprep.subr.mxu0 0.0
      %1867 = vmatpush1.msra.mxu0 0.0
      %1868 = vmatprep.subr.mxu0 0.0
      %1869 = vmatpush1.msra.mxu0 0.0
      %1870 = vmatprep.subr.mxu0 0.0
      %1871 = vmatpush1.msra.mxu0 0.0
      %1872 = vmatprep.subr.mxu0 0.0
      %1873 = vmatpush1.msra.mxu0 0.0
      %1874 = vmatprep.subr.mxu0 0.0
      %1875 = vmatpush1.msra.mxu0 0.0
      %1876 = vmatprep.mubr.f32.mxu0 0.0
      %1877 = vmatmul.mubr.f32.gmra.mrb[0].mxu0 %v1717
      %v1878 = vpop.f32.mrb[0].mxu0
      %v1879 = vadd.f32 %v1558, %v1878
      %v1880 = vpop.f32.mrb[0].mxu0
      %1881 = vmatprep.mubr.f32.mxu0 0.0
      %1882 = vmatmul.mubr.f32.gmra.mrb[0].mxu0 %v1720
      %v1883 = vpop.f32.mrb[0].mxu0
      %v1884 = vadd.f32 %v1563, %v1883
      %v1885 = vpop.f32.mrb[0].mxu0
      %1886 = vmatprep.mubr.f32.mxu0 0.0
      %1887 = vmatmul.mubr.f32.gmra.mrb[0].mxu0 %v1723
      %v1888 = vpop.f32.mrb[0].mxu0
      %v1889 = vadd.f32 %v1568, %v1888
      %v1890 = vpop.f32.mrb[0].mxu0
      %1891 = vmatprep.mubr.f32.mxu0 0.0
      %1892 = vmatmul.mubr.f32.gmra.mrb[0].mxu0 %v1726
      %v1893 = vpop.f32.mrb[0].mxu0
      %v1894 = vadd.f32 %v1573, %v1893
      %v1895 = vpop.f32.mrb[0].mxu0
      %1896 = vmatprep.mubr.f32.mxu0 0.0
      %1897 = vmatmul.mubr.f32.gmra.mrb[0].mxu0 %v1729
      %v1898 = vpop.f32.mrb[0].mxu0
      %v1899 = vadd.f32 %v1578, %v1898
      %v1900 = vpop.f32.mrb[0].mxu0
      %1901 = vmatprep.mubr.f32.mxu0 0.0
      %1902 = vmatmul.mubr.f32.gmra.mrb[0].mxu0 %v1732
      %v1903 = vpop.f32.mrb[0].mxu0
      %v1904 = vadd.f32 %v1583, %v1903
      %v1905 = vpop.f32.mrb[0].mxu0
      %1906 = vmatprep.mubr.f32.mxu0 0.0
      %1907 = vmatmul.mubr.f32.gmra.mrb[0].mxu0 %v1735
      %v1908 = vpop.f32.mrb[0].mxu0
      %v1909 = vadd.f32 %v1588, %v1908
      %v1910 = vpop.f32.mrb[0].mxu0
      %1911 = vmatprep.mubr.f32.mxu0 0.0
      %1912 = vmatmul.mubr.f32.gmra.mrb[0].mxu0 %v1738
      %v1913 = vpop.f32.mrb[0].mxu0
      %v1914 = vadd.f32 %v1593, %v1913
      %v1915 = vpop.f32.mrb[0].mxu0
      %1916 = vmatprep.mubr.f32.mxu0 0.0
      %1917 = vmatmul.mubr.f32.gmra.mrb[0].mxu0 %v1741
      %v1918 = vpop.f32.mrb[0].mxu0
      %v1919 = vadd.f32 %v1598, %v1918
      %v1920 = vpop.f32.mrb[0].mxu0
      %1921 = vmatprep.mubr.f32.mxu0 0.0
      %1922 = vmatmul.mubr.f32.gmra.mrb[0].mxu0 %v1744
      %v1923 = vpop.f32.mrb[0].mxu0
      %v1924 = vadd.f32 %v1603, %v1923
      %v1925 = vpop.f32.mrb[0].mxu0
      %1926 = vmatprep.mubr.f32.mxu0 0.0
      %1927 = vmatmul.mubr.f32.gmra.mrb[0].mxu0 %v1747
      %v1928 = vpop.f32.mrb[0].mxu0
      %v1929 = vadd.f32 %v1608, %v1928
      %v1930 = vpop.f32.mrb[0].mxu0
      %1931 = vmatprep.mubr.f32.mxu0 0.0
      %1932 = vmatmul.mubr.f32.gmra.mrb[0].mxu0 %v1750
      %v1933 = vpop.f32.mrb[0].mxu0
      %v1934 = vadd.f32 %v1613, %v1933
      %v1935 = vpop.f32.mrb[0].mxu0
      %1936 = vmatprep.mubr.f32.mxu0 0.0
      %1937 = vmatmul.mubr.f32.gmra.mrb[0].mxu0 %v1753
      %v1938 = vpop.f32.mrb[0].mxu0
      %v1939 = vadd.f32 %v1618, %v1938
      %v1940 = vpop.f32.mrb[0].mxu0
      %1941 = vmatprep.mubr.f32.mxu0 0.0
      %1942 = vmatmul.mubr.f32.gmra.mrb[0].mxu0 %v1756
      %v1943 = vpop.f32.mrb[0].mxu0
      %v1944 = vadd.f32 %v1623, %v1943
      %v1945 = vpop.f32.mrb[0].mxu0
      %1946 = vmatprep.mubr.f32.mxu0 0.0
      %1947 = vmatmul.mubr.f32.gmra.mrb[0].mxu0 %v1759
      %v1948 = vpop.f32.mrb[0].mxu0
      %v1949 = vadd.f32 %v1628, %v1948
      %v1950 = vpop.f32.mrb[0].mxu0
      %1951 = vmatprep.mubr.f32.mxu0 0.0
      %1952 = vmatmul.mubr.f32.gmra.mrb[0].mxu0 %v1762
      %v1953 = vpop.f32.mrb[0].mxu0
      %v1954 = vadd.f32 %v1633, %v1953
      %v1955 = vpop.f32.mrb[0].mxu0
      %1956 = vmatprep.mubr.f32.mxu0 0.0
      %1957 = vmatmul.mubr.f32.gmra.mrb[0].mxu0 %v1765
      %v1958 = vpop.f32.mrb[0].mxu0
      %v1959 = vadd.f32 %v1638, %v1958
      %v1960 = vpop.f32.mrb[0].mxu0
      %1961 = vmatprep.mubr.f32.mxu0 0.0
      %1962 = vmatmul.mubr.f32.gmra.mrb[0].mxu0 %v1768
      %v1963 = vpop.f32.mrb[0].mxu0
      %v1964 = vadd.f32 %v1643, %v1963
      %v1965 = vpop.f32.mrb[0].mxu0
      %1966 = vmatprep.mubr.f32.mxu0 0.0
      %1967 = vmatmul.mubr.f32.gmra.mrb[0].mxu0 %v1771
      %v1968 = vpop.f32.mrb[0].mxu0
      %v1969 = vadd.f32 %v1648, %v1968
      %v1970 = vpop.f32.mrb[0].mxu0
      %1971 = vmatprep.mubr.f32.mxu0 0.0
      %1972 = vmatmul.mubr.f32.gmra.mrb[0].mxu0 %v1774
      %v1973 = vpop.f32.mrb[0].mxu0
      %v1974 = vadd.f32 %v1653, %v1973
      %v1975 = vpop.f32.mrb[0].mxu0
      %1976 = vmatprep.mubr.f32.mxu0 0.0
      %1977 = vmatmul.mubr.f32.gmra.mrb[0].mxu0 %v1777
      %v1978 = vpop.f32.mrb[0].mxu0
      %v1979 = vadd.f32 %v1658, %v1978
      %v1980 = vpop.f32.mrb[0].mxu0
      %1981 = vmatprep.mubr.f32.mxu0 0.0
      %1982 = vmatmul.mubr.f32.gmra.mrb[0].mxu0 %v1780
      %v1983 = vpop.f32.mrb[0].mxu0
      %v1984 = vadd.f32 %v1663, %v1983
      %v1985 = vpop.f32.mrb[0].mxu0
      %1986 = vmatprep.mubr.f32.mxu0 0.0
      %1987 = vmatmul.mubr.f32.gmra.mrb[0].mxu0 %v1783
      %v1988 = vpop.f32.mrb[0].mxu0
      %v1989 = vadd.f32 %v1668, %v1988
      %v1990 = vpop.f32.mrb[0].mxu0
      %1991 = vmatprep.mubr.f32.mxu0 0.0
      %1992 = vmatmul.mubr.f32.gmra.mrb[0].mxu0 %v1786
      %v1993 = vpop.f32.mrb[0].mxu0
      %v1994 = vadd.f32 %v1673, %v1993
      %v1995 = vpop.f32.mrb[0].mxu0
      %1996 = vmatprep.mubr.f32.mxu0 0.0
      %1997 = vmatmul.mubr.f32.gmra.mrb[0].mxu0 %v1789
      %v1998 = vpop.f32.mrb[0].mxu0
      %v1999 = vadd.f32 %v1678, %v1998
      %v2000 = vpop.f32.mrb[0].mxu0
      %2001 = vmatprep.mubr.f32.mxu0 0.0
      %2002 = vmatmul.mubr.f32.gmra.mrb[0].mxu0 %v1792
      %v2003 = vpop.f32.mrb[0].mxu0
      %v2004 = vadd.f32 %v1683, %v2003
      %v2005 = vpop.f32.mrb[0].mxu0
      %2006 = vmatprep.mubr.f32.mxu0 0.0
      %2007 = vmatmul.mubr.f32.gmra.mrb[0].mxu0 %v1795
      %v2008 = vpop.f32.mrb[0].mxu0
      %v2009 = vadd.f32 %v1688, %v2008
      %v2010 = vpop.f32.mrb[0].mxu0
      %2011 = vmatprep.mubr.f32.mxu0 0.0
      %2012 = vmatmul.mubr.f32.gmra.mrb[0].mxu0 %v1798
      %v2013 = vpop.f32.mrb[0].mxu0
      %v2014 = vadd.f32 %v1693, %v2013
      %v2015 = vpop.f32.mrb[0].mxu0
      %2016 = vmatprep.mubr.f32.mxu0 0.0
      %2017 = vmatmul.mubr.f32.gmra.mrb[0].mxu0 %v1801
      %v2018 = vpop.f32.mrb[0].mxu0
      %v2019 = vadd.f32 %v1698, %v2018
      %v2020 = vpop.f32.mrb[0].mxu0
      %2021 = vmatprep.mubr.f32.mxu0 0.0
      %2022 = vmatmul.mubr.f32.gmra.mrb[0].mxu0 %v1804
      %v2023 = vpop.f32.mrb[0].mxu0
      %v2024 = vadd.f32 %v1703, %v2023
      %v2025 = vpop.f32.mrb[0].mxu0
      %2026 = vmatprep.mubr.f32.mxu0 0.0
      %2027 = vmatmul.mubr.f32.gmra.mrb[0].mxu0 %v1807
      %v2028 = vpop.f32.mrb[0].mxu0
      %v2029 = vadd.f32 %v1708, %v2028
      %v2030 = vpop.f32.mrb[0].mxu0
      %2031 = vmatprep.mubr.f32.mxu0 0.0
      %2032 = vmatmul.mubr.f32.gmra.mrb[0].mxu0 %v1810
      %v2033 = vpop.f32.mrb[0].mxu0
      %v2034 = vadd.f32 %v1713, %v2033
      %v2035 = vpop.f32.mrb[0].mxu0
      %2036 = vdwg.mxu0
      %v2037 = vadd.f32 %v1879, %v1260
      %v2038 = vadd.f32 %v1884, %v1260
      %v2039 = vadd.f32 %v1889, %v1260
      %v2040 = vadd.f32 %v1894, %v1260
      %v2041 = vadd.f32 %v1899, %v1260
      %v2042 = vadd.f32 %v1904, %v1260
      %v2043 = vadd.f32 %v1909, %v1260
      %v2044 = vadd.f32 %v1914, %v1260
      %v2045 = vadd.f32 %v1919, %v1260
      %v2046 = vadd.f32 %v1924, %v1260
      %v2047 = vadd.f32 %v1929, %v1260
      %v2048 = vadd.f32 %v1934, %v1260
      %v2049 = vadd.f32 %v1939, %v1260
      %v2050 = vadd.f32 %v1944, %v1260
      %v2051 = vadd.f32 %v1949, %v1260
      %v2052 = vadd.f32 %v1954, %v1260
      %v2053 = vadd.f32 %v1959, %v1260
      %v2054 = vadd.f32 %v1964, %v1260
      %v2055 = vadd.f32 %v1969, %v1260
      %v2056 = vadd.f32 %v1974, %v1260
      %v2057 = vadd.f32 %v1979, %v1260
      %v2058 = vadd.f32 %v1984, %v1260
      %v2059 = vadd.f32 %v1989, %v1260
      %v2060 = vadd.f32 %v1994, %v1260
      %v2061 = vadd.f32 %v1999, %v1260
      %v2062 = vadd.f32 %v2004, %v1260
      %v2063 = vadd.f32 %v2009, %v1260
      %v2064 = vadd.f32 %v2014, %v1260
      %v2065 = vadd.f32 %v2019, %v1260
      %v2066 = vadd.f32 %v2024, %v1260
      %v2067 = vadd.f32 %v2029, %v1260
      %v2068 = vadd.f32 %v2034, %v1260
      %s2069 = scalar_lea.vmem %s252, 512
      %2070 = vst.msk [vmem:[%s2069] sm:$0xff] %vm291, %v2037
      %2071 = vst.msk [vmem:[%s2069 + $0x8] sm:$0xff] %vm291, %v2038
      %2072 = vst.msk [vmem:[%s2069 + $0x10] sm:$0xff] %vm291, %v2039
      %2073 = vst.msk [vmem:[%s2069 + $0x18] sm:$0xff] %vm291, %v2040
      %2074 = vst.msk [vmem:[%s2069 + $0x20] sm:$0xff] %vm291, %v2041
      %2075 = vst.msk [vmem:[%s2069 + $0x28] sm:$0xff] %vm291, %v2042
      %2076 = vst.msk [vmem:[%s2069 + $0x30] sm:$0xff] %vm291, %v2043
      %2077 = vst.msk [vmem:[%s2069 + $0x38] sm:$0xff] %vm291, %v2044
      %2078 = vst.msk [vmem:[%s2069 + $0x40] sm:$0xff] %vm291, %v2045
      %2079 = vst.msk [vmem:[%s2069 + $0x48] sm:$0xff] %vm291, %v2046
      %2080 = vst.msk [vmem:[%s2069 + $0x50] sm:$0xff] %vm291, %v2047
      %2081 = vst.msk [vmem:[%s2069 + $0x58] sm:$0xff] %vm291, %v2048
      %2082 = vst.msk [vmem:[%s2069 + $0x60] sm:$0xff] %vm291, %v2049
      %2083 = vst.msk [vmem:[%s2069 + $0x68] sm:$0xff] %vm291, %v2050
      %2084 = vst.msk [vmem:[%s2069 + $0x70] sm:$0xff] %vm291, %v2051
      %2085 = vst.msk [vmem:[%s2069 + $0x78] sm:$0xff] %vm291, %v2052
      %2086 = vst.msk [vmem:[%s2069 + $0x80] sm:$0xff] %vm291, %v2053
      %2087 = vst.msk [vmem:[%s2069 + $0x88] sm:$0xff] %vm291, %v2054
      %2088 = vst.msk [vmem:[%s2069 + $0x90] sm:$0xff] %vm291, %v2055
      %2089 = vst.msk [vmem:[%s2069 + $0x98] sm:$0xff] %vm291, %v2056
      %2090 = vst.msk [vmem:[%s2069 + $0xa0] sm:$0xff] %vm291, %v2057
      %2091 = vst.msk [vmem:[%s2069 + $0xa8] sm:$0xff] %vm291, %v2058
      %2092 = vst.msk [vmem:[%s2069 + $0xb0] sm:$0xff] %vm291, %v2059
      %2093 = vst.msk [vmem:[%s2069 + $0xb8] sm:$0xff] %vm291, %v2060
      %2094 = vst.msk [vmem:[%s2069 + $0xc0] sm:$0xff] %vm291, %v2061
      %2095 = vst.msk [vmem:[%s2069 + $0xc8] sm:$0xff] %vm291, %v2062
      %2096 = vst.msk [vmem:[%s2069 + $0xd0] sm:$0xff] %vm291, %v2063
      %2097 = vst.msk [vmem:[%s2069 + $0xd8] sm:$0xff] %vm291, %v2064
      %2098 = vst.msk [vmem:[%s2069 + $0xe0] sm:$0xff] %vm291, %v2065
      %2099 = vst.msk [vmem:[%s2069 + $0xe8] sm:$0xff] %vm291, %v2066
      %2100 = vst.msk [vmem:[%s2069 + $0xf0] sm:$0xff] %vm291, %v2067
      %2101 = vst.msk [vmem:[%s2069 + $0xf8] sm:$0xff] %vm291, %v2068
      %v2102 = vld [vmem:[%s233 + $0x1] sm:$0xff]
      %v2103 = vld [vmem:[%s233 + $0x9] sm:$0xff]
      %v2104 = vld [vmem:[%s233 + $0x19] sm:$0xff]
      %v2105 = vld [vmem:[%s233 + $0x21] sm:$0xff]
      %v2106 = vld [vmem:[%s233 + $0x31] sm:$0xff]
      %v2107 = vld [vmem:[%s233 + $0x39] sm:$0xff]
      %v2108 = vld [vmem:[%s233 + $0x49] sm:$0xff]
      %v2109 = vld [vmem:[%s233 + $0x51] sm:$0xff]
      %v2110 = vld [vmem:[%s233 + $0x61] sm:$0xff]
      %v2111 = vld [vmem:[%s233 + $0x69] sm:$0xff]
      %v2112 = vld [vmem:[%s233 + $0x79] sm:$0xff]
      %v2113 = vld [vmem:[%s233 + $0x81] sm:$0xff]
      %v2114 = vld [vmem:[%s233 + $0x91] sm:$0xff]
      %v2115 = vld [vmem:[%s233 + $0x99] sm:$0xff]
      %v2116 = vld [vmem:[%s233 + $0xa9] sm:$0xff]
      %v2117 = vld [vmem:[%s233 + $0xb1] sm:$0xff]
      %v2118 = vld [vmem:[%s233 + $0xc1] sm:$0xff]
      %v2119 = vld [vmem:[%s233 + $0xc9] sm:$0xff]
      %v2120 = vld [vmem:[%s233 + $0xd9] sm:$0xff]
      %v2121 = vld [vmem:[%s233 + $0xe1] sm:$0xff]
      %v2122 = vld [vmem:[%s233 + $0xf1] sm:$0xff]
      %v2123 = vld [vmem:[%s233 + $0xf9] sm:$0xff]
      %v2124 = vld [vmem:[%s233 + $0x109] sm:$0xff]
      %v2125 = vld [vmem:[%s233 + $0x111] sm:$0xff]
      %v2126 = vld [vmem:[%s233 + $0x121] sm:$0xff]
      %v2127 = vld [vmem:[%s233 + $0x129] sm:$0xff]
      %v2128 = vld [vmem:[%s233 + $0x139] sm:$0xff]
      %v2129 = vld [vmem:[%s233 + $0x141] sm:$0xff]
      %v2130 = vld [vmem:[%s233 + $0x151] sm:$0xff]
      %v2131 = vld [vmem:[%s233 + $0x159] sm:$0xff]
      %v2132 = vld [vmem:[%s233 + $0x169] sm:$0xff]
      %v2133 = vld [vmem:[%s233 + $0x171] sm:$0xff]
      %v2134 = vld [vmem:[%s233 + $0x181] sm:$0xff]
      %v2135 = vld [vmem:[%s233 + $0x189] sm:$0xff]
      %v2136 = vld [vmem:[%s233 + $0x199] sm:$0xff]
      %v2137 = vld [vmem:[%s233 + $0x1a1] sm:$0xff]
      %2138 = vst.msk [vmem:[#allocation2] sm:$0xff] %vm291, %v2102
      %2139 = vst.msk [vmem:[#allocation2 + $0x8] sm:$0xff] %vm291, %v2103
      %2140 = vst.msk [vmem:[#allocation2 + $0x10] sm:$0xff] %vm291, %v2104
      %2141 = vst.msk [vmem:[#allocation2 + $0x18] sm:$0xff] %vm291, %v2105
      %2142 = vst.msk [vmem:[#allocation2 + $0x20] sm:$0xff] %vm291, %v2106
      %2143 = vst.msk [vmem:[#allocation2 + $0x28] sm:$0xff] %vm291, %v2107
      %2144 = vst.msk [vmem:[#allocation2 + $0x30] sm:$0xff] %vm291, %v2108
      %2145 = vst.msk [vmem:[#allocation2 + $0x38] sm:$0xff] %vm291, %v2109
      %2146 = vst.msk [vmem:[#allocation2 + $0x40] sm:$0xff] %vm291, %v2110
      %2147 = vst.msk [vmem:[#allocation2 + $0x48] sm:$0xff] %vm291, %v2111
      %2148 = vst.msk [vmem:[#allocation2 + $0x50] sm:$0xff] %vm291, %v2112
      %2149 = vst.msk [vmem:[#allocation2 + $0x58] sm:$0xff] %vm291, %v2113
      %2150 = vst.msk [vmem:[#allocation2 + $0x60] sm:$0xff] %vm291, %v2114
      %2151 = vst.msk [vmem:[#allocation2 + $0x68] sm:$0xff] %vm291, %v2115
      %2152 = vst.msk [vmem:[#allocation2 + $0x70] sm:$0xff] %vm291, %v2116
      %2153 = vst.msk [vmem:[#allocation2 + $0x78] sm:$0xff] %vm291, %v2117
      %2154 = vst.msk [vmem:[#allocation2 + $0x80] sm:$0xff] %vm291, %v2118
      %2155 = vst.msk [vmem:[#allocation2 + $0x88] sm:$0xff] %vm291, %v2119
      %2156 = vst.msk [vmem:[#allocation2 + $0x90] sm:$0xff] %vm291, %v2120
      %2157 = vst.msk [vmem:[#allocation2 + $0x98] sm:$0xff] %vm291, %v2121
      %2158 = vst.msk [vmem:[#allocation2 + $0xa0] sm:$0xff] %vm291, %v2122
      %2159 = vst.msk [vmem:[#allocation2 + $0xa8] sm:$0xff] %vm291, %v2123
      %2160 = vst.msk [vmem:[#allocation2 + $0xb0] sm:$0xff] %vm291, %v2124
      %2161 = vst.msk [vmem:[#allocation2 + $0xb8] sm:$0xff] %vm291, %v2125
      %2162 = vst.msk [vmem:[#allocation2 + $0xc0] sm:$0xff] %vm291, %v2126
      %2163 = vst.msk [vmem:[#allocation2 + $0xc8] sm:$0xff] %vm291, %v2127
      %2164 = vst.msk [vmem:[#allocation2 + $0xd0] sm:$0xff] %vm291, %v2128
      %2165 = vst.msk [vmem:[#allocation2 + $0xd8] sm:$0xff] %vm291, %v2129
      %2166 = vst.msk [vmem:[#allocation2 + $0xe0] sm:$0xff] %vm291, %v2130
      %2167 = vst.msk [vmem:[#allocation2 + $0xe8] sm:$0xff] %vm291, %v2131
      %2168 = vst.msk [vmem:[#allocation2 + $0xf0] sm:$0xff] %vm291, %v2132
      %2169 = vst.msk [vmem:[#allocation2 + $0xf8] sm:$0xff] %vm291, %v2133
      %2170 = vst.msk [vmem:[#allocation2 + $0x100] sm:$0xff] %vm291, %v2134
      %2171 = vst.msk [vmem:[#allocation2 + $0x108] sm:$0xff] %vm291, %v2135
      %2172 = vst.msk [vmem:[#allocation2 + $0x110] sm:$0xff] %vm291, %v2136
      %2173 = vst.msk [vmem:[#allocation2 + $0x118] sm:$0xff] %vm291, %v2137
      %v2174 = vld [vmem:[%s233 + $0x2] sm:$0xff]
      %v2175 = vld [vmem:[%s233 + $0xa] sm:$0xff]
      %v2176 = vld [vmem:[%s233 + $0x1a] sm:$0xff]
      %v2177 = vld [vmem:[%s233 + $0x22] sm:$0xff]
      %v2178 = vld [vmem:[%s233 + $0x32] sm:$0xff]
      %v2179 = vld [vmem:[%s233 + $0x3a] sm:$0xff]
      %v2180 = vld [vmem:[%s233 + $0x4a] sm:$0xff]
      %v2181 = vld [vmem:[%s233 + $0x52] sm:$0xff]
      %v2182 = vld [vmem:[%s233 + $0x62] sm:$0xff]
      %v2183 = vld [vmem:[%s233 + $0x6a] sm:$0xff]
      %v2184 = vld [vmem:[%s233 + $0x7a] sm:$0xff]
      %v2185 = vld [vmem:[%s233 + $0x82] sm:$0xff]
      %v2186 = vld [vmem:[%s233 + $0x92] sm:$0xff]
      %v2187 = vld [vmem:[%s233 + $0x9a] sm:$0xff]
      %v2188 = vld [vmem:[%s233 + $0xaa] sm:$0xff]
      %v2189 = vld [vmem:[%s233 + $0xb2] sm:$0xff]
      %v2190 = vld [vmem:[%s233 + $0xc2] sm:$0xff]
      %v2191 = vld [vmem:[%s233 + $0xca] sm:$0xff]
      %v2192 = vld [vmem:[%s233 + $0xda] sm:$0xff]
      %v2193 = vld [vmem:[%s233 + $0xe2] sm:$0xff]
      %v2194 = vld [vmem:[%s233 + $0xf2] sm:$0xff]
      %v2195 = vld [vmem:[%s233 + $0xfa] sm:$0xff]
      %v2196 = vld [vmem:[%s233 + $0x10a] sm:$0xff]
      %v2197 = vld [vmem:[%s233 + $0x112] sm:$0xff]
      %v2198 = vld [vmem:[%s233 + $0x122] sm:$0xff]
      %v2199 = vld [vmem:[%s233 + $0x12a] sm:$0xff]
      %v2200 = vld [vmem:[%s233 + $0x13a] sm:$0xff]
      %v2201 = vld [vmem:[%s233 + $0x142] sm:$0xff]
      %v2202 = vld [vmem:[%s233 + $0x152] sm:$0xff]
      %v2203 = vld [vmem:[%s233 + $0x15a] sm:$0xff]
      %v2204 = vld [vmem:[%s233 + $0x16a] sm:$0xff]
      %v2205 = vld [vmem:[%s233 + $0x172] sm:$0xff]
      %v2206 = vld [vmem:[%s233 + $0x182] sm:$0xff]
      %v2207 = vld [vmem:[%s233 + $0x18a] sm:$0xff]
      %v2208 = vld [vmem:[%s233 + $0x19a] sm:$0xff]
      %v2209 = vld [vmem:[%s233 + $0x1a2] sm:$0xff]
      %2246 = vrot.lane.b32.xlu0 %v2174, 4
      %v2247 = vpop.permute.xlu0 %2246
      %2248 = vrot.lane.b32.xlu0 %v2175, 4
      %v2249 = vpop.permute.xlu0 %2248
      %2250 = vrot.lane.b32.xlu0 %v2176, 4
      %v2251 = vpop.permute.xlu0 %2250
      %2252 = vrot.lane.b32.xlu0 %v2177, 4
      %v2253 = vpop.permute.xlu0 %2252
      %2254 = vrot.lane.b32.xlu0 %v2178, 4
      %v2255 = vpop.permute.xlu0 %2254
      %2256 = vrot.lane.b32.xlu0 %v2179, 4
      %v2257 = vpop.permute.xlu0 %2256
      %2258 = vrot.lane.b32.xlu0 %v2180, 4
      %v2259 = vpop.permute.xlu0 %2258
      %2260 = vrot.lane.b32.xlu0 %v2181, 4
      %v2261 = vpop.permute.xlu0 %2260
      %2262 = vrot.lane.b32.xlu0 %v2182, 4
      %v2263 = vpop.permute.xlu0 %2262
      %2264 = vrot.lane.b32.xlu0 %v2183, 4
      %v2265 = vpop.permute.xlu0 %2264
      %2266 = vrot.lane.b32.xlu0 %v2184, 4
      %v2267 = vpop.permute.xlu0 %2266
      %2268 = vrot.lane.b32.xlu0 %v2185, 4
      %v2269 = vpop.permute.xlu0 %2268
      %2270 = vrot.lane.b32.xlu0 %v2186, 4
      %v2271 = vpop.permute.xlu0 %2270
      %2272 = vrot.lane.b32.xlu0 %v2187, 4
      %v2273 = vpop.permute.xlu0 %2272
      %2274 = vrot.lane.b32.xlu0 %v2188, 4
      %v2275 = vpop.permute.xlu0 %2274
      %2276 = vrot.lane.b32.xlu0 %v2189, 4
      %v2277 = vpop.permute.xlu0 %2276
      %2278 = vrot.lane.b32.xlu0 %v2190, 4
      %v2279 = vpop.permute.xlu0 %2278
      %2280 = vrot.lane.b32.xlu0 %v2191, 4
      %v2281 = vpop.permute.xlu0 %2280
      %2282 = vrot.lane.b32.xlu0 %v2192, 4
      %v2283 = vpop.permute.xlu0 %2282
      %2284 = vrot.lane.b32.xlu0 %v2193, 4
      %v2285 = vpop.permute.xlu0 %2284
      %2286 = vrot.lane.b32.xlu0 %v2194, 4
      %v2287 = vpop.permute.xlu0 %2286
      %2288 = vrot.lane.b32.xlu0 %v2195, 4
      %v2289 = vpop.permute.xlu0 %2288
      %2290 = vrot.lane.b32.xlu0 %v2196, 4
      %v2291 = vpop.permute.xlu0 %2290
      %2292 = vrot.lane.b32.xlu0 %v2197, 4
      %v2293 = vpop.permute.xlu0 %2292
      %2294 = vrot.lane.b32.xlu0 %v2198, 4
      %v2295 = vpop.permute.xlu0 %2294
      %2296 = vrot.lane.b32.xlu0 %v2199, 4
      %v2297 = vpop.permute.xlu0 %2296
      %2298 = vrot.lane.b32.xlu0 %v2200, 4
      %v2299 = vpop.permute.xlu0 %2298
      %2300 = vrot.lane.b32.xlu0 %v2201, 4
      %v2301 = vpop.permute.xlu0 %2300
      %2302 = vrot.lane.b32.xlu0 %v2202, 4
      %v2303 = vpop.permute.xlu0 %2302
      %2304 = vrot.lane.b32.xlu0 %v2203, 4
      %v2305 = vpop.permute.xlu0 %2304
      %2306 = vrot.lane.b32.xlu0 %v2204, 4
      %v2307 = vpop.permute.xlu0 %2306
      %2308 = vrot.lane.b32.xlu0 %v2205, 4
      %v2309 = vpop.permute.xlu0 %2308
      %2310 = vrot.lane.b32.xlu0 %v2206, 4
      %v2311 = vpop.permute.xlu0 %2310
      %2312 = vrot.lane.b32.xlu0 %v2207, 4
      %v2313 = vpop.permute.xlu0 %2312
      %2314 = vrot.lane.b32.xlu0 %v2208, 4
      %v2315 = vpop.permute.xlu0 %2314
      %2316 = vrot.lane.b32.xlu0 %v2209, 4
      %v2317 = vpop.permute.xlu0 %2316
      %2354 = vst.msk [vmem:[#allocation2] sm:$0xff] %vm508, %v2247
      %2355 = vst.msk [vmem:[#allocation2 + $0x8] sm:$0xff] %vm508, %v2249
      %2356 = vst.msk [vmem:[#allocation2 + $0x10] sm:$0xff] %vm508, %v2251
      %2357 = vst.msk [vmem:[#allocation2 + $0x18] sm:$0xff] %vm508, %v2253
      %2358 = vst.msk [vmem:[#allocation2 + $0x20] sm:$0xff] %vm508, %v2255
      %2359 = vst.msk [vmem:[#allocation2 + $0x28] sm:$0xff] %vm508, %v2257
      %2360 = vst.msk [vmem:[#allocation2 + $0x30] sm:$0xff] %vm508, %v2259
      %2361 = vst.msk [vmem:[#allocation2 + $0x38] sm:$0xff] %vm508, %v2261
      %2362 = vst.msk [vmem:[#allocation2 + $0x40] sm:$0xff] %vm508, %v2263
      %2363 = vst.msk [vmem:[#allocation2 + $0x48] sm:$0xff] %vm508, %v2265
      %2364 = vst.msk [vmem:[#allocation2 + $0x50] sm:$0xff] %vm508, %v2267
      %2365 = vst.msk [vmem:[#allocation2 + $0x58] sm:$0xff] %vm508, %v2269
      %2366 = vst.msk [vmem:[#allocation2 + $0x60] sm:$0xff] %vm508, %v2271
      %2367 = vst.msk [vmem:[#allocation2 + $0x68] sm:$0xff] %vm508, %v2273
      %2368 = vst.msk [vmem:[#allocation2 + $0x70] sm:$0xff] %vm508, %v2275
      %2369 = vst.msk [vmem:[#allocation2 + $0x78] sm:$0xff] %vm508, %v2277
      %2370 = vst.msk [vmem:[#allocation2 + $0x80] sm:$0xff] %vm508, %v2279
      %2371 = vst.msk [vmem:[#allocation2 + $0x88] sm:$0xff] %vm508, %v2281
      %2372 = vst.msk [vmem:[#allocation2 + $0x90] sm:$0xff] %vm508, %v2283
      %2373 = vst.msk [vmem:[#allocation2 + $0x98] sm:$0xff] %vm508, %v2285
      %2374 = vst.msk [vmem:[#allocation2 + $0xa0] sm:$0xff] %vm508, %v2287
      %2375 = vst.msk [vmem:[#allocation2 + $0xa8] sm:$0xff] %vm508, %v2289
      %2376 = vst.msk [vmem:[#allocation2 + $0xb0] sm:$0xff] %vm508, %v2291
      %2377 = vst.msk [vmem:[#allocation2 + $0xb8] sm:$0xff] %vm508, %v2293
      %2378 = vst.msk [vmem:[#allocation2 + $0xc0] sm:$0xff] %vm508, %v2295
      %2379 = vst.msk [vmem:[#allocation2 + $0xc8] sm:$0xff] %vm508, %v2297
      %2380 = vst.msk [vmem:[#allocation2 + $0xd0] sm:$0xff] %vm508, %v2299
      %2381 = vst.msk [vmem:[#allocation2 + $0xd8] sm:$0xff] %vm508, %v2301
      %2382 = vst.msk [vmem:[#allocation2 + $0xe0] sm:$0xff] %vm508, %v2303
      %2383 = vst.msk [vmem:[#allocation2 + $0xe8] sm:$0xff] %vm508, %v2305
      %2384 = vst.msk [vmem:[#allocation2 + $0xf0] sm:$0xff] %vm508, %v2307
      %2385 = vst.msk [vmem:[#allocation2 + $0xf8] sm:$0xff] %vm508, %v2309
      %2386 = vst.msk [vmem:[#allocation2 + $0x100] sm:$0xff] %vm508, %v2311
      %2387 = vst.msk [vmem:[#allocation2 + $0x108] sm:$0xff] %vm508, %v2313
      %2388 = vst.msk [vmem:[#allocation2 + $0x110] sm:$0xff] %vm508, %v2315
      %2389 = vst.msk [vmem:[#allocation2 + $0x118] sm:$0xff] %vm508, %v2317
      %v2390 = vld [vmem:[#allocation2] sm:$0xff]
      %v2391 = vld [vmem:[#allocation2 + $0x8] sm:$0xff]
      %v2392 = vld [vmem:[#allocation2 + $0x10] sm:$0xff]
      %v2393 = vld [vmem:[#allocation2 + $0x18] sm:$0xff]
      %v2394 = vld [vmem:[#allocation2 + $0x20] sm:$0xff]
      %v2395 = vld [vmem:[#allocation2 + $0x28] sm:$0xff]
      %v2396 = vld [vmem:[#allocation2 + $0x30] sm:$0xff]
      %v2397 = vld [vmem:[#allocation2 + $0x38] sm:$0xff]
      %v2398 = vld [vmem:[#allocation2 + $0x40] sm:$0xff]
      %v2399 = vld [vmem:[#allocation2 + $0x48] sm:$0xff]
      %v2400 = vld [vmem:[#allocation2 + $0x50] sm:$0xff]
      %v2401 = vld [vmem:[#allocation2 + $0x58] sm:$0xff]
      %v2402 = vld [vmem:[#allocation2 + $0x60] sm:$0xff]
      %v2403 = vld [vmem:[#allocation2 + $0x68] sm:$0xff]
      %v2404 = vld [vmem:[#allocation2 + $0x70] sm:$0xff]
      %v2405 = vld [vmem:[#allocation2 + $0x78] sm:$0xff]
      %v2406 = vld [vmem:[#allocation2 + $0x80] sm:$0xff]
      %v2407 = vld [vmem:[#allocation2 + $0x88] sm:$0xff]
      %v2408 = vld [vmem:[#allocation2 + $0x90] sm:$0xff]
      %v2409 = vld [vmem:[#allocation2 + $0x98] sm:$0xff]
      %v2410 = vld [vmem:[#allocation2 + $0xa0] sm:$0xff]
      %v2411 = vld [vmem:[#allocation2 + $0xa8] sm:$0xff]
      %v2412 = vld [vmem:[#allocation2 + $0xb0] sm:$0xff]
      %v2413 = vld [vmem:[#allocation2 + $0xb8] sm:$0xff]
      %v2414 = vld [vmem:[#allocation2 + $0xc0] sm:$0xff]
      %v2415 = vld [vmem:[#allocation2 + $0xc8] sm:$0xff]
      %v2416 = vld [vmem:[#allocation2 + $0xd0] sm:$0xff]
      %v2417 = vld [vmem:[#allocation2 + $0xd8] sm:$0xff]
      %v2418 = vld [vmem:[#allocation2 + $0xe0] sm:$0xff]
      %v2419 = vld [vmem:[#allocation2 + $0xe8] sm:$0xff]
      %v2420 = vld [vmem:[#allocation2 + $0xf0] sm:$0xff]
      %v2421 = vld [vmem:[#allocation2 + $0xf8] sm:$0xff]
      %s2422 = scalar_lea.vmem %s237, 16
      %v2423 = vld [vmem:[%s2422] sm:$0xff]
      %v2424 = vld [vmem:[%s578] sm:$0xff]
      %v2425 = vld [vmem:[%s578 + $0x8] sm:$0xff]
      %v2426 = vld [vmem:[%s578 + $0x10] sm:$0xff]
      %v2427 = vld [vmem:[%s578 + $0x18] sm:$0xff]
      %v2428 = vld [vmem:[%s578 + $0x20] sm:$0xff]
      %v2429 = vld [vmem:[%s578 + $0x28] sm:$0xff]
      %v2430 = vld [vmem:[%s578 + $0x30] sm:$0xff]
      %v2431 = vld [vmem:[%s578 + $0x38] sm:$0xff]
      %v2432 = vld [vmem:[%s578 + $0x40] sm:$0xff]
      %v2433 = vld [vmem:[%s578 + $0x48] sm:$0xff]
      %v2434 = vld [vmem:[%s578 + $0x50] sm:$0xff]
      %v2435 = vld [vmem:[%s578 + $0x58] sm:$0xff]
      %v2436 = vld [vmem:[%s578 + $0x60] sm:$0xff]
      %v2437 = vld [vmem:[%s578 + $0x68] sm:$0xff]
      %v2438 = vld [vmem:[%s578 + $0x70] sm:$0xff]
      %v2439 = vld [vmem:[%s578 + $0x78] sm:$0xff]
      %v2440 = vld [vmem:[%s578 + $0x80] sm:$0xff]
      %v2441 = vld [vmem:[%s578 + $0x88] sm:$0xff]
      %v2442 = vld [vmem:[%s578 + $0x90] sm:$0xff]
      %v2443 = vld [vmem:[%s578 + $0x98] sm:$0xff]
      %v2444 = vld [vmem:[%s578 + $0xa0] sm:$0xff]
      %v2445 = vld [vmem:[%s578 + $0xa8] sm:$0xff]
      %v2446 = vld [vmem:[%s578 + $0xb0] sm:$0xff]
      %v2447 = vld [vmem:[%s578 + $0xb8] sm:$0xff]
      %v2448 = vld [vmem:[%s578 + $0xc0] sm:$0xff]
      %v2449 = vld [vmem:[%s578 + $0xc8] sm:$0xff]
      %v2450 = vld [vmem:[%s578 + $0xd0] sm:$0xff]
      %v2451 = vld [vmem:[%s578 + $0xd8] sm:$0xff]
      %v2452 = vld [vmem:[%s578 + $0xe0] sm:$0xff]
      %v2453 = vld [vmem:[%s578 + $0xe8] sm:$0xff]
      %v2454 = vld [vmem:[%s578 + $0xf0] sm:$0xff]
      %v2455 = vld [vmem:[%s578 + $0xf8] sm:$0xff]
      %s2456 = scalar_lea.vmem %s237, 24
      %v2457 = vld [vmem:[%s2456] sm:$0xff]
      %v2459 = vsel %vm613, %v2424, 0
      %v2462 = vsel %vm613, %v2425, 0
      %v2465 = vsel %vm613, %v2426, 0
      %v2468 = vsel %vm613, %v2427, 0
      %v2471 = vsel %vm613, %v2428, 0
      %v2474 = vsel %vm613, %v2429, 0
      %v2477 = vsel %vm613, %v2430, 0
      %v2480 = vsel %vm613, %v2431, 0
      %v2483 = vsel %vm613, %v2432, 0
      %v2486 = vsel %vm613, %v2433, 0
      %v2489 = vsel %vm613, %v2434, 0
      %v2492 = vsel %vm613, %v2435, 0
      %v2495 = vsel %vm613, %v2436, 0
      %v2498 = vsel %vm613, %v2437, 0
      %v2501 = vsel %vm613, %v2438, 0
      %v2504 = vsel %vm613, %v2439, 0
      %v2507 = vsel %vm613, %v2440, 0
      %v2510 = vsel %vm613, %v2441, 0
      %v2513 = vsel %vm613, %v2442, 0
      %v2516 = vsel %vm613, %v2443, 0
      %v2519 = vsel %vm613, %v2444, 0
      %v2522 = vsel %vm613, %v2445, 0
      %v2525 = vsel %vm613, %v2446, 0
      %v2528 = vsel %vm613, %v2447, 0
      %v2531 = vsel %vm613, %v2448, 0
      %v2534 = vsel %vm613, %v2449, 0
      %v2537 = vsel %vm613, %v2450, 0
      %v2540 = vsel %vm613, %v2451, 0
      %v2543 = vsel %vm613, %v2452, 0
      %v2546 = vsel %vm613, %v2453, 0
      %v2549 = vsel %vm613, %v2454, 0
      %v2552 = vsel %vm613, %v2455, 0
      %2554 = vmatprep.subr.mxu0 0.0
      %2555 = vmatpush1.msra.mxu0 %v2457
      %2556 = vmatprep.subr.mxu0 0.0
      %2557 = vmatpush1.msra.mxu0 0.0
      %2558 = vmatprep.subr.mxu0 0.0
      %2559 = vmatpush1.msra.mxu0 0.0
      %2560 = vmatprep.subr.mxu0 0.0
      %2561 = vmatpush1.msra.mxu0 0.0
      %2562 = vmatprep.subr.mxu0 0.0
      %2563 = vmatpush1.msra.mxu0 0.0
      %2564 = vmatprep.subr.mxu0 0.0
      %2565 = vmatpush1.msra.mxu0 0.0
      %2566 = vmatprep.subr.mxu0 0.0
      %2567 = vmatpush1.msra.mxu0 0.0
      %2568 = vmatprep.subr.mxu0 0.0
      %2569 = vmatpush1.msra.mxu0 0.0
      %2570 = vmatprep.subr.mxu0 0.0
      %2571 = vmatpush1.msra.mxu0 0.0
      %2572 = vmatprep.subr.mxu0 0.0
      %2573 = vmatpush1.msra.mxu0 0.0
      %2574 = vmatprep.subr.mxu0 0.0
      %2575 = vmatpush1.msra.mxu0 0.0
      %2576 = vmatprep.subr.mxu0 0.0
      %2577 = vmatpush1.msra.mxu0 0.0
      %2578 = vmatprep.subr.mxu0 0.0
      %2579 = vmatpush1.msra.mxu0 0.0
      %2580 = vmatprep.subr.mxu0 0.0
      %2581 = vmatpush1.msra.mxu0 0.0
      %2582 = vmatprep.subr.mxu0 0.0
      %2583 = vmatpush1.msra.mxu0 0.0
      %2584 = vmatprep.subr.mxu0 0.0
      %2585 = vmatpush1.msra.mxu0 0.0
      %2586 = vmatprep.subr.mxu0 0.0
      %2587 = vmatpush1.msra.mxu0 0.0
      %2588 = vmatprep.subr.mxu0 0.0
      %2589 = vmatpush1.msra.mxu0 0.0
      %2590 = vmatprep.subr.mxu0 0.0
      %2591 = vmatpush1.msra.mxu0 0.0
      %2592 = vmatprep.subr.mxu0 0.0
      %2593 = vmatpush1.msra.mxu0 0.0
      %2594 = vmatprep.subr.mxu0 0.0
      %2595 = vmatpush1.msra.mxu0 0.0
      %2596 = vmatprep.subr.mxu0 0.0
      %2597 = vmatpush1.msra.mxu0 0.0
      %2598 = vmatprep.subr.mxu0 0.0
      %2599 = vmatpush1.msra.mxu0 0.0
      %2600 = vmatprep.subr.mxu0 0.0
      %2601 = vmatpush1.msra.mxu0 0.0
      %2602 = vmatprep.subr.mxu0 0.0
      %2603 = vmatpush1.msra.mxu0 0.0
      %2604 = vmatprep.subr.mxu0 0.0
      %2605 = vmatpush1.msra.mxu0 0.0
      %2606 = vmatprep.subr.mxu0 0.0
      %2607 = vmatpush1.msra.mxu0 0.0
      %2608 = vmatprep.subr.mxu0 0.0
      %2609 = vmatpush1.msra.mxu0 0.0
      %2610 = vmatprep.subr.mxu0 0.0
      %2611 = vmatpush1.msra.mxu0 0.0
      %2612 = vmatprep.subr.mxu0 0.0
      %2613 = vmatpush1.msra.mxu0 0.0
      %2614 = vmatprep.subr.mxu0 0.0
      %2615 = vmatpush1.msra.mxu0 0.0
      %2616 = vmatprep.subr.mxu0 0.0
      %2617 = vmatpush1.msra.mxu0 0.0
      %2618 = vmatprep.mubr.f32.mxu0 0.0
      %2619 = vmatmul.mubr.f32.gmra.mrb[0].mxu0 %v2459
      %v2620 = vpop.f32.mrb[0].mxu0
      %v2621 = vadd.f32 0.0, %v2620
      %v2622 = vpop.f32.mrb[0].mxu0
      %2623 = vmatprep.mubr.f32.mxu0 0.0
      %2624 = vmatmul.mubr.f32.gmra.mrb[0].mxu0 %v2462
      %v2625 = vpop.f32.mrb[0].mxu0
      %v2626 = vadd.f32 0.0, %v2625
      %v2627 = vpop.f32.mrb[0].mxu0
      %2628 = vmatprep.mubr.f32.mxu0 0.0
      %2629 = vmatmul.mubr.f32.gmra.mrb[0].mxu0 %v2465
      %v2630 = vpop.f32.mrb[0].mxu0
      %v2631 = vadd.f32 0.0, %v2630
      %v2632 = vpop.f32.mrb[0].mxu0
      %2633 = vmatprep.mubr.f32.mxu0 0.0
      %2634 = vmatmul.mubr.f32.gmra.mrb[0].mxu0 %v2468
      %v2635 = vpop.f32.mrb[0].mxu0
      %v2636 = vadd.f32 0.0, %v2635
      %v2637 = vpop.f32.mrb[0].mxu0
      %2638 = vmatprep.mubr.f32.mxu0 0.0
      %2639 = vmatmul.mubr.f32.gmra.mrb[0].mxu0 %v2471
      %v2640 = vpop.f32.mrb[0].mxu0
      %v2641 = vadd.f32 0.0, %v2640
      %v2642 = vpop.f32.mrb[0].mxu0
      %2643 = vmatprep.mubr.f32.mxu0 0.0
      %2644 = vmatmul.mubr.f32.gmra.mrb[0].mxu0 %v2474
      %v2645 = vpop.f32.mrb[0].mxu0
      %v2646 = vadd.f32 0.0, %v2645
      %v2647 = vpop.f32.mrb[0].mxu0
      %2648 = vmatprep.mubr.f32.mxu0 0.0
      %2649 = vmatmul.mubr.f32.gmra.mrb[0].mxu0 %v2477
      %v2650 = vpop.f32.mrb[0].mxu0
      %v2651 = vadd.f32 0.0, %v2650
      %v2652 = vpop.f32.mrb[0].mxu0
      %2653 = vmatprep.mubr.f32.mxu0 0.0
      %2654 = vmatmul.mubr.f32.gmra.mrb[0].mxu0 %v2480
      %v2655 = vpop.f32.mrb[0].mxu0
      %v2656 = vadd.f32 0.0, %v2655
      %v2657 = vpop.f32.mrb[0].mxu0
      %2658 = vmatprep.mubr.f32.mxu0 0.0
      %2659 = vmatmul.mubr.f32.gmra.mrb[0].mxu0 %v2483
      %v2660 = vpop.f32.mrb[0].mxu0
      %v2661 = vadd.f32 0.0, %v2660
      %v2662 = vpop.f32.mrb[0].mxu0
      %2663 = vmatprep.mubr.f32.mxu0 0.0
      %2664 = vmatmul.mubr.f32.gmra.mrb[0].mxu0 %v2486
      %v2665 = vpop.f32.mrb[0].mxu0
      %v2666 = vadd.f32 0.0, %v2665
      %v2667 = vpop.f32.mrb[0].mxu0
      %2668 = vmatprep.mubr.f32.mxu0 0.0
      %2669 = vmatmul.mubr.f32.gmra.mrb[0].mxu0 %v2489
      %v2670 = vpop.f32.mrb[0].mxu0
      %v2671 = vadd.f32 0.0, %v2670
      %v2672 = vpop.f32.mrb[0].mxu0
      %2673 = vmatprep.mubr.f32.mxu0 0.0
      %2674 = vmatmul.mubr.f32.gmra.mrb[0].mxu0 %v2492
      %v2675 = vpop.f32.mrb[0].mxu0
      %v2676 = vadd.f32 0.0, %v2675
      %v2677 = vpop.f32.mrb[0].mxu0
      %2678 = vmatprep.mubr.f32.mxu0 0.0
      %2679 = vmatmul.mubr.f32.gmra.mrb[0].mxu0 %v2495
      %v2680 = vpop.f32.mrb[0].mxu0
      %v2681 = vadd.f32 0.0, %v2680
      %v2682 = vpop.f32.mrb[0].mxu0
      %2683 = vmatprep.mubr.f32.mxu0 0.0
      %2684 = vmatmul.mubr.f32.gmra.mrb[0].mxu0 %v2498
      %v2685 = vpop.f32.mrb[0].mxu0
      %v2686 = vadd.f32 0.0, %v2685
      %v2687 = vpop.f32.mrb[0].mxu0
      %2688 = vmatprep.mubr.f32.mxu0 0.0
      %2689 = vmatmul.mubr.f32.gmra.mrb[0].mxu0 %v2501
      %v2690 = vpop.f32.mrb[0].mxu0
      %v2691 = vadd.f32 0.0, %v2690
      %v2692 = vpop.f32.mrb[0].mxu0
      %2693 = vmatprep.mubr.f32.mxu0 0.0
      %2694 = vmatmul.mubr.f32.gmra.mrb[0].mxu0 %v2504
      %v2695 = vpop.f32.mrb[0].mxu0
      %v2696 = vadd.f32 0.0, %v2695
      %v2697 = vpop.f32.mrb[0].mxu0
      %2698 = vmatprep.mubr.f32.mxu0 0.0
      %2699 = vmatmul.mubr.f32.gmra.mrb[0].mxu0 %v2507
      %v2700 = vpop.f32.mrb[0].mxu0
      %v2701 = vadd.f32 0.0, %v2700
      %v2702 = vpop.f32.mrb[0].mxu0
      %2703 = vmatprep.mubr.f32.mxu0 0.0
      %2704 = vmatmul.mubr.f32.gmra.mrb[0].mxu0 %v2510
      %v2705 = vpop.f32.mrb[0].mxu0
      %v2706 = vadd.f32 0.0, %v2705
      %v2707 = vpop.f32.mrb[0].mxu0
      %2708 = vmatprep.mubr.f32.mxu0 0.0
      %2709 = vmatmul.mubr.f32.gmra.mrb[0].mxu0 %v2513
      %v2710 = vpop.f32.mrb[0].mxu0
      %v2711 = vadd.f32 0.0, %v2710
      %v2712 = vpop.f32.mrb[0].mxu0
      %2713 = vmatprep.mubr.f32.mxu0 0.0
      %2714 = vmatmul.mubr.f32.gmra.mrb[0].mxu0 %v2516
      %v2715 = vpop.f32.mrb[0].mxu0
      %v2716 = vadd.f32 0.0, %v2715
      %v2717 = vpop.f32.mrb[0].mxu0
      %2718 = vmatprep.mubr.f32.mxu0 0.0
      %2719 = vmatmul.mubr.f32.gmra.mrb[0].mxu0 %v2519
      %v2720 = vpop.f32.mrb[0].mxu0
      %v2721 = vadd.f32 0.0, %v2720
      %v2722 = vpop.f32.mrb[0].mxu0
      %2723 = vmatprep.mubr.f32.mxu0 0.0
      %2724 = vmatmul.mubr.f32.gmra.mrb[0].mxu0 %v2522
      %v2725 = vpop.f32.mrb[0].mxu0
      %v2726 = vadd.f32 0.0, %v2725
      %v2727 = vpop.f32.mrb[0].mxu0
      %2728 = vmatprep.mubr.f32.mxu0 0.0
      %2729 = vmatmul.mubr.f32.gmra.mrb[0].mxu0 %v2525
      %v2730 = vpop.f32.mrb[0].mxu0
      %v2731 = vadd.f32 0.0, %v2730
      %v2732 = vpop.f32.mrb[0].mxu0
      %2733 = vmatprep.mubr.f32.mxu0 0.0
      %2734 = vmatmul.mubr.f32.gmra.mrb[0].mxu0 %v2528
      %v2735 = vpop.f32.mrb[0].mxu0
      %v2736 = vadd.f32 0.0, %v2735
      %v2737 = vpop.f32.mrb[0].mxu0
      %2738 = vmatprep.mubr.f32.mxu0 0.0
      %2739 = vmatmul.mubr.f32.gmra.mrb[0].mxu0 %v2531
      %v2740 = vpop.f32.mrb[0].mxu0
      %v2741 = vadd.f32 0.0, %v2740
      %v2742 = vpop.f32.mrb[0].mxu0
      %2743 = vmatprep.mubr.f32.mxu0 0.0
      %2744 = vmatmul.mubr.f32.gmra.mrb[0].mxu0 %v2534
      %v2745 = vpop.f32.mrb[0].mxu0
      %v2746 = vadd.f32 0.0, %v2745
      %v2747 = vpop.f32.mrb[0].mxu0
      %2748 = vmatprep.mubr.f32.mxu0 0.0
      %2749 = vmatmul.mubr.f32.gmra.mrb[0].mxu0 %v2537
      %v2750 = vpop.f32.mrb[0].mxu0
      %v2751 = vadd.f32 0.0, %v2750
      %v2752 = vpop.f32.mrb[0].mxu0
      %2753 = vmatprep.mubr.f32.mxu0 0.0
      %2754 = vmatmul.mubr.f32.gmra.mrb[0].mxu0 %v2540
      %v2755 = vpop.f32.mrb[0].mxu0
      %v2756 = vadd.f32 0.0, %v2755
      %v2757 = vpop.f32.mrb[0].mxu0
      %2758 = vmatprep.mubr.f32.mxu0 0.0
      %2759 = vmatmul.mubr.f32.gmra.mrb[0].mxu0 %v2543
      %v2760 = vpop.f32.mrb[0].mxu0
      %v2761 = vadd.f32 0.0, %v2760
      %v2762 = vpop.f32.mrb[0].mxu0
      %2763 = vmatprep.mubr.f32.mxu0 0.0
      %2764 = vmatmul.mubr.f32.gmra.mrb[0].mxu0 %v2546
      %v2765 = vpop.f32.mrb[0].mxu0
      %v2766 = vadd.f32 0.0, %v2765
      %v2767 = vpop.f32.mrb[0].mxu0
      %2768 = vmatprep.mubr.f32.mxu0 0.0
      %2769 = vmatmul.mubr.f32.gmra.mrb[0].mxu0 %v2549
      %v2770 = vpop.f32.mrb[0].mxu0
      %v2771 = vadd.f32 0.0, %v2770
      %v2772 = vpop.f32.mrb[0].mxu0
      %2773 = vmatprep.mubr.f32.mxu0 0.0
      %2774 = vmatmul.mubr.f32.gmra.mrb[0].mxu0 %v2552
      %v2775 = vpop.f32.mrb[0].mxu0
      %v2776 = vadd.f32 0.0, %v2775
      %v2777 = vpop.f32.mrb[0].mxu0
      %2778 = vdwg.mxu0
      %v2780 = vsel %vm613, %v2390, 0
      %v2783 = vsel %vm613, %v2391, 0
      %v2786 = vsel %vm613, %v2392, 0
      %v2789 = vsel %vm613, %v2393, 0
      %v2792 = vsel %vm613, %v2394, 0
      %v2795 = vsel %vm613, %v2395, 0
      %v2798 = vsel %vm613, %v2396, 0
      %v2801 = vsel %vm613, %v2397, 0
      %v2804 = vsel %vm613, %v2398, 0
      %v2807 = vsel %vm613, %v2399, 0
      %v2810 = vsel %vm613, %v2400, 0
      %v2813 = vsel %vm613, %v2401, 0
      %v2816 = vsel %vm613, %v2402, 0
      %v2819 = vsel %vm613, %v2403, 0
      %v2822 = vsel %vm613, %v2404, 0
      %v2825 = vsel %vm613, %v2405, 0
      %v2828 = vsel %vm613, %v2406, 0
      %v2831 = vsel %vm613, %v2407, 0
      %v2834 = vsel %vm613, %v2408, 0
      %v2837 = vsel %vm613, %v2409, 0
      %v2840 = vsel %vm613, %v2410, 0
      %v2843 = vsel %vm613, %v2411, 0
      %v2846 = vsel %vm613, %v2412, 0
      %v2849 = vsel %vm613, %v2413, 0
      %v2852 = vsel %vm613, %v2414, 0
      %v2855 = vsel %vm613, %v2415, 0
      %v2858 = vsel %vm613, %v2416, 0
      %v2861 = vsel %vm613, %v2417, 0
      %v2864 = vsel %vm613, %v2418, 0
      %v2867 = vsel %vm613, %v2419, 0
      %v2870 = vsel %vm613, %v2420, 0
      %v2873 = vsel %vm613, %v2421, 0
      %2875 = vmatprep.subr.mxu0 0.0
      %2876 = vmatpush1.msra.mxu0 %v2423
      %2877 = vmatprep.subr.mxu0 0.0
      %2878 = vmatpush1.msra.mxu0 0.0
      %2879 = vmatprep.subr.mxu0 0.0
      %2880 = vmatpush1.msra.mxu0 0.0
      %2881 = vmatprep.subr.mxu0 0.0
      %2882 = vmatpush1.msra.mxu0 0.0
      %2883 = vmatprep.subr.mxu0 0.0
      %2884 = vmatpush1.msra.mxu0 0.0
      %2885 = vmatprep.subr.mxu0 0.0
      %2886 = vmatpush1.msra.mxu0 0.0
      %2887 = vmatprep.subr.mxu0 0.0
      %2888 = vmatpush1.msra.mxu0 0.0
      %2889 = vmatprep.subr.mxu0 0.0
      %2890 = vmatpush1.msra.mxu0 0.0
      %2891 = vmatprep.subr.mxu0 0.0
      %2892 = vmatpush1.msra.mxu0 0.0
      %2893 = vmatprep.subr.mxu0 0.0
      %2894 = vmatpush1.msra.mxu0 0.0
      %2895 = vmatprep.subr.mxu0 0.0
      %2896 = vmatpush1.msra.mxu0 0.0
      %2897 = vmatprep.subr.mxu0 0.0
      %2898 = vmatpush1.msra.mxu0 0.0
      %2899 = vmatprep.subr.mxu0 0.0
      %2900 = vmatpush1.msra.mxu0 0.0
      %2901 = vmatprep.subr.mxu0 0.0
      %2902 = vmatpush1.msra.mxu0 0.0
      %2903 = vmatprep.subr.mxu0 0.0
      %2904 = vmatpush1.msra.mxu0 0.0
      %2905 = vmatprep.subr.mxu0 0.0
      %2906 = vmatpush1.msra.mxu0 0.0
      %2907 = vmatprep.subr.mxu0 0.0
      %2908 = vmatpush1.msra.mxu0 0.0
      %2909 = vmatprep.subr.mxu0 0.0
      %2910 = vmatpush1.msra.mxu0 0.0
      %2911 = vmatprep.subr.mxu0 0.0
      %2912 = vmatpush1.msra.mxu0 0.0
      %2913 = vmatprep.subr.mxu0 0.0
      %2914 = vmatpush1.msra.mxu0 0.0
      %2915 = vmatprep.subr.mxu0 0.0
      %2916 = vmatpush1.msra.mxu0 0.0
      %2917 = vmatprep.subr.mxu0 0.0
      %2918 = vmatpush1.msra.mxu0 0.0
      %2919 = vmatprep.subr.mxu0 0.0
      %2920 = vmatpush1.msra.mxu0 0.0
      %2921 = vmatprep.subr.mxu0 0.0
      %2922 = vmatpush1.msra.mxu0 0.0
      %2923 = vmatprep.subr.mxu0 0.0
      %2924 = vmatpush1.msra.mxu0 0.0
      %2925 = vmatprep.subr.mxu0 0.0
      %2926 = vmatpush1.msra.mxu0 0.0
      %2927 = vmatprep.subr.mxu0 0.0
      %2928 = vmatpush1.msra.mxu0 0.0
      %2929 = vmatprep.subr.mxu0 0.0
      %2930 = vmatpush1.msra.mxu0 0.0
      %2931 = vmatprep.subr.mxu0 0.0
      %2932 = vmatpush1.msra.mxu0 0.0
      %2933 = vmatprep.subr.mxu0 0.0
      %2934 = vmatpush1.msra.mxu0 0.0
      %2935 = vmatprep.subr.mxu0 0.0
      %2936 = vmatpush1.msra.mxu0 0.0
      %2937 = vmatprep.subr.mxu0 0.0
      %2938 = vmatpush1.msra.mxu0 0.0
      %2939 = vmatprep.mubr.f32.mxu0 0.0
      %2940 = vmatmul.mubr.f32.gmra.mrb[0].mxu0 %v2780
      %v2941 = vpop.f32.mrb[0].mxu0
      %v2942 = vadd.f32 %v2621, %v2941
      %v2943 = vpop.f32.mrb[0].mxu0
      %2944 = vmatprep.mubr.f32.mxu0 0.0
      %2945 = vmatmul.mubr.f32.gmra.mrb[0].mxu0 %v2783
      %v2946 = vpop.f32.mrb[0].mxu0
      %v2947 = vadd.f32 %v2626, %v2946
      %v2948 = vpop.f32.mrb[0].mxu0
      %2949 = vmatprep.mubr.f32.mxu0 0.0
      %2950 = vmatmul.mubr.f32.gmra.mrb[0].mxu0 %v2786
      %v2951 = vpop.f32.mrb[0].mxu0
      %v2952 = vadd.f32 %v2631, %v2951
      %v2953 = vpop.f32.mrb[0].mxu0
      %2954 = vmatprep.mubr.f32.mxu0 0.0
      %2955 = vmatmul.mubr.f32.gmra.mrb[0].mxu0 %v2789
      %v2956 = vpop.f32.mrb[0].mxu0
      %v2957 = vadd.f32 %v2636, %v2956
      %v2958 = vpop.f32.mrb[0].mxu0
      %2959 = vmatprep.mubr.f32.mxu0 0.0
      %2960 = vmatmul.mubr.f32.gmra.mrb[0].mxu0 %v2792
      %v2961 = vpop.f32.mrb[0].mxu0
      %v2962 = vadd.f32 %v2641, %v2961
      %v2963 = vpop.f32.mrb[0].mxu0
      %2964 = vmatprep.mubr.f32.mxu0 0.0
      %2965 = vmatmul.mubr.f32.gmra.mrb[0].mxu0 %v2795
      %v2966 = vpop.f32.mrb[0].mxu0
      %v2967 = vadd.f32 %v2646, %v2966
      %v2968 = vpop.f32.mrb[0].mxu0
      %2969 = vmatprep.mubr.f32.mxu0 0.0
      %2970 = vmatmul.mubr.f32.gmra.mrb[0].mxu0 %v2798
      %v2971 = vpop.f32.mrb[0].mxu0
      %v2972 = vadd.f32 %v2651, %v2971
      %v2973 = vpop.f32.mrb[0].mxu0
      %2974 = vmatprep.mubr.f32.mxu0 0.0
      %2975 = vmatmul.mubr.f32.gmra.mrb[0].mxu0 %v2801
      %v2976 = vpop.f32.mrb[0].mxu0
      %v2977 = vadd.f32 %v2656, %v2976
      %v2978 = vpop.f32.mrb[0].mxu0
      %2979 = vmatprep.mubr.f32.mxu0 0.0
      %2980 = vmatmul.mubr.f32.gmra.mrb[0].mxu0 %v2804
      %v2981 = vpop.f32.mrb[0].mxu0
      %v2982 = vadd.f32 %v2661, %v2981
      %v2983 = vpop.f32.mrb[0].mxu0
      %2984 = vmatprep.mubr.f32.mxu0 0.0
      %2985 = vmatmul.mubr.f32.gmra.mrb[0].mxu0 %v2807
      %v2986 = vpop.f32.mrb[0].mxu0
      %v2987 = vadd.f32 %v2666, %v2986
      %v2988 = vpop.f32.mrb[0].mxu0
      %2989 = vmatprep.mubr.f32.mxu0 0.0
      %2990 = vmatmul.mubr.f32.gmra.mrb[0].mxu0 %v2810
      %v2991 = vpop.f32.mrb[0].mxu0
      %v2992 = vadd.f32 %v2671, %v2991
      %v2993 = vpop.f32.mrb[0].mxu0
      %2994 = vmatprep.mubr.f32.mxu0 0.0
      %2995 = vmatmul.mubr.f32.gmra.mrb[0].mxu0 %v2813
      %v2996 = vpop.f32.mrb[0].mxu0
      %v2997 = vadd.f32 %v2676, %v2996
      %v2998 = vpop.f32.mrb[0].mxu0
      %2999 = vmatprep.mubr.f32.mxu0 0.0
      %3000 = vmatmul.mubr.f32.gmra.mrb[0].mxu0 %v2816
      %v3001 = vpop.f32.mrb[0].mxu0
      %v3002 = vadd.f32 %v2681, %v3001
      %v3003 = vpop.f32.mrb[0].mxu0
      %3004 = vmatprep.mubr.f32.mxu0 0.0
      %3005 = vmatmul.mubr.f32.gmra.mrb[0].mxu0 %v2819
      %v3006 = vpop.f32.mrb[0].mxu0
      %v3007 = vadd.f32 %v2686, %v3006
      %v3008 = vpop.f32.mrb[0].mxu0
      %3009 = vmatprep.mubr.f32.mxu0 0.0
      %3010 = vmatmul.mubr.f32.gmra.mrb[0].mxu0 %v2822
      %v3011 = vpop.f32.mrb[0].mxu0
      %v3012 = vadd.f32 %v2691, %v3011
      %v3013 = vpop.f32.mrb[0].mxu0
      %3014 = vmatprep.mubr.f32.mxu0 0.0
      %3015 = vmatmul.mubr.f32.gmra.mrb[0].mxu0 %v2825
      %v3016 = vpop.f32.mrb[0].mxu0
      %v3017 = vadd.f32 %v2696, %v3016
      %v3018 = vpop.f32.mrb[0].mxu0
      %3019 = vmatprep.mubr.f32.mxu0 0.0
      %3020 = vmatmul.mubr.f32.gmra.mrb[0].mxu0 %v2828
      %v3021 = vpop.f32.mrb[0].mxu0
      %v3022 = vadd.f32 %v2701, %v3021
      %v3023 = vpop.f32.mrb[0].mxu0
      %3024 = vmatprep.mubr.f32.mxu0 0.0
      %3025 = vmatmul.mubr.f32.gmra.mrb[0].mxu0 %v2831
      %v3026 = vpop.f32.mrb[0].mxu0
      %v3027 = vadd.f32 %v2706, %v3026
      %v3028 = vpop.f32.mrb[0].mxu0
      %3029 = vmatprep.mubr.f32.mxu0 0.0
      %3030 = vmatmul.mubr.f32.gmra.mrb[0].mxu0 %v2834
      %v3031 = vpop.f32.mrb[0].mxu0
      %v3032 = vadd.f32 %v2711, %v3031
      %v3033 = vpop.f32.mrb[0].mxu0
      %3034 = vmatprep.mubr.f32.mxu0 0.0
      %3035 = vmatmul.mubr.f32.gmra.mrb[0].mxu0 %v2837
      %v3036 = vpop.f32.mrb[0].mxu0
      %v3037 = vadd.f32 %v2716, %v3036
      %v3038 = vpop.f32.mrb[0].mxu0
      %3039 = vmatprep.mubr.f32.mxu0 0.0
      %3040 = vmatmul.mubr.f32.gmra.mrb[0].mxu0 %v2840
      %v3041 = vpop.f32.mrb[0].mxu0
      %v3042 = vadd.f32 %v2721, %v3041
      %v3043 = vpop.f32.mrb[0].mxu0
      %3044 = vmatprep.mubr.f32.mxu0 0.0
      %3045 = vmatmul.mubr.f32.gmra.mrb[0].mxu0 %v2843
      %v3046 = vpop.f32.mrb[0].mxu0
      %v3047 = vadd.f32 %v2726, %v3046
      %v3048 = vpop.f32.mrb[0].mxu0
      %3049 = vmatprep.mubr.f32.mxu0 0.0
      %3050 = vmatmul.mubr.f32.gmra.mrb[0].mxu0 %v2846
      %v3051 = vpop.f32.mrb[0].mxu0
      %v3052 = vadd.f32 %v2731, %v3051
      %v3053 = vpop.f32.mrb[0].mxu0
      %3054 = vmatprep.mubr.f32.mxu0 0.0
      %3055 = vmatmul.mubr.f32.gmra.mrb[0].mxu0 %v2849
      %v3056 = vpop.f32.mrb[0].mxu0
      %v3057 = vadd.f32 %v2736, %v3056
      %v3058 = vpop.f32.mrb[0].mxu0
      %3059 = vmatprep.mubr.f32.mxu0 0.0
      %3060 = vmatmul.mubr.f32.gmra.mrb[0].mxu0 %v2852
      %v3061 = vpop.f32.mrb[0].mxu0
      %v3062 = vadd.f32 %v2741, %v3061
      %v3063 = vpop.f32.mrb[0].mxu0
      %3064 = vmatprep.mubr.f32.mxu0 0.0
      %3065 = vmatmul.mubr.f32.gmra.mrb[0].mxu0 %v2855
      %v3066 = vpop.f32.mrb[0].mxu0
      %v3067 = vadd.f32 %v2746, %v3066
      %v3068 = vpop.f32.mrb[0].mxu0
      %3069 = vmatprep.mubr.f32.mxu0 0.0
      %3070 = vmatmul.mubr.f32.gmra.mrb[0].mxu0 %v2858
      %v3071 = vpop.f32.mrb[0].mxu0
      %v3072 = vadd.f32 %v2751, %v3071
      %v3073 = vpop.f32.mrb[0].mxu0
      %3074 = vmatprep.mubr.f32.mxu0 0.0
      %3075 = vmatmul.mubr.f32.gmra.mrb[0].mxu0 %v2861
      %v3076 = vpop.f32.mrb[0].mxu0
      %v3077 = vadd.f32 %v2756, %v3076
      %v3078 = vpop.f32.mrb[0].mxu0
      %3079 = vmatprep.mubr.f32.mxu0 0.0
      %3080 = vmatmul.mubr.f32.gmra.mrb[0].mxu0 %v2864
      %v3081 = vpop.f32.mrb[0].mxu0
      %v3082 = vadd.f32 %v2761, %v3081
      %v3083 = vpop.f32.mrb[0].mxu0
      %3084 = vmatprep.mubr.f32.mxu0 0.0
      %3085 = vmatmul.mubr.f32.gmra.mrb[0].mxu0 %v2867
      %v3086 = vpop.f32.mrb[0].mxu0
      %v3087 = vadd.f32 %v2766, %v3086
      %v3088 = vpop.f32.mrb[0].mxu0
      %3089 = vmatprep.mubr.f32.mxu0 0.0
      %3090 = vmatmul.mubr.f32.gmra.mrb[0].mxu0 %v2870
      %v3091 = vpop.f32.mrb[0].mxu0
      %v3092 = vadd.f32 %v2771, %v3091
      %v3093 = vpop.f32.mrb[0].mxu0
      %3094 = vmatprep.mubr.f32.mxu0 0.0
      %3095 = vmatmul.mubr.f32.gmra.mrb[0].mxu0 %v2873
      %v3096 = vpop.f32.mrb[0].mxu0
      %v3097 = vadd.f32 %v2776, %v3096
      %v3098 = vpop.f32.mrb[0].mxu0
      %3099 = vdwg.mxu0
      %v3100 = vadd.f32 %v2942, %v1260
      %v3101 = vadd.f32 %v2947, %v1260
      %v3102 = vadd.f32 %v2952, %v1260
      %v3103 = vadd.f32 %v2957, %v1260
      %v3104 = vadd.f32 %v2962, %v1260
      %v3105 = vadd.f32 %v2967, %v1260
      %v3106 = vadd.f32 %v2972, %v1260
      %v3107 = vadd.f32 %v2977, %v1260
      %v3108 = vadd.f32 %v2982, %v1260
      %v3109 = vadd.f32 %v2987, %v1260
      %v3110 = vadd.f32 %v2992, %v1260
      %v3111 = vadd.f32 %v2997, %v1260
      %v3112 = vadd.f32 %v3002, %v1260
      %v3113 = vadd.f32 %v3007, %v1260
      %v3114 = vadd.f32 %v3012, %v1260
      %v3115 = vadd.f32 %v3017, %v1260
      %v3116 = vadd.f32 %v3022, %v1260
      %v3117 = vadd.f32 %v3027, %v1260
      %v3118 = vadd.f32 %v3032, %v1260
      %v3119 = vadd.f32 %v3037, %v1260
      %v3120 = vadd.f32 %v3042, %v1260
      %v3121 = vadd.f32 %v3047, %v1260
      %v3122 = vadd.f32 %v3052, %v1260
      %v3123 = vadd.f32 %v3057, %v1260
      %v3124 = vadd.f32 %v3062, %v1260
      %v3125 = vadd.f32 %v3067, %v1260
      %v3126 = vadd.f32 %v3072, %v1260
      %v3127 = vadd.f32 %v3077, %v1260
      %v3128 = vadd.f32 %v3082, %v1260
      %v3129 = vadd.f32 %v3087, %v1260
      %v3130 = vadd.f32 %v3092, %v1260
      %v3131 = vadd.f32 %v3097, %v1260
      %s3132 = scalar_lea.vmem %s252, 256
      %3133 = vst.msk [vmem:[%s3132] sm:$0xff] %vm291, %v3100
      %3134 = vst.msk [vmem:[%s3132 + $0x8] sm:$0xff] %vm291, %v3101
      %3135 = vst.msk [vmem:[%s3132 + $0x10] sm:$0xff] %vm291, %v3102
      %3136 = vst.msk [vmem:[%s3132 + $0x18] sm:$0xff] %vm291, %v3103
      %3137 = vst.msk [vmem:[%s3132 + $0x20] sm:$0xff] %vm291, %v3104
      %3138 = vst.msk [vmem:[%s3132 + $0x28] sm:$0xff] %vm291, %v3105
      %3139 = vst.msk [vmem:[%s3132 + $0x30] sm:$0xff] %vm291, %v3106
      %3140 = vst.msk [vmem:[%s3132 + $0x38] sm:$0xff] %vm291, %v3107
      %3141 = vst.msk [vmem:[%s3132 + $0x40] sm:$0xff] %vm291, %v3108
      %3142 = vst.msk [vmem:[%s3132 + $0x48] sm:$0xff] %vm291, %v3109
      %3143 = vst.msk [vmem:[%s3132 + $0x50] sm:$0xff] %vm291, %v3110
      %3144 = vst.msk [vmem:[%s3132 + $0x58] sm:$0xff] %vm291, %v3111
      %3145 = vst.msk [vmem:[%s3132 + $0x60] sm:$0xff] %vm291, %v3112
      %3146 = vst.msk [vmem:[%s3132 + $0x68] sm:$0xff] %vm291, %v3113
      %3147 = vst.msk [vmem:[%s3132 + $0x70] sm:$0xff] %vm291, %v3114
      %3148 = vst.msk [vmem:[%s3132 + $0x78] sm:$0xff] %vm291, %v3115
      %3149 = vst.msk [vmem:[%s3132 + $0x80] sm:$0xff] %vm291, %v3116
      %3150 = vst.msk [vmem:[%s3132 + $0x88] sm:$0xff] %vm291, %v3117
      %3151 = vst.msk [vmem:[%s3132 + $0x90] sm:$0xff] %vm291, %v3118
      %3152 = vst.msk [vmem:[%s3132 + $0x98] sm:$0xff] %vm291, %v3119
      %3153 = vst.msk [vmem:[%s3132 + $0xa0] sm:$0xff] %vm291, %v3120
      %3154 = vst.msk [vmem:[%s3132 + $0xa8] sm:$0xff] %vm291, %v3121
      %3155 = vst.msk [vmem:[%s3132 + $0xb0] sm:$0xff] %vm291, %v3122
      %3156 = vst.msk [vmem:[%s3132 + $0xb8] sm:$0xff] %vm291, %v3123
      %3157 = vst.msk [vmem:[%s3132 + $0xc0] sm:$0xff] %vm291, %v3124
      %3158 = vst.msk [vmem:[%s3132 + $0xc8] sm:$0xff] %vm291, %v3125
      %3159 = vst.msk [vmem:[%s3132 + $0xd0] sm:$0xff] %vm291, %v3126
      %3160 = vst.msk [vmem:[%s3132 + $0xd8] sm:$0xff] %vm291, %v3127
      %3161 = vst.msk [vmem:[%s3132 + $0xe0] sm:$0xff] %vm291, %v3128
      %3162 = vst.msk [vmem:[%s3132 + $0xe8] sm:$0xff] %vm291, %v3129
      %3163 = vst.msk [vmem:[%s3132 + $0xf0] sm:$0xff] %vm291, %v3130
      %3164 = vst.msk [vmem:[%s3132 + $0xf8] sm:$0xff] %vm291, %v3131
      %v3165 = vld [vmem:[%s578] sm:$0xff]
      %v3166 = vld [vmem:[%s578 + $0x8] sm:$0xff]
      %v3167 = vld [vmem:[%s578 + $0x10] sm:$0xff]
      %v3168 = vld [vmem:[%s578 + $0x18] sm:$0xff]
      %v3169 = vld [vmem:[%s578 + $0x20] sm:$0xff]
      %v3170 = vld [vmem:[%s578 + $0x28] sm:$0xff]
      %v3171 = vld [vmem:[%s578 + $0x30] sm:$0xff]
      %v3172 = vld [vmem:[%s578 + $0x38] sm:$0xff]
      %v3173 = vld [vmem:[%s578 + $0x40] sm:$0xff]
      %v3174 = vld [vmem:[%s578 + $0x48] sm:$0xff]
      %v3175 = vld [vmem:[%s578 + $0x50] sm:$0xff]
      %v3176 = vld [vmem:[%s578 + $0x58] sm:$0xff]
      %v3177 = vld [vmem:[%s578 + $0x60] sm:$0xff]
      %v3178 = vld [vmem:[%s578 + $0x68] sm:$0xff]
      %v3179 = vld [vmem:[%s578 + $0x70] sm:$0xff]
      %v3180 = vld [vmem:[%s578 + $0x78] sm:$0xff]
      %v3181 = vld [vmem:[%s578 + $0x80] sm:$0xff]
      %v3182 = vld [vmem:[%s578 + $0x88] sm:$0xff]
      %v3183 = vld [vmem:[%s578 + $0x90] sm:$0xff]
      %v3184 = vld [vmem:[%s578 + $0x98] sm:$0xff]
      %v3185 = vld [vmem:[%s578 + $0xa0] sm:$0xff]
      %v3186 = vld [vmem:[%s578 + $0xa8] sm:$0xff]
      %v3187 = vld [vmem:[%s578 + $0xb0] sm:$0xff]
      %v3188 = vld [vmem:[%s578 + $0xb8] sm:$0xff]
      %v3189 = vld [vmem:[%s578 + $0xc0] sm:$0xff]
      %v3190 = vld [vmem:[%s578 + $0xc8] sm:$0xff]
      %v3191 = vld [vmem:[%s578 + $0xd0] sm:$0xff]
      %v3192 = vld [vmem:[%s578 + $0xd8] sm:$0xff]
      %v3193 = vld [vmem:[%s578 + $0xe0] sm:$0xff]
      %v3194 = vld [vmem:[%s578 + $0xe8] sm:$0xff]
      %v3195 = vld [vmem:[%s578 + $0xf0] sm:$0xff]
      %v3196 = vld [vmem:[%s578 + $0xf8] sm:$0xff]
      %s3197 = scalar_lea.vmem %s237, 48
      %v3198 = vld [vmem:[%s3197] sm:$0xff]
      %v3199 = vld [vmem:[%s1360] sm:$0xff]
      %v3200 = vld [vmem:[%s1360 + $0x8] sm:$0xff]
      %v3201 = vld [vmem:[%s1360 + $0x10] sm:$0xff]
      %v3202 = vld [vmem:[%s1360 + $0x18] sm:$0xff]
      %v3203 = vld [vmem:[%s1360 + $0x20] sm:$0xff]
      %v3204 = vld [vmem:[%s1360 + $0x28] sm:$0xff]
      %v3205 = vld [vmem:[%s1360 + $0x30] sm:$0xff]
      %v3206 = vld [vmem:[%s1360 + $0x38] sm:$0xff]
      %v3207 = vld [vmem:[%s1360 + $0x40] sm:$0xff]
      %v3208 = vld [vmem:[%s1360 + $0x48] sm:$0xff]
      %v3209 = vld [vmem:[%s1360 + $0x50] sm:$0xff]
      %v3210 = vld [vmem:[%s1360 + $0x58] sm:$0xff]
      %v3211 = vld [vmem:[%s1360 + $0x60] sm:$0xff]
      %v3212 = vld [vmem:[%s1360 + $0x68] sm:$0xff]
      %v3213 = vld [vmem:[%s1360 + $0x70] sm:$0xff]
      %v3214 = vld [vmem:[%s1360 + $0x78] sm:$0xff]
      %v3215 = vld [vmem:[%s1360 + $0x80] sm:$0xff]
      %v3216 = vld [vmem:[%s1360 + $0x88] sm:$0xff]
      %v3217 = vld [vmem:[%s1360 + $0x90] sm:$0xff]
      %v3218 = vld [vmem:[%s1360 + $0x98] sm:$0xff]
      %v3219 = vld [vmem:[%s1360 + $0xa0] sm:$0xff]
      %v3220 = vld [vmem:[%s1360 + $0xa8] sm:$0xff]
      %v3221 = vld [vmem:[%s1360 + $0xb0] sm:$0xff]
      %v3222 = vld [vmem:[%s1360 + $0xb8] sm:$0xff]
      %v3223 = vld [vmem:[%s1360 + $0xc0] sm:$0xff]
      %v3224 = vld [vmem:[%s1360 + $0xc8] sm:$0xff]
      %v3225 = vld [vmem:[%s1360 + $0xd0] sm:$0xff]
      %v3226 = vld [vmem:[%s1360 + $0xd8] sm:$0xff]
      %v3227 = vld [vmem:[%s1360 + $0xe0] sm:$0xff]
      %v3228 = vld [vmem:[%s1360 + $0xe8] sm:$0xff]
      %v3229 = vld [vmem:[%s1360 + $0xf0] sm:$0xff]
      %v3230 = vld [vmem:[%s1360 + $0xf8] sm:$0xff]
      %s3231 = scalar_lea.vmem %s237, 56
      %v3232 = vld [vmem:[%s3231] sm:$0xff]
      %v3234 = vsel %vm613, %v3199, 0
      %v3237 = vsel %vm613, %v3200, 0
      %v3240 = vsel %vm613, %v3201, 0
      %v3243 = vsel %vm613, %v3202, 0
      %v3246 = vsel %vm613, %v3203, 0
      %v3249 = vsel %vm613, %v3204, 0
      %v3252 = vsel %vm613, %v3205, 0
      %v3255 = vsel %vm613, %v3206, 0
      %v3258 = vsel %vm613, %v3207, 0
      %v3261 = vsel %vm613, %v3208, 0
      %v3264 = vsel %vm613, %v3209, 0
      %v3267 = vsel %vm613, %v3210, 0
      %v3270 = vsel %vm613, %v3211, 0
      %v3273 = vsel %vm613, %v3212, 0
      %v3276 = vsel %vm613, %v3213, 0
      %v3279 = vsel %vm613, %v3214, 0
      %v3282 = vsel %vm613, %v3215, 0
      %v3285 = vsel %vm613, %v3216, 0
      %v3288 = vsel %vm613, %v3217, 0
      %v3291 = vsel %vm613, %v3218, 0
      %v3294 = vsel %vm613, %v3219, 0
      %v3297 = vsel %vm613, %v3220, 0
      %v3300 = vsel %vm613, %v3221, 0
      %v3303 = vsel %vm613, %v3222, 0
      %v3306 = vsel %vm613, %v3223, 0
      %v3309 = vsel %vm613, %v3224, 0
      %v3312 = vsel %vm613, %v3225, 0
      %v3315 = vsel %vm613, %v3226, 0
      %v3318 = vsel %vm613, %v3227, 0
      %v3321 = vsel %vm613, %v3228, 0
      %v3324 = vsel %vm613, %v3229, 0
      %v3327 = vsel %vm613, %v3230, 0
      %3329 = vmatprep.subr.mxu0 0.0
      %3330 = vmatpush1.msra.mxu0 %v3232
      %3331 = vmatprep.subr.mxu0 0.0
      %3332 = vmatpush1.msra.mxu0 0.0
      %3333 = vmatprep.subr.mxu0 0.0
      %3334 = vmatpush1.msra.mxu0 0.0
      %3335 = vmatprep.subr.mxu0 0.0
      %3336 = vmatpush1.msra.mxu0 0.0
      %3337 = vmatprep.subr.mxu0 0.0
      %3338 = vmatpush1.msra.mxu0 0.0
      %3339 = vmatprep.subr.mxu0 0.0
      %3340 = vmatpush1.msra.mxu0 0.0
      %3341 = vmatprep.subr.mxu0 0.0
      %3342 = vmatpush1.msra.mxu0 0.0
      %3343 = vmatprep.subr.mxu0 0.0
      %3344 = vmatpush1.msra.mxu0 0.0
      %3345 = vmatprep.subr.mxu0 0.0
      %3346 = vmatpush1.msra.mxu0 0.0
      %3347 = vmatprep.subr.mxu0 0.0
      %3348 = vmatpush1.msra.mxu0 0.0
      %3349 = vmatprep.subr.mxu0 0.0
      %3350 = vmatpush1.msra.mxu0 0.0
      %3351 = vmatprep.subr.mxu0 0.0
      %3352 = vmatpush1.msra.mxu0 0.0
      %3353 = vmatprep.subr.mxu0 0.0
      %3354 = vmatpush1.msra.mxu0 0.0
      %3355 = vmatprep.subr.mxu0 0.0
      %3356 = vmatpush1.msra.mxu0 0.0
      %3357 = vmatprep.subr.mxu0 0.0
      %3358 = vmatpush1.msra.mxu0 0.0
      %3359 = vmatprep.subr.mxu0 0.0
      %3360 = vmatpush1.msra.mxu0 0.0
      %3361 = vmatprep.subr.mxu0 0.0
      %3362 = vmatpush1.msra.mxu0 0.0
      %3363 = vmatprep.subr.mxu0 0.0
      %3364 = vmatpush1.msra.mxu0 0.0
      %3365 = vmatprep.subr.mxu0 0.0
      %3366 = vmatpush1.msra.mxu0 0.0
      %3367 = vmatprep.subr.mxu0 0.0
      %3368 = vmatpush1.msra.mxu0 0.0
      %3369 = vmatprep.subr.mxu0 0.0
      %3370 = vmatpush1.msra.mxu0 0.0
      %3371 = vmatprep.subr.mxu0 0.0
      %3372 = vmatpush1.msra.mxu0 0.0
      %3373 = vmatprep.subr.mxu0 0.0
      %3374 = vmatpush1.msra.mxu0 0.0
      %3375 = vmatprep.subr.mxu0 0.0
      %3376 = vmatpush1.msra.mxu0 0.0
      %3377 = vmatprep.subr.mxu0 0.0
      %3378 = vmatpush1.msra.mxu0 0.0
      %3379 = vmatprep.subr.mxu0 0.0
      %3380 = vmatpush1.msra.mxu0 0.0
      %3381 = vmatprep.subr.mxu0 0.0
      %3382 = vmatpush1.msra.mxu0 0.0
      %3383 = vmatprep.subr.mxu0 0.0
      %3384 = vmatpush1.msra.mxu0 0.0
      %3385 = vmatprep.subr.mxu0 0.0
      %3386 = vmatpush1.msra.mxu0 0.0
      %3387 = vmatprep.subr.mxu0 0.0
      %3388 = vmatpush1.msra.mxu0 0.0
      %3389 = vmatprep.subr.mxu0 0.0
      %3390 = vmatpush1.msra.mxu0 0.0
      %3391 = vmatprep.subr.mxu0 0.0
      %3392 = vmatpush1.msra.mxu0 0.0
      %3393 = vmatprep.mubr.f32.mxu0 0.0
      %3394 = vmatmul.mubr.f32.gmra.mrb[0].mxu0 %v3234
      %v3395 = vpop.f32.mrb[0].mxu0
      %v3396 = vadd.f32 0.0, %v3395
      %v3397 = vpop.f32.mrb[0].mxu0
      %3398 = vmatprep.mubr.f32.mxu0 0.0
      %3399 = vmatmul.mubr.f32.gmra.mrb[0].mxu0 %v3237
      %v3400 = vpop.f32.mrb[0].mxu0
      %v3401 = vadd.f32 0.0, %v3400
      %v3402 = vpop.f32.mrb[0].mxu0
      %3403 = vmatprep.mubr.f32.mxu0 0.0
      %3404 = vmatmul.mubr.f32.gmra.mrb[0].mxu0 %v3240
      %v3405 = vpop.f32.mrb[0].mxu0
      %v3406 = vadd.f32 0.0, %v3405
      %v3407 = vpop.f32.mrb[0].mxu0
      %3408 = vmatprep.mubr.f32.mxu0 0.0
      %3409 = vmatmul.mubr.f32.gmra.mrb[0].mxu0 %v3243
      %v3410 = vpop.f32.mrb[0].mxu0
      %v3411 = vadd.f32 0.0, %v3410
      %v3412 = vpop.f32.mrb[0].mxu0
      %3413 = vmatprep.mubr.f32.mxu0 0.0
      %3414 = vmatmul.mubr.f32.gmra.mrb[0].mxu0 %v3246
      %v3415 = vpop.f32.mrb[0].mxu0
      %v3416 = vadd.f32 0.0, %v3415
      %v3417 = vpop.f32.mrb[0].mxu0
      %3418 = vmatprep.mubr.f32.mxu0 0.0
      %3419 = vmatmul.mubr.f32.gmra.mrb[0].mxu0 %v3249
      %v3420 = vpop.f32.mrb[0].mxu0
      %v3421 = vadd.f32 0.0, %v3420
      %v3422 = vpop.f32.mrb[0].mxu0
      %3423 = vmatprep.mubr.f32.mxu0 0.0
      %3424 = vmatmul.mubr.f32.gmra.mrb[0].mxu0 %v3252
      %v3425 = vpop.f32.mrb[0].mxu0
      %v3426 = vadd.f32 0.0, %v3425
      %v3427 = vpop.f32.mrb[0].mxu0
      %3428 = vmatprep.mubr.f32.mxu0 0.0
      %3429 = vmatmul.mubr.f32.gmra.mrb[0].mxu0 %v3255
      %v3430 = vpop.f32.mrb[0].mxu0
      %v3431 = vadd.f32 0.0, %v3430
      %v3432 = vpop.f32.mrb[0].mxu0
      %3433 = vmatprep.mubr.f32.mxu0 0.0
      %3434 = vmatmul.mubr.f32.gmra.mrb[0].mxu0 %v3258
      %v3435 = vpop.f32.mrb[0].mxu0
      %v3436 = vadd.f32 0.0, %v3435
      %v3437 = vpop.f32.mrb[0].mxu0
      %3438 = vmatprep.mubr.f32.mxu0 0.0
      %3439 = vmatmul.mubr.f32.gmra.mrb[0].mxu0 %v3261
      %v3440 = vpop.f32.mrb[0].mxu0
      %v3441 = vadd.f32 0.0, %v3440
      %v3442 = vpop.f32.mrb[0].mxu0
      %3443 = vmatprep.mubr.f32.mxu0 0.0
      %3444 = vmatmul.mubr.f32.gmra.mrb[0].mxu0 %v3264
      %v3445 = vpop.f32.mrb[0].mxu0
      %v3446 = vadd.f32 0.0, %v3445
      %v3447 = vpop.f32.mrb[0].mxu0
      %3448 = vmatprep.mubr.f32.mxu0 0.0
      %3449 = vmatmul.mubr.f32.gmra.mrb[0].mxu0 %v3267
      %v3450 = vpop.f32.mrb[0].mxu0
      %v3451 = vadd.f32 0.0, %v3450
      %v3452 = vpop.f32.mrb[0].mxu0
      %3453 = vmatprep.mubr.f32.mxu0 0.0
      %3454 = vmatmul.mubr.f32.gmra.mrb[0].mxu0 %v3270
      %v3455 = vpop.f32.mrb[0].mxu0
      %v3456 = vadd.f32 0.0, %v3455
      %v3457 = vpop.f32.mrb[0].mxu0
      %3458 = vmatprep.mubr.f32.mxu0 0.0
      %3459 = vmatmul.mubr.f32.gmra.mrb[0].mxu0 %v3273
      %v3460 = vpop.f32.mrb[0].mxu0
      %v3461 = vadd.f32 0.0, %v3460
      %v3462 = vpop.f32.mrb[0].mxu0
      %3463 = vmatprep.mubr.f32.mxu0 0.0
      %3464 = vmatmul.mubr.f32.gmra.mrb[0].mxu0 %v3276
      %v3465 = vpop.f32.mrb[0].mxu0
      %v3466 = vadd.f32 0.0, %v3465
      %v3467 = vpop.f32.mrb[0].mxu0
      %3468 = vmatprep.mubr.f32.mxu0 0.0
      %3469 = vmatmul.mubr.f32.gmra.mrb[0].mxu0 %v3279
      %v3470 = vpop.f32.mrb[0].mxu0
      %v3471 = vadd.f32 0.0, %v3470
      %v3472 = vpop.f32.mrb[0].mxu0
      %3473 = vmatprep.mubr.f32.mxu0 0.0
      %3474 = vmatmul.mubr.f32.gmra.mrb[0].mxu0 %v3282
      %v3475 = vpop.f32.mrb[0].mxu0
      %v3476 = vadd.f32 0.0, %v3475
      %v3477 = vpop.f32.mrb[0].mxu0
      %3478 = vmatprep.mubr.f32.mxu0 0.0
      %3479 = vmatmul.mubr.f32.gmra.mrb[0].mxu0 %v3285
      %v3480 = vpop.f32.mrb[0].mxu0
      %v3481 = vadd.f32 0.0, %v3480
      %v3482 = vpop.f32.mrb[0].mxu0
      %3483 = vmatprep.mubr.f32.mxu0 0.0
      %3484 = vmatmul.mubr.f32.gmra.mrb[0].mxu0 %v3288
      %v3485 = vpop.f32.mrb[0].mxu0
      %v3486 = vadd.f32 0.0, %v3485
      %v3487 = vpop.f32.mrb[0].mxu0
      %3488 = vmatprep.mubr.f32.mxu0 0.0
      %3489 = vmatmul.mubr.f32.gmra.mrb[0].mxu0 %v3291
      %v3490 = vpop.f32.mrb[0].mxu0
      %v3491 = vadd.f32 0.0, %v3490
      %v3492 = vpop.f32.mrb[0].mxu0
      %3493 = vmatprep.mubr.f32.mxu0 0.0
      %3494 = vmatmul.mubr.f32.gmra.mrb[0].mxu0 %v3294
      %v3495 = vpop.f32.mrb[0].mxu0
      %v3496 = vadd.f32 0.0, %v3495
      %v3497 = vpop.f32.mrb[0].mxu0
      %3498 = vmatprep.mubr.f32.mxu0 0.0
      %3499 = vmatmul.mubr.f32.gmra.mrb[0].mxu0 %v3297
      %v3500 = vpop.f32.mrb[0].mxu0
      %v3501 = vadd.f32 0.0, %v3500
      %v3502 = vpop.f32.mrb[0].mxu0
      %3503 = vmatprep.mubr.f32.mxu0 0.0
      %3504 = vmatmul.mubr.f32.gmra.mrb[0].mxu0 %v3300
      %v3505 = vpop.f32.mrb[0].mxu0
      %v3506 = vadd.f32 0.0, %v3505
      %v3507 = vpop.f32.mrb[0].mxu0
      %3508 = vmatprep.mubr.f32.mxu0 0.0
      %3509 = vmatmul.mubr.f32.gmra.mrb[0].mxu0 %v3303
      %v3510 = vpop.f32.mrb[0].mxu0
      %v3511 = vadd.f32 0.0, %v3510
      %v3512 = vpop.f32.mrb[0].mxu0
      %3513 = vmatprep.mubr.f32.mxu0 0.0
      %3514 = vmatmul.mubr.f32.gmra.mrb[0].mxu0 %v3306
      %v3515 = vpop.f32.mrb[0].mxu0
      %v3516 = vadd.f32 0.0, %v3515
      %v3517 = vpop.f32.mrb[0].mxu0
      %3518 = vmatprep.mubr.f32.mxu0 0.0
      %3519 = vmatmul.mubr.f32.gmra.mrb[0].mxu0 %v3309
      %v3520 = vpop.f32.mrb[0].mxu0
      %v3521 = vadd.f32 0.0, %v3520
      %v3522 = vpop.f32.mrb[0].mxu0
      %3523 = vmatprep.mubr.f32.mxu0 0.0
      %3524 = vmatmul.mubr.f32.gmra.mrb[0].mxu0 %v3312
      %v3525 = vpop.f32.mrb[0].mxu0
      %v3526 = vadd.f32 0.0, %v3525
      %v3527 = vpop.f32.mrb[0].mxu0
      %3528 = vmatprep.mubr.f32.mxu0 0.0
      %3529 = vmatmul.mubr.f32.gmra.mrb[0].mxu0 %v3315
      %v3530 = vpop.f32.mrb[0].mxu0
      %v3531 = vadd.f32 0.0, %v3530
      %v3532 = vpop.f32.mrb[0].mxu0
      %3533 = vmatprep.mubr.f32.mxu0 0.0
      %3534 = vmatmul.mubr.f32.gmra.mrb[0].mxu0 %v3318
      %v3535 = vpop.f32.mrb[0].mxu0
      %v3536 = vadd.f32 0.0, %v3535
      %v3537 = vpop.f32.mrb[0].mxu0
      %3538 = vmatprep.mubr.f32.mxu0 0.0
      %3539 = vmatmul.mubr.f32.gmra.mrb[0].mxu0 %v3321
      %v3540 = vpop.f32.mrb[0].mxu0
      %v3541 = vadd.f32 0.0, %v3540
      %v3542 = vpop.f32.mrb[0].mxu0
      %3543 = vmatprep.mubr.f32.mxu0 0.0
      %3544 = vmatmul.mubr.f32.gmra.mrb[0].mxu0 %v3324
      %v3545 = vpop.f32.mrb[0].mxu0
      %v3546 = vadd.f32 0.0, %v3545
      %v3547 = vpop.f32.mrb[0].mxu0
      %3548 = vmatprep.mubr.f32.mxu0 0.0
      %3549 = vmatmul.mubr.f32.gmra.mrb[0].mxu0 %v3327
      %v3550 = vpop.f32.mrb[0].mxu0
      %v3551 = vadd.f32 0.0, %v3550
      %v3552 = vpop.f32.mrb[0].mxu0
      %3553 = vdwg.mxu0
      %v3555 = vsel %vm613, %v3165, 0
      %v3558 = vsel %vm613, %v3166, 0
      %v3561 = vsel %vm613, %v3167, 0
      %v3564 = vsel %vm613, %v3168, 0
      %v3567 = vsel %vm613, %v3169, 0
      %v3570 = vsel %vm613, %v3170, 0
      %v3573 = vsel %vm613, %v3171, 0
      %v3576 = vsel %vm613, %v3172, 0
      %v3579 = vsel %vm613, %v3173, 0
      %v3582 = vsel %vm613, %v3174, 0
      %v3585 = vsel %vm613, %v3175, 0
      %v3588 = vsel %vm613, %v3176, 0
      %v3591 = vsel %vm613, %v3177, 0
      %v3594 = vsel %vm613, %v3178, 0
      %v3597 = vsel %vm613, %v3179, 0
      %v3600 = vsel %vm613, %v3180, 0
      %v3603 = vsel %vm613, %v3181, 0
      %v3606 = vsel %vm613, %v3182, 0
      %v3609 = vsel %vm613, %v3183, 0
      %v3612 = vsel %vm613, %v3184, 0
      %v3615 = vsel %vm613, %v3185, 0
      %v3618 = vsel %vm613, %v3186, 0
      %v3621 = vsel %vm613, %v3187, 0
      %v3624 = vsel %vm613, %v3188, 0
      %v3627 = vsel %vm613, %v3189, 0
      %v3630 = vsel %vm613, %v3190, 0
      %v3633 = vsel %vm613, %v3191, 0
      %v3636 = vsel %vm613, %v3192, 0
      %v3639 = vsel %vm613, %v3193, 0
      %v3642 = vsel %vm613, %v3194, 0
      %v3645 = vsel %vm613, %v3195, 0
      %v3648 = vsel %vm613, %v3196, 0
      %3650 = vmatprep.subr.mxu0 0.0
      %3651 = vmatpush1.msra.mxu0 %v3198
      %3652 = vmatprep.subr.mxu0 0.0
      %3653 = vmatpush1.msra.mxu0 0.0
      %3654 = vmatprep.subr.mxu0 0.0
      %3655 = vmatpush1.msra.mxu0 0.0
      %3656 = vmatprep.subr.mxu0 0.0
      %3657 = vmatpush1.msra.mxu0 0.0
      %3658 = vmatprep.subr.mxu0 0.0
      %3659 = vmatpush1.msra.mxu0 0.0
      %3660 = vmatprep.subr.mxu0 0.0
      %3661 = vmatpush1.msra.mxu0 0.0
      %3662 = vmatprep.subr.mxu0 0.0
      %3663 = vmatpush1.msra.mxu0 0.0
      %3664 = vmatprep.subr.mxu0 0.0
      %3665 = vmatpush1.msra.mxu0 0.0
      %3666 = vmatprep.subr.mxu0 0.0
      %3667 = vmatpush1.msra.mxu0 0.0
      %3668 = vmatprep.subr.mxu0 0.0
      %3669 = vmatpush1.msra.mxu0 0.0
      %3670 = vmatprep.subr.mxu0 0.0
      %3671 = vmatpush1.msra.mxu0 0.0
      %3672 = vmatprep.subr.mxu0 0.0
      %3673 = vmatpush1.msra.mxu0 0.0
      %3674 = vmatprep.subr.mxu0 0.0
      %3675 = vmatpush1.msra.mxu0 0.0
      %3676 = vmatprep.subr.mxu0 0.0
      %3677 = vmatpush1.msra.mxu0 0.0
      %3678 = vmatprep.subr.mxu0 0.0
      %3679 = vmatpush1.msra.mxu0 0.0
      %3680 = vmatprep.subr.mxu0 0.0
      %3681 = vmatpush1.msra.mxu0 0.0
      %3682 = vmatprep.subr.mxu0 0.0
      %3683 = vmatpush1.msra.mxu0 0.0
      %3684 = vmatprep.subr.mxu0 0.0
      %3685 = vmatpush1.msra.mxu0 0.0
      %3686 = vmatprep.subr.mxu0 0.0
      %3687 = vmatpush1.msra.mxu0 0.0
      %3688 = vmatprep.subr.mxu0 0.0
      %3689 = vmatpush1.msra.mxu0 0.0
      %3690 = vmatprep.subr.mxu0 0.0
      %3691 = vmatpush1.msra.mxu0 0.0
      %3692 = vmatprep.subr.mxu0 0.0
      %3693 = vmatpush1.msra.mxu0 0.0
      %3694 = vmatprep.subr.mxu0 0.0
      %3695 = vmatpush1.msra.mxu0 0.0
      %3696 = vmatprep.subr.mxu0 0.0
      %3697 = vmatpush1.msra.mxu0 0.0
      %3698 = vmatprep.subr.mxu0 0.0
      %3699 = vmatpush1.msra.mxu0 0.0
      %3700 = vmatprep.subr.mxu0 0.0
      %3701 = vmatpush1.msra.mxu0 0.0
      %3702 = vmatprep.subr.mxu0 0.0
      %3703 = vmatpush1.msra.mxu0 0.0
      %3704 = vmatprep.subr.mxu0 0.0
      %3705 = vmatpush1.msra.mxu0 0.0
      %3706 = vmatprep.subr.mxu0 0.0
      %3707 = vmatpush1.msra.mxu0 0.0
      %3708 = vmatprep.subr.mxu0 0.0
      %3709 = vmatpush1.msra.mxu0 0.0
      %3710 = vmatprep.subr.mxu0 0.0
      %3711 = vmatpush1.msra.mxu0 0.0
      %3712 = vmatprep.subr.mxu0 0.0
      %3713 = vmatpush1.msra.mxu0 0.0
      %3714 = vmatprep.mubr.f32.mxu0 0.0
      %3715 = vmatmul.mubr.f32.gmra.mrb[0].mxu0 %v3555
      %v3716 = vpop.f32.mrb[0].mxu0
      %v3717 = vadd.f32 %v3396, %v3716
      %v3718 = vpop.f32.mrb[0].mxu0
      %3719 = vmatprep.mubr.f32.mxu0 0.0
      %3720 = vmatmul.mubr.f32.gmra.mrb[0].mxu0 %v3558
      %v3721 = vpop.f32.mrb[0].mxu0
      %v3722 = vadd.f32 %v3401, %v3721
      %v3723 = vpop.f32.mrb[0].mxu0
      %3724 = vmatprep.mubr.f32.mxu0 0.0
      %3725 = vmatmul.mubr.f32.gmra.mrb[0].mxu0 %v3561
      %v3726 = vpop.f32.mrb[0].mxu0
      %v3727 = vadd.f32 %v3406, %v3726
      %v3728 = vpop.f32.mrb[0].mxu0
      %3729 = vmatprep.mubr.f32.mxu0 0.0
      %3730 = vmatmul.mubr.f32.gmra.mrb[0].mxu0 %v3564
      %v3731 = vpop.f32.mrb[0].mxu0
      %v3732 = vadd.f32 %v3411, %v3731
      %v3733 = vpop.f32.mrb[0].mxu0
      %3734 = vmatprep.mubr.f32.mxu0 0.0
      %3735 = vmatmul.mubr.f32.gmra.mrb[0].mxu0 %v3567
      %v3736 = vpop.f32.mrb[0].mxu0
      %v3737 = vadd.f32 %v3416, %v3736
      %v3738 = vpop.f32.mrb[0].mxu0
      %3739 = vmatprep.mubr.f32.mxu0 0.0
      %3740 = vmatmul.mubr.f32.gmra.mrb[0].mxu0 %v3570
      %v3741 = vpop.f32.mrb[0].mxu0
      %v3742 = vadd.f32 %v3421, %v3741
      %v3743 = vpop.f32.mrb[0].mxu0
      %3744 = vmatprep.mubr.f32.mxu0 0.0
      %3745 = vmatmul.mubr.f32.gmra.mrb[0].mxu0 %v3573
      %v3746 = vpop.f32.mrb[0].mxu0
      %v3747 = vadd.f32 %v3426, %v3746
      %v3748 = vpop.f32.mrb[0].mxu0
      %3749 = vmatprep.mubr.f32.mxu0 0.0
      %3750 = vmatmul.mubr.f32.gmra.mrb[0].mxu0 %v3576
      %v3751 = vpop.f32.mrb[0].mxu0
      %v3752 = vadd.f32 %v3431, %v3751
      %v3753 = vpop.f32.mrb[0].mxu0
      %3754 = vmatprep.mubr.f32.mxu0 0.0
      %3755 = vmatmul.mubr.f32.gmra.mrb[0].mxu0 %v3579
      %v3756 = vpop.f32.mrb[0].mxu0
      %v3757 = vadd.f32 %v3436, %v3756
      %v3758 = vpop.f32.mrb[0].mxu0
      %3759 = vmatprep.mubr.f32.mxu0 0.0
      %3760 = vmatmul.mubr.f32.gmra.mrb[0].mxu0 %v3582
      %v3761 = vpop.f32.mrb[0].mxu0
      %v3762 = vadd.f32 %v3441, %v3761
      %v3763 = vpop.f32.mrb[0].mxu0
      %3764 = vmatprep.mubr.f32.mxu0 0.0
      %3765 = vmatmul.mubr.f32.gmra.mrb[0].mxu0 %v3585
      %v3766 = vpop.f32.mrb[0].mxu0
      %v3767 = vadd.f32 %v3446, %v3766
      %v3768 = vpop.f32.mrb[0].mxu0
      %3769 = vmatprep.mubr.f32.mxu0 0.0
      %3770 = vmatmul.mubr.f32.gmra.mrb[0].mxu0 %v3588
      %v3771 = vpop.f32.mrb[0].mxu0
      %v3772 = vadd.f32 %v3451, %v3771
      %v3773 = vpop.f32.mrb[0].mxu0
      %3774 = vmatprep.mubr.f32.mxu0 0.0
      %3775 = vmatmul.mubr.f32.gmra.mrb[0].mxu0 %v3591
      %v3776 = vpop.f32.mrb[0].mxu0
      %v3777 = vadd.f32 %v3456, %v3776
      %v3778 = vpop.f32.mrb[0].mxu0
      %3779 = vmatprep.mubr.f32.mxu0 0.0
      %3780 = vmatmul.mubr.f32.gmra.mrb[0].mxu0 %v3594
      %v3781 = vpop.f32.mrb[0].mxu0
      %v3782 = vadd.f32 %v3461, %v3781
      %v3783 = vpop.f32.mrb[0].mxu0
      %3784 = vmatprep.mubr.f32.mxu0 0.0
      %3785 = vmatmul.mubr.f32.gmra.mrb[0].mxu0 %v3597
      %v3786 = vpop.f32.mrb[0].mxu0
      %v3787 = vadd.f32 %v3466, %v3786
      %v3788 = vpop.f32.mrb[0].mxu0
      %3789 = vmatprep.mubr.f32.mxu0 0.0
      %3790 = vmatmul.mubr.f32.gmra.mrb[0].mxu0 %v3600
      %v3791 = vpop.f32.mrb[0].mxu0
      %v3792 = vadd.f32 %v3471, %v3791
      %v3793 = vpop.f32.mrb[0].mxu0
      %3794 = vmatprep.mubr.f32.mxu0 0.0
      %3795 = vmatmul.mubr.f32.gmra.mrb[0].mxu0 %v3603
      %v3796 = vpop.f32.mrb[0].mxu0
      %v3797 = vadd.f32 %v3476, %v3796
      %v3798 = vpop.f32.mrb[0].mxu0
      %3799 = vmatprep.mubr.f32.mxu0 0.0
      %3800 = vmatmul.mubr.f32.gmra.mrb[0].mxu0 %v3606
      %v3801 = vpop.f32.mrb[0].mxu0
      %v3802 = vadd.f32 %v3481, %v3801
      %v3803 = vpop.f32.mrb[0].mxu0
      %3804 = vmatprep.mubr.f32.mxu0 0.0
      %3805 = vmatmul.mubr.f32.gmra.mrb[0].mxu0 %v3609
      %v3806 = vpop.f32.mrb[0].mxu0
      %v3807 = vadd.f32 %v3486, %v3806
      %v3808 = vpop.f32.mrb[0].mxu0
      %3809 = vmatprep.mubr.f32.mxu0 0.0
      %3810 = vmatmul.mubr.f32.gmra.mrb[0].mxu0 %v3612
      %v3811 = vpop.f32.mrb[0].mxu0
      %v3812 = vadd.f32 %v3491, %v3811
      %v3813 = vpop.f32.mrb[0].mxu0
      %3814 = vmatprep.mubr.f32.mxu0 0.0
      %3815 = vmatmul.mubr.f32.gmra.mrb[0].mxu0 %v3615
      %v3816 = vpop.f32.mrb[0].mxu0
      %v3817 = vadd.f32 %v3496, %v3816
      %v3818 = vpop.f32.mrb[0].mxu0
      %3819 = vmatprep.mubr.f32.mxu0 0.0
      %3820 = vmatmul.mubr.f32.gmra.mrb[0].mxu0 %v3618
      %v3821 = vpop.f32.mrb[0].mxu0
      %v3822 = vadd.f32 %v3501, %v3821
      %v3823 = vpop.f32.mrb[0].mxu0
      %3824 = vmatprep.mubr.f32.mxu0 0.0
      %3825 = vmatmul.mubr.f32.gmra.mrb[0].mxu0 %v3621
      %v3826 = vpop.f32.mrb[0].mxu0
      %v3827 = vadd.f32 %v3506, %v3826
      %v3828 = vpop.f32.mrb[0].mxu0
      %3829 = vmatprep.mubr.f32.mxu0 0.0
      %3830 = vmatmul.mubr.f32.gmra.mrb[0].mxu0 %v3624
      %v3831 = vpop.f32.mrb[0].mxu0
      %v3832 = vadd.f32 %v3511, %v3831
      %v3833 = vpop.f32.mrb[0].mxu0
      %3834 = vmatprep.mubr.f32.mxu0 0.0
      %3835 = vmatmul.mubr.f32.gmra.mrb[0].mxu0 %v3627
      %v3836 = vpop.f32.mrb[0].mxu0
      %v3837 = vadd.f32 %v3516, %v3836
      %v3838 = vpop.f32.mrb[0].mxu0
      %3839 = vmatprep.mubr.f32.mxu0 0.0
      %3840 = vmatmul.mubr.f32.gmra.mrb[0].mxu0 %v3630
      %v3841 = vpop.f32.mrb[0].mxu0
      %v3842 = vadd.f32 %v3521, %v3841
      %v3843 = vpop.f32.mrb[0].mxu0
      %3844 = vmatprep.mubr.f32.mxu0 0.0
      %3845 = vmatmul.mubr.f32.gmra.mrb[0].mxu0 %v3633
      %v3846 = vpop.f32.mrb[0].mxu0
      %v3847 = vadd.f32 %v3526, %v3846
      %v3848 = vpop.f32.mrb[0].mxu0
      %3849 = vmatprep.mubr.f32.mxu0 0.0
      %3850 = vmatmul.mubr.f32.gmra.mrb[0].mxu0 %v3636
      %v3851 = vpop.f32.mrb[0].mxu0
      %v3852 = vadd.f32 %v3531, %v3851
      %v3853 = vpop.f32.mrb[0].mxu0
      %3854 = vmatprep.mubr.f32.mxu0 0.0
      %3855 = vmatmul.mubr.f32.gmra.mrb[0].mxu0 %v3639
      %v3856 = vpop.f32.mrb[0].mxu0
      %v3857 = vadd.f32 %v3536, %v3856
      %v3858 = vpop.f32.mrb[0].mxu0
      %3859 = vmatprep.mubr.f32.mxu0 0.0
      %3860 = vmatmul.mubr.f32.gmra.mrb[0].mxu0 %v3642
      %v3861 = vpop.f32.mrb[0].mxu0
      %v3862 = vadd.f32 %v3541, %v3861
      %v3863 = vpop.f32.mrb[0].mxu0
      %3864 = vmatprep.mubr.f32.mxu0 0.0
      %3865 = vmatmul.mubr.f32.gmra.mrb[0].mxu0 %v3645
      %v3866 = vpop.f32.mrb[0].mxu0
      %v3867 = vadd.f32 %v3546, %v3866
      %v3868 = vpop.f32.mrb[0].mxu0
      %3869 = vmatprep.mubr.f32.mxu0 0.0
      %3870 = vmatmul.mubr.f32.gmra.mrb[0].mxu0 %v3648
      %v3871 = vpop.f32.mrb[0].mxu0
      %v3872 = vadd.f32 %v3551, %v3871
      %v3873 = vpop.f32.mrb[0].mxu0
      %3874 = vdwg.mxu0
      %v3875 = vadd.f32 %v3717, %v1260
      %v3876 = vadd.f32 %v3722, %v1260
      %v3877 = vadd.f32 %v3727, %v1260
      %v3878 = vadd.f32 %v3732, %v1260
      %v3879 = vadd.f32 %v3737, %v1260
      %v3880 = vadd.f32 %v3742, %v1260
      %v3881 = vadd.f32 %v3747, %v1260
      %v3882 = vadd.f32 %v3752, %v1260
      %v3883 = vadd.f32 %v3757, %v1260
      %v3884 = vadd.f32 %v3762, %v1260
      %v3885 = vadd.f32 %v3767, %v1260
      %v3886 = vadd.f32 %v3772, %v1260
      %v3887 = vadd.f32 %v3777, %v1260
      %v3888 = vadd.f32 %v3782, %v1260
      %v3889 = vadd.f32 %v3787, %v1260
      %v3890 = vadd.f32 %v3792, %v1260
      %v3891 = vadd.f32 %v3797, %v1260
      %v3892 = vadd.f32 %v3802, %v1260
      %v3893 = vadd.f32 %v3807, %v1260
      %v3894 = vadd.f32 %v3812, %v1260
      %v3895 = vadd.f32 %v3817, %v1260
      %v3896 = vadd.f32 %v3822, %v1260
      %v3897 = vadd.f32 %v3827, %v1260
      %v3898 = vadd.f32 %v3832, %v1260
      %v3899 = vadd.f32 %v3837, %v1260
      %v3900 = vadd.f32 %v3842, %v1260
      %v3901 = vadd.f32 %v3847, %v1260
      %v3902 = vadd.f32 %v3852, %v1260
      %v3903 = vadd.f32 %v3857, %v1260
      %v3904 = vadd.f32 %v3862, %v1260
      %v3905 = vadd.f32 %v3867, %v1260
      %v3906 = vadd.f32 %v3872, %v1260
      %s3907 = scalar_lea.vmem %s252, 768
      %3908 = vst.msk [vmem:[%s3907] sm:$0xff] %vm291, %v3875
      %3909 = vst.msk [vmem:[%s3907 + $0x8] sm:$0xff] %vm291, %v3876
      %3910 = vst.msk [vmem:[%s3907 + $0x10] sm:$0xff] %vm291, %v3877
      %3911 = vst.msk [vmem:[%s3907 + $0x18] sm:$0xff] %vm291, %v3878
      %3912 = vst.msk [vmem:[%s3907 + $0x20] sm:$0xff] %vm291, %v3879
      %3913 = vst.msk [vmem:[%s3907 + $0x28] sm:$0xff] %vm291, %v3880
      %3914 = vst.msk [vmem:[%s3907 + $0x30] sm:$0xff] %vm291, %v3881
      %3915 = vst.msk [vmem:[%s3907 + $0x38] sm:$0xff] %vm291, %v3882
      %3916 = vst.msk [vmem:[%s3907 + $0x40] sm:$0xff] %vm291, %v3883
      %3917 = vst.msk [vmem:[%s3907 + $0x48] sm:$0xff] %vm291, %v3884
      %3918 = vst.msk [vmem:[%s3907 + $0x50] sm:$0xff] %vm291, %v3885
      %3919 = vst.msk [vmem:[%s3907 + $0x58] sm:$0xff] %vm291, %v3886
      %3920 = vst.msk [vmem:[%s3907 + $0x60] sm:$0xff] %vm291, %v3887
      %3921 = vst.msk [vmem:[%s3907 + $0x68] sm:$0xff] %vm291, %v3888
      %3922 = vst.msk [vmem:[%s3907 + $0x70] sm:$0xff] %vm291, %v3889
      %3923 = vst.msk [vmem:[%s3907 + $0x78] sm:$0xff] %vm291, %v3890
      %3924 = vst.msk [vmem:[%s3907 + $0x80] sm:$0xff] %vm291, %v3891
      %3925 = vst.msk [vmem:[%s3907 + $0x88] sm:$0xff] %vm291, %v3892
      %3926 = vst.msk [vmem:[%s3907 + $0x90] sm:$0xff] %vm291, %v3893
      %3927 = vst.msk [vmem:[%s3907 + $0x98] sm:$0xff] %vm291, %v3894
      %3928 = vst.msk [vmem:[%s3907 + $0xa0] sm:$0xff] %vm291, %v3895
      %3929 = vst.msk [vmem:[%s3907 + $0xa8] sm:$0xff] %vm291, %v3896
      %3930 = vst.msk [vmem:[%s3907 + $0xb0] sm:$0xff] %vm291, %v3897
      %3931 = vst.msk [vmem:[%s3907 + $0xb8] sm:$0xff] %vm291, %v3898
      %3932 = vst.msk [vmem:[%s3907 + $0xc0] sm:$0xff] %vm291, %v3899
      %3933 = vst.msk [vmem:[%s3907 + $0xc8] sm:$0xff] %vm291, %v3900
      %3934 = vst.msk [vmem:[%s3907 + $0xd0] sm:$0xff] %vm291, %v3901
      %3935 = vst.msk [vmem:[%s3907 + $0xd8] sm:$0xff] %vm291, %v3902
      %3936 = vst.msk [vmem:[%s3907 + $0xe0] sm:$0xff] %vm291, %v3903
      %3937 = vst.msk [vmem:[%s3907 + $0xe8] sm:$0xff] %vm291, %v3904
      %3938 = vst.msk [vmem:[%s3907 + $0xf0] sm:$0xff] %vm291, %v3905
      %3939 = vst.msk [vmem:[%s3907 + $0xf8] sm:$0xff] %vm291, %v3906
      %s3940 = smul.u32 32, %s20
      %p3941 = scmp.lt.s32.totalorder %s19, 1
      %s3942 = scalar_select %p3941, %s19, 1
      %p3943 = scmp.lt.s32.totalorder %s3940, 31
      %s3944 = scalar_select %p3943, %s3940, 31
      %p3945 = scmp.lt.s32.totalorder %s21, 0
      %s3946 = scalar_select %p3945, %s21, 0
      %s3947 = sadd.s32 %s3946, %s3944
      %s3948 = smul.addr %s3942, 128
      %s3949 = sadd.s32 %s3947, %s3948
      %s3950 = smul.addr %s3949, 8
      %s3951 = scalar_lea.vmem %s3, %s3950
      // Predicated region
      $region33: #{tpu_custom_call.1} parent=31 // pred_check
        %p3952 = pneg %p135
      $region34: #{tpu_custom_call.1} parent=31 // pred_check_branch
        %3954 = sbr.rel (%p3952) target = $region36
      $region35: #{tpu_custom_call.1} parent=31 // pred_region
        %s3955 = smul.u32 32, %s20
      $region36: #{tpu_custom_call.1} parent=31 // pred_fallthru
        _
    $region32: #{tpu_custom_call.1} parent=5 // pred_fallthru
      _
    %p3956 = scmp.le.s32.totalorder 2, %s9
    // Predicated region
    $region37: #{tpu_custom_call.1} parent=5 // pred_check
      %p3957 = pneg %p3956
    $region38: #{tpu_custom_call.1} parent=5 // pred_check_branch
      %3959 = sbr.rel (%p3957) target = $region40
    $region39: #{tpu_custom_call.1} parent=5 // pred_region
      %s3960 = ssub.s32 %s9, 2
      // Predicated region
      $region41: #{tpu_custom_call.1} parent=39 // pred_check
        %p3961 = pneg %p141
      $region42: #{tpu_custom_call.1} parent=39 // pred_check_branch
        %3963 = sbr.rel (%p3961) target = $region44
      $region43: #{tpu_custom_call.1} parent=39 // pred_region
        %s3964 = smul.u32 32, %s23
        %p3965 = scmp.lt.s32.totalorder %s22, 1
        %s3966 = scalar_select %p3965, %s22, 1
        %p3967 = scmp.lt.s32.totalorder %s3964, 31
        %s3968 = scalar_select %p3967, %s3964, 31
        %p3969 = scmp.lt.s32.totalorder %s24, 0
        %s3970 = scalar_select %p3969, %s24, 0
        %s3971 = sadd.s32 %s3970, %s3968
        %s3972 = smul.addr %s3966, 128
        %s3973 = sadd.s32 %s3971, %s3972
        %s3974 = smul.addr %s3973, 8
        %s3975 = scalar_lea.vmem %s3, %s3974
      $region44: #{tpu_custom_call.1} parent=39 // pred_fallthru
        _
    $region40: #{tpu_custom_call.1} parent=5 // pred_fallthru
      _
  $region6: #{tpu_custom_call.1} parent=0 // loop_footer
    %s13 = sadd.s32 1, %s9
  $region7: #{tpu_custom_call.1} parent=0 // loop_footer_branch
    %8 = sbr.rel target = $region3
  $region8: #{tpu_custom_call.1} parent=0 // loop_exit
    _

</llo_original>
